<compile_context>
chip_gen: v6e
topology: v6e:2x2x1
jax: 0.10.0
libtpu: 0.0.40
codegen_flags: <defaults>
</compile_context>

<pallas_src>
import functools

import jax
import jax.numpy as jnp
from jax import lax
from jax.experimental import pallas as pl
from jax.experimental.pallas import tpu as pltpu


def _expand_shuffle_ln_kernel(x_ref, w_ref, g_ref, b_ref, o_ref, *, eps):
    """One grid step processes `th` rows of the flattened (B*H) axis, full W.

    x_ref: (th, W, C)       input tokens
    w_ref: (C, 16C)         expand weight; column j = chunk j//C (= p1*4+p2), chan j%C
    g_ref, b_ref: (1, C)    LayerNorm affine params
    o_ref: (th, 4, W, 4C)   output already in pixel-shuffled order:
                            element (r, p1, w, p2*C + c) of the final (B,16HW,C) tensor
    """
    th, W, C = x_ref.shape
    x = x_ref[...].reshape(th * W, C)                 # leading-dim merge: free
    # Single wide MXU matmul (N = 16C) with f32 accumulation.
    h = jnp.dot(x, w_ref[...], preferred_element_type=jnp.float32)   # (th*W, 16C) f32
    g = g_ref[...].astype(jnp.float32)                # (1, C)
    b = b_ref[...].astype(jnp.float32)                # (1, C)
    inv_c = 1.0 / C
    for p1 in range(4):
        parts = []
        for p2 in range(4):
            k = p1 * 4 + p2
            hk = h[:, k * C:(k + 1) * C]              # (th*W, C) static lane slice
            mu = jnp.sum(hk, axis=-1, keepdims=True) * inv_c
            ms = jnp.sum(hk * hk, axis=-1, keepdims=True) * inv_c
            var = jnp.maximum(ms - mu * mu, 0.0)      # one-pass variance (LN-scale safe)
            parts.append((hk - mu) * lax.rsqrt(var + eps) * g + b)
        yp = jnp.concatenate(parts, axis=-1)          # (th*W, 4C) lane-dense group p1
        o_ref[:, p1:p1 + 1, :, :] = (
            yp.reshape(th, 1, W, 4 * C).astype(o_ref.dtype))


def _pick_rows_per_step(BH, W, C, in_isz, out_isz, max_tile_rows, budget_bytes):
    """Largest divisor `th` of B*H such that one grid step fits the VMEM budget."""
    fixed = 2 * 16 * C * C * in_isz                   # double-buffered resident weight
    avail = budget_bytes - fixed

    def tile_bytes(th):
        tm = th * W
        return (2 * 16 * tm * C * out_isz             # double-buffered output block
                + 2 * tm * C * in_isz                 # double-buffered input block
                + 2 * 16 * tm * C * 4)                # f32 matmul result + LN temporaries

    best = 1
    for d in range(1, BH + 1):
        if BH % d:
            continue
        if d * W > max_tile_rows or tile_bytes(d) > avail:
            continue
        if BH // d >= 2 or BH == 1:                   # prefer >=2 grid steps (megacore)
            best = d
    return best


def final_patch_expand_x4(x, w, gamma, beta, input_resolution, *,
                          eps=1e-5, max_tile_rows=512, matmul_dtype=None,
                          out_dtype=None, vmem_limit_bytes=40 * 1024 * 1024):
    """x: (B, H*W, C); w: (C, 16*C) (already transposed vs. PyTorch's (out, in) layout,
    i.e. pass W_pt.T); gamma/beta: (C,). Returns (B, 16*H*W, C).

    Production knobs: matmul_dtype=jnp.bfloat16 (MXU throughput), out_dtype=jnp.bfloat16
    (halves the dominant HBM writeback)."""
    H, W = input_resolution
    B, L, C = x.shape
    assert L == H * W, "input feature has wrong size"
    assert w.shape == (C, 16 * C)

    out_dtype = out_dtype if out_dtype is not None else x.dtype
    if matmul_dtype is not None:
        x = x.astype(matmul_dtype)
        w = w.astype(matmul_dtype)

    BH = B * H
    x3 = x.reshape(BH, W, C)                          # free reshape, no transpose
    g2 = gamma.reshape(1, C)
    b2 = beta.reshape(1, C)

    in_isz = jnp.dtype(x3.dtype).itemsize
    out_isz = jnp.dtype(out_dtype).itemsize
    th = _pick_rows_per_step(BH, W, C, in_isz, out_isz, max_tile_rows,
                             budget_bytes=int(0.75 * vmem_limit_bytes))
    grid = (BH // th,)

    out = pl.pallas_call(
        functools.partial(_expand_shuffle_ln_kernel, eps=float(eps)),
        out_shape=jax.ShapeDtypeStruct((BH, 4, W, 4 * C), out_dtype),
        grid_spec=pltpu.PrefetchScalarGridSpec(
            num_scalar_prefetch=0,
            grid=grid,
            in_specs=[
                pl.BlockSpec((th, W, C), lambda i: (i, 0, 0)),   # x row block
                # Grid-invariant inputs (fetched once; could be pl.Buffered(1) to save
                # the second buffer on v7x for large C).
                pl.BlockSpec((C, 16 * C), lambda i: (0, 0)),     # expand weight
                pl.BlockSpec((1, C), lambda i: (0, 0)),          # gamma
                pl.BlockSpec((1, C), lambda i: (0, 0)),          # beta
            ],
            out_specs=pl.BlockSpec((th, 4, W, 4 * C), lambda i: (i, 0, 0, 0)),
        ),
        compiler_params=pltpu.CompilerParams(
            dimension_semantics=("parallel",),
            vmem_limit_bytes=vmem_limit_bytes,       # safe on v7x (64MiB/TC), v5e/v6e (128MiB)
        ),
    )(x3, w, g2, b2)

    # (BH, 4, W, 4C) is already (b, h, p1, w, p2, c) in row-major order -> free reshape.
    return out.reshape(B, 16 * H * W, C)


def final_patch_expand_x4_reference(x, w, gamma, beta, H, W, eps=1e-5):
    B, L, C = x.shape
    h = jnp.einsum("blc,cd->bld", x, w, precision=lax.Precision.HIGHEST)  # (B, L, 16C)
    h = h.reshape(B, H, W, 4, 4, C)                     # (b, h, w, p1, p2, c)
    h = jnp.transpose(h, (0, 1, 3, 2, 4, 5))            # (b, h, p1, w, p2, c)
    h = h.reshape(B, 16 * H * W, C)
    mu = jnp.mean(h, axis=-1, keepdims=True)
    var = jnp.mean((h - mu) ** 2, axis=-1, keepdims=True)
    return (h - mu) * lax.rsqrt(var + eps) * gamma + beta


if __name__ == "__main__":
    key = jax.random.PRNGKey(0)
    B = 2
    H = W = 8           # input_resolution
    dim = 32            # channel dim (small demo size)

    kx, kw, kg, kb = jax.random.split(key, 4)
    x = jax.random.normal(kx, (B, H * W, dim), dtype=jnp.float32)
    # nn.Linear(dim, 16*dim, bias=False): PyTorch stores (out, in); we keep (in, out)
    # so y = x @ w matches x @ W_pt^T.
    w = jax.random.normal(kw, (dim, 16 * dim), dtype=jnp.float32) * (1.0 / dim ** 0.5)
    gamma = 1.0 + 0.1 * jax.random.normal(kg, (dim,), dtype=jnp.float32)
    beta = 0.1 * jax.random.normal(kb, (dim,), dtype=jnp.float32)

    y = final_patch_expand_x4(x, w, gamma, beta, (H, W))
    jax.block_until_ready(y)

    y_ref = final_patch_expand_x4_reference(x, w, gamma, beta, H, W)
    assert y.shape == (B, 16 * H * W, dim)
    max_diff = jnp.max(jnp.abs(y - y_ref))
    assert jnp.allclose(y, y_ref, atol=2e-4, rtol=2e-4), (
        f"mismatch vs reference, max abs diff = {max_diff}")

    print("KERNEL_OK")
</pallas_src>

<mosaic_0001>
module attributes {stable_mosaic.version = 11 : i64} {
  func.func @_expand_shuffle_ln_kernel(%arg0: i32, %arg1: memref<8x8x32xf32, #tpu.memory_space<vmem>>, %arg2: memref<32x512xf32, #tpu.memory_space<vmem>>, %arg3: memref<1x32xf32, #tpu.memory_space<vmem>>, %arg4: memref<1x32xf32, #tpu.memory_space<vmem>>, %arg5: memref<8x4x8x128xf32, #tpu.memory_space<vmem>>) attributes {dimension_semantics = [#tpu.dimension_semantics<parallel>], iteration_bounds = array<i64: 2>, scalar_prefetch = 0 : i64, scratch_operands = 0 : i64, tpu.core_type = #tpu.core_type<tc>, window_params = [{transform_indices = @transform_0, window_bounds = array<i64: 8, 8, 32>}, {pipeline_mode = #tpu.pipeline_mode<synchronous>, transform_indices = @transform_1, window_bounds = array<i64: 32, 512>}, {pipeline_mode = #tpu.pipeline_mode<synchronous>, transform_indices = @transform_2, window_bounds = array<i64: 1, 32>}, {pipeline_mode = #tpu.pipeline_mode<synchronous>, transform_indices = @transform_3, window_bounds = array<i64: 1, 32>}, {transform_indices = @transform_4, window_bounds = array<i64: 8, 4, 8, 128>}]} {
    %c0 = arith.constant 0 : index
    %c0_0 = arith.constant 0 : index
    %c0_1 = arith.constant 0 : index
    %0 = vector.load %arg1[%c0, %c0_0, %c0_1] : memref<8x8x32xf32, #tpu.memory_space<vmem>>, vector<8x8x32xf32>
    %1 = vector.shape_cast %0 : vector<8x8x32xf32> to vector<64x32xf32>
    %c0_2 = arith.constant 0 : index
    %c0_3 = arith.constant 0 : index
    %2 = vector.load %arg2[%c0_2, %c0_3] : memref<32x512xf32, #tpu.memory_space<vmem>>, vector<32x512xf32>
    %cst = arith.constant dense<0.000000e+00> : vector<64x512xf32>
    %3 = tpu.matmul %1, %2, %cst {dimension_numbers = #tpu.dot_dimension_numbers<[1], [0], [0], [1], [0, 0, 1, 1], [], []>} : vector<64x32xf32>, vector<32x512xf32>, vector<64x512xf32> -> vector<64x512xf32>
    %c0_4 = arith.constant 0 : index
    %c0_5 = arith.constant 0 : index
    %4 = vector.load %arg3[%c0_4, %c0_5] : memref<1x32xf32, #tpu.memory_space<vmem>>, vector<1x32xf32>
    %c0_6 = arith.constant 0 : index
    %c0_7 = arith.constant 0 : index
    %5 = vector.load %arg4[%c0_6, %c0_7] : memref<1x32xf32, #tpu.memory_space<vmem>>, vector<1x32xf32>
    %6 = vector.extract_strided_slice %3 {offsets = [0, 0], sizes = [64, 32], strides = [1, 1]} : vector<64x512xf32> to vector<64x32xf32>
    %cst_8 = arith.constant dense<0.000000e+00> : vector<64xf32>
    %7 = vector.multi_reduction <add>, %6, %cst_8 [1] : vector<64x32xf32> to vector<64xf32>
    %8 = vector.shape_cast %7 : vector<64xf32> to vector<64x1xf32>
    %cst_9 = arith.constant 3.125000e-02 : f32
    %9 = vector.broadcast %cst_9 : f32 to vector<64x1xf32>
    %10 = arith.mulf %8, %9 : vector<64x1xf32>
    %11 = arith.mulf %6, %6 : vector<64x32xf32>
    %cst_10 = arith.constant dense<0.000000e+00> : vector<64xf32>
    %12 = vector.multi_reduction <add>, %11, %cst_10 [1] : vector<64x32xf32> to vector<64xf32>
    %13 = vector.shape_cast %12 : vector<64xf32> to vector<64x1xf32>
    %cst_11 = arith.constant 3.125000e-02 : f32
    %14 = vector.broadcast %cst_11 : f32 to vector<64x1xf32>
    %15 = arith.mulf %13, %14 : vector<64x1xf32>
    %16 = arith.mulf %10, %10 : vector<64x1xf32>
    %17 = arith.subf %15, %16 : vector<64x1xf32>
    %cst_12 = arith.constant 0.000000e+00 : f32
    %18 = vector.broadcast %cst_12 : f32 to vector<64x1xf32>
    %19 = arith.maximumf %17, %18 : vector<64x1xf32>
    %20 = vector.broadcast %10 : vector<64x1xf32> to vector<64x32xf32>
    %21 = arith.subf %6, %20 : vector<64x32xf32>
    %cst_13 = arith.constant 9.99999974E-6 : f32
    %22 = vector.broadcast %cst_13 : f32 to vector<64x1xf32>
    %23 = arith.addf %19, %22 : vector<64x1xf32>
    %24 = math.rsqrt %23 : vector<64x1xf32>
    %25 = vector.broadcast %24 : vector<64x1xf32> to vector<64x32xf32>
    %26 = arith.mulf %21, %25 : vector<64x32xf32>
    %27 = vector.broadcast %4 : vector<1x32xf32> to vector<64x32xf32>
    %28 = arith.mulf %26, %27 : vector<64x32xf32>
    %29 = vector.broadcast %5 : vector<1x32xf32> to vector<64x32xf32>
    %30 = arith.addf %28, %29 : vector<64x32xf32>
    %31 = vector.extract_strided_slice %3 {offsets = [0, 32], sizes = [64, 32], strides = [1, 1]} : vector<64x512xf32> to vector<64x32xf32>
    %cst_14 = arith.constant dense<0.000000e+00> : vector<64xf32>
    %32 = vector.multi_reduction <add>, %31, %cst_14 [1] : vector<64x32xf32> to vector<64xf32>
    %33 = vector.shape_cast %32 : vector<64xf32> to vector<64x1xf32>
    %cst_15 = arith.constant 3.125000e-02 : f32
    %34 = vector.broadcast %cst_15 : f32 to vector<64x1xf32>
    %35 = arith.mulf %33, %34 : vector<64x1xf32>
    %36 = arith.mulf %31, %31 : vector<64x32xf32>
    %cst_16 = arith.constant dense<0.000000e+00> : vector<64xf32>
    %37 = vector.multi_reduction <add>, %36, %cst_16 [1] : vector<64x32xf32> to vector<64xf32>
    %38 = vector.shape_cast %37 : vector<64xf32> to vector<64x1xf32>
    %cst_17 = arith.constant 3.125000e-02 : f32
    %39 = vector.broadcast %cst_17 : f32 to vector<64x1xf32>
    %40 = arith.mulf %38, %39 : vector<64x1xf32>
    %41 = arith.mulf %35, %35 : vector<64x1xf32>
    %42 = arith.subf %40, %41 : vector<64x1xf32>
    %cst_18 = arith.constant 0.000000e+00 : f32
    %43 = vector.broadcast %cst_18 : f32 to vector<64x1xf32>
    %44 = arith.maximumf %42, %43 : vector<64x1xf32>
    %45 = vector.broadcast %35 : vector<64x1xf32> to vector<64x32xf32>
    %46 = arith.subf %31, %45 : vector<64x32xf32>
    %cst_19 = arith.constant 9.99999974E-6 : f32
    %47 = vector.broadcast %cst_19 : f32 to vector<64x1xf32>
    %48 = arith.addf %44, %47 : vector<64x1xf32>
    %49 = math.rsqrt %48 : vector<64x1xf32>
    %50 = vector.broadcast %49 : vector<64x1xf32> to vector<64x32xf32>
    %51 = arith.mulf %46, %50 : vector<64x32xf32>
    %52 = vector.broadcast %4 : vector<1x32xf32> to vector<64x32xf32>
    %53 = arith.mulf %51, %52 : vector<64x32xf32>
    %54 = vector.broadcast %5 : vector<1x32xf32> to vector<64x32xf32>
    %55 = arith.addf %53, %54 : vector<64x32xf32>
    %56 = vector.extract_strided_slice %3 {offsets = [0, 64], sizes = [64, 32], strides = [1, 1]} : vector<64x512xf32> to vector<64x32xf32>
    %cst_20 = arith.constant dense<0.000000e+00> : vector<64xf32>
    %57 = vector.multi_reduction <add>, %56, %cst_20 [1] : vector<64x32xf32> to vector<64xf32>
    %58 = vector.shape_cast %57 : vector<64xf32> to vector<64x1xf32>
    %cst_21 = arith.constant 3.125000e-02 : f32
    %59 = vector.broadcast %cst_21 : f32 to vector<64x1xf32>
    %60 = arith.mulf %58, %59 : vector<64x1xf32>
    %61 = arith.mulf %56, %56 : vector<64x32xf32>
    %cst_22 = arith.constant dense<0.000000e+00> : vector<64xf32>
    %62 = vector.multi_reduction <add>, %61, %cst_22 [1] : vector<64x32xf32> to vector<64xf32>
    %63 = vector.shape_cast %62 : vector<64xf32> to vector<64x1xf32>
    %cst_23 = arith.constant 3.125000e-02 : f32
    %64 = vector.broadcast %cst_23 : f32 to vector<64x1xf32>
    %65 = arith.mulf %63, %64 : vector<64x1xf32>
    %66 = arith.mulf %60, %60 : vector<64x1xf32>
    %67 = arith.subf %65, %66 : vector<64x1xf32>
    %cst_24 = arith.constant 0.000000e+00 : f32
    %68 = vector.broadcast %cst_24 : f32 to vector<64x1xf32>
    %69 = arith.maximumf %67, %68 : vector<64x1xf32>
    %70 = vector.broadcast %60 : vector<64x1xf32> to vector<64x32xf32>
    %71 = arith.subf %56, %70 : vector<64x32xf32>
    %cst_25 = arith.constant 9.99999974E-6 : f32
    %72 = vector.broadcast %cst_25 : f32 to vector<64x1xf32>
    %73 = arith.addf %69, %72 : vector<64x1xf32>
    %74 = math.rsqrt %73 : vector<64x1xf32>
    %75 = vector.broadcast %74 : vector<64x1xf32> to vector<64x32xf32>
    %76 = arith.mulf %71, %75 : vector<64x32xf32>
    %77 = vector.broadcast %4 : vector<1x32xf32> to vector<64x32xf32>
    %78 = arith.mulf %76, %77 : vector<64x32xf32>
    %79 = vector.broadcast %5 : vector<1x32xf32> to vector<64x32xf32>
    %80 = arith.addf %78, %79 : vector<64x32xf32>
    %81 = vector.extract_strided_slice %3 {offsets = [0, 96], sizes = [64, 32], strides = [1, 1]} : vector<64x512xf32> to vector<64x32xf32>
    %cst_26 = arith.constant dense<0.000000e+00> : vector<64xf32>
    %82 = vector.multi_reduction <add>, %81, %cst_26 [1] : vector<64x32xf32> to vector<64xf32>
    %83 = vector.shape_cast %82 : vector<64xf32> to vector<64x1xf32>
    %cst_27 = arith.constant 3.125000e-02 : f32
    %84 = vector.broadcast %cst_27 : f32 to vector<64x1xf32>
    %85 = arith.mulf %83, %84 : vector<64x1xf32>
    %86 = arith.mulf %81, %81 : vector<64x32xf32>
    %cst_28 = arith.constant dense<0.000000e+00> : vector<64xf32>
    %87 = vector.multi_reduction <add>, %86, %cst_28 [1] : vector<64x32xf32> to vector<64xf32>
    %88 = vector.shape_cast %87 : vector<64xf32> to vector<64x1xf32>
    %cst_29 = arith.constant 3.125000e-02 : f32
    %89 = vector.broadcast %cst_29 : f32 to vector<64x1xf32>
    %90 = arith.mulf %88, %89 : vector<64x1xf32>
    %91 = arith.mulf %85, %85 : vector<64x1xf32>
    %92 = arith.subf %90, %91 : vector<64x1xf32>
    %cst_30 = arith.constant 0.000000e+00 : f32
    %93 = vector.broadcast %cst_30 : f32 to vector<64x1xf32>
    %94 = arith.maximumf %92, %93 : vector<64x1xf32>
    %95 = vector.broadcast %85 : vector<64x1xf32> to vector<64x32xf32>
    %96 = arith.subf %81, %95 : vector<64x32xf32>
    %cst_31 = arith.constant 9.99999974E-6 : f32
    %97 = vector.broadcast %cst_31 : f32 to vector<64x1xf32>
    %98 = arith.addf %94, %97 : vector<64x1xf32>
    %99 = math.rsqrt %98 : vector<64x1xf32>
    %100 = vector.broadcast %99 : vector<64x1xf32> to vector<64x32xf32>
    %101 = arith.mulf %96, %100 : vector<64x32xf32>
    %102 = vector.broadcast %4 : vector<1x32xf32> to vector<64x32xf32>
    %103 = arith.mulf %101, %102 : vector<64x32xf32>
    %104 = vector.broadcast %5 : vector<1x32xf32> to vector<64x32xf32>
    %105 = arith.addf %103, %104 : vector<64x32xf32>
    %106 = tpu.concatenate %30, %55, %80, %105 in 1 : vector<64x32xf32>, vector<64x32xf32>, vector<64x32xf32>, vector<64x32xf32> -> vector<64x128xf32>
    %107 = vector.shape_cast %106 : vector<64x128xf32> to vector<8x1x8x128xf32>
    %c0_32 = arith.constant 0 : index
    %c0_33 = arith.constant 0 : index
    %c0_34 = arith.constant 0 : index
    %c0_35 = arith.constant 0 : index
    %108 = vector.load %arg5[%c0_32, %c0_33, %c0_34, %c0_35] : memref<8x4x8x128xf32, #tpu.memory_space<vmem>>, vector<8x1x8x128xf32>
    tpu.vector_store %arg5[%c0_32, %c0_33, %c0_34, %c0_35], %107 {strides = array<i32>} : memref<8x4x8x128xf32, #tpu.memory_space<vmem>>, vector<8x1x8x128xf32>,
    %109 = vector.extract_strided_slice %3 {offsets = [0, 128], sizes = [64, 32], strides = [1, 1]} : vector<64x512xf32> to vector<64x32xf32>
    %cst_36 = arith.constant dense<0.000000e+00> : vector<64xf32>
    %110 = vector.multi_reduction <add>, %109, %cst_36 [1] : vector<64x32xf32> to vector<64xf32>
    %111 = vector.shape_cast %110 : vector<64xf32> to vector<64x1xf32>
    %cst_37 = arith.constant 3.125000e-02 : f32
    %112 = vector.broadcast %cst_37 : f32 to vector<64x1xf32>
    %113 = arith.mulf %111, %112 : vector<64x1xf32>
    %114 = arith.mulf %109, %109 : vector<64x32xf32>
    %cst_38 = arith.constant dense<0.000000e+00> : vector<64xf32>
    %115 = vector.multi_reduction <add>, %114, %cst_38 [1] : vector<64x32xf32> to vector<64xf32>
    %116 = vector.shape_cast %115 : vector<64xf32> to vector<64x1xf32>
    %cst_39 = arith.constant 3.125000e-02 : f32
    %117 = vector.broadcast %cst_39 : f32 to vector<64x1xf32>
    %118 = arith.mulf %116, %117 : vector<64x1xf32>
    %119 = arith.mulf %113, %113 : vector<64x1xf32>
    %120 = arith.subf %118, %119 : vector<64x1xf32>
    %cst_40 = arith.constant 0.000000e+00 : f32
    %121 = vector.broadcast %cst_40 : f32 to vector<64x1xf32>
    %122 = arith.maximumf %120, %121 : vector<64x1xf32>
    %123 = vector.broadcast %113 : vector<64x1xf32> to vector<64x32xf32>
    %124 = arith.subf %109, %123 : vector<64x32xf32>
    %cst_41 = arith.constant 9.99999974E-6 : f32
    %125 = vector.broadcast %cst_41 : f32 to vector<64x1xf32>
    %126 = arith.addf %122, %125 : vector<64x1xf32>
    %127 = math.rsqrt %126 : vector<64x1xf32>
    %128 = vector.broadcast %127 : vector<64x1xf32> to vector<64x32xf32>
    %129 = arith.mulf %124, %128 : vector<64x32xf32>
    %130 = vector.broadcast %4 : vector<1x32xf32> to vector<64x32xf32>
    %131 = arith.mulf %129, %130 : vector<64x32xf32>
    %132 = vector.broadcast %5 : vector<1x32xf32> to vector<64x32xf32>
    %133 = arith.addf %131, %132 : vector<64x32xf32>
    %134 = vector.extract_strided_slice %3 {offsets = [0, 160], sizes = [64, 32], strides = [1, 1]} : vector<64x512xf32> to vector<64x32xf32>
    %cst_42 = arith.constant dense<0.000000e+00> : vector<64xf32>
    %135 = vector.multi_reduction <add>, %134, %cst_42 [1] : vector<64x32xf32> to vector<64xf32>
    %136 = vector.shape_cast %135 : vector<64xf32> to vector<64x1xf32>
    %cst_43 = arith.constant 3.125000e-02 : f32
    %137 = vector.broadcast %cst_43 : f32 to vector<64x1xf32>
    %138 = arith.mulf %136, %137 : vector<64x1xf32>
    %139 = arith.mulf %134, %134 : vector<64x32xf32>
    %cst_44 = arith.constant dense<0.000000e+00> : vector<64xf32>
    %140 = vector.multi_reduction <add>, %139, %cst_44 [1] : vector<64x32xf32> to vector<64xf32>
    %141 = vector.shape_cast %140 : vector<64xf32> to vector<64x1xf32>
    %cst_45 = arith.constant 3.125000e-02 : f32
    %142 = vector.broadcast %cst_45 : f32 to vector<64x1xf32>
    %143 = arith.mulf %141, %142 : vector<64x1xf32>
    %144 = arith.mulf %138, %138 : vector<64x1xf32>
    %145 = arith.subf %143, %144 : vector<64x1xf32>
    %cst_46 = arith.constant 0.000000e+00 : f32
    %146 = vector.broadcast %cst_46 : f32 to vector<64x1xf32>
    %147 = arith.maximumf %145, %146 : vector<64x1xf32>
    %148 = vector.broadcast %138 : vector<64x1xf32> to vector<64x32xf32>
    %149 = arith.subf %134, %148 : vector<64x32xf32>
    %cst_47 = arith.constant 9.99999974E-6 : f32
    %150 = vector.broadcast %cst_47 : f32 to vector<64x1xf32>
    %151 = arith.addf %147, %150 : vector<64x1xf32>
    %152 = math.rsqrt %151 : vector<64x1xf32>
    %153 = vector.broadcast %152 : vector<64x1xf32> to vector<64x32xf32>
    %154 = arith.mulf %149, %153 : vector<64x32xf32>
    %155 = vector.broadcast %4 : vector<1x32xf32> to vector<64x32xf32>
    %156 = arith.mulf %154, %155 : vector<64x32xf32>
    %157 = vector.broadcast %5 : vector<1x32xf32> to vector<64x32xf32>
    %158 = arith.addf %156, %157 : vector<64x32xf32>
    %159 = vector.extract_strided_slice %3 {offsets = [0, 192], sizes = [64, 32], strides = [1, 1]} : vector<64x512xf32> to vector<64x32xf32>
    %cst_48 = arith.constant dense<0.000000e+00> : vector<64xf32>
    %160 = vector.multi_reduction <add>, %159, %cst_48 [1] : vector<64x32xf32> to vector<64xf32>
    %161 = vector.shape_cast %160 : vector<64xf32> to vector<64x1xf32>
    %cst_49 = arith.constant 3.125000e-02 : f32
    %162 = vector.broadcast %cst_49 : f32 to vector<64x1xf32>
    %163 = arith.mulf %161, %162 : vector<64x1xf32>
    %164 = arith.mulf %159, %159 : vector<64x32xf32>
    %cst_50 = arith.constant dense<0.000000e+00> : vector<64xf32>
    %165 = vector.multi_reduction <add>, %164, %cst_50 [1] : vector<64x32xf32> to vector<64xf32>
    %166 = vector.shape_cast %165 : vector<64xf32> to vector<64x1xf32>
    %cst_51 = arith.constant 3.125000e-02 : f32
    %167 = vector.broadcast %cst_51 : f32 to vector<64x1xf32>
    %168 = arith.mulf %166, %167 : vector<64x1xf32>
    %169 = arith.mulf %163, %163 : vector<64x1xf32>
    %170 = arith.subf %168, %169 : vector<64x1xf32>
    %cst_52 = arith.constant 0.000000e+00 : f32
    %171 = vector.broadcast %cst_52 : f32 to vector<64x1xf32>
    %172 = arith.maximumf %170, %171 : vector<64x1xf32>
    %173 = vector.broadcast %163 : vector<64x1xf32> to vector<64x32xf32>
    %174 = arith.subf %159, %173 : vector<64x32xf32>
    %cst_53 = arith.constant 9.99999974E-6 : f32
    %175 = vector.broadcast %cst_53 : f32 to vector<64x1xf32>
    %176 = arith.addf %172, %175 : vector<64x1xf32>
    %177 = math.rsqrt %176 : vector<64x1xf32>
    %178 = vector.broadcast %177 : vector<64x1xf32> to vector<64x32xf32>
    %179 = arith.mulf %174, %178 : vector<64x32xf32>
    %180 = vector.broadcast %4 : vector<1x32xf32> to vector<64x32xf32>
    %181 = arith.mulf %179, %180 : vector<64x32xf32>
    %182 = vector.broadcast %5 : vector<1x32xf32> to vector<64x32xf32>
    %183 = arith.addf %181, %182 : vector<64x32xf32>
    %184 = vector.extract_strided_slice %3 {offsets = [0, 224], sizes = [64, 32], strides = [1, 1]} : vector<64x512xf32> to vector<64x32xf32>
    %cst_54 = arith.constant dense<0.000000e+00> : vector<64xf32>
    %185 = vector.multi_reduction <add>, %184, %cst_54 [1] : vector<64x32xf32> to vector<64xf32>
    %186 = vector.shape_cast %185 : vector<64xf32> to vector<64x1xf32>
    %cst_55 = arith.constant 3.125000e-02 : f32
    %187 = vector.broadcast %cst_55 : f32 to vector<64x1xf32>
    %188 = arith.mulf %186, %187 : vector<64x1xf32>
    %189 = arith.mulf %184, %184 : vector<64x32xf32>
    %cst_56 = arith.constant dense<0.000000e+00> : vector<64xf32>
    %190 = vector.multi_reduction <add>, %189, %cst_56 [1] : vector<64x32xf32> to vector<64xf32>
    %191 = vector.shape_cast %190 : vector<64xf32> to vector<64x1xf32>
    %cst_57 = arith.constant 3.125000e-02 : f32
    %192 = vector.broadcast %cst_57 : f32 to vector<64x1xf32>
    %193 = arith.mulf %191, %192 : vector<64x1xf32>
    %194 = arith.mulf %188, %188 : vector<64x1xf32>
    %195 = arith.subf %193, %194 : vector<64x1xf32>
    %cst_58 = arith.constant 0.000000e+00 : f32
    %196 = vector.broadcast %cst_58 : f32 to vector<64x1xf32>
    %197 = arith.maximumf %195, %196 : vector<64x1xf32>
    %198 = vector.broadcast %188 : vector<64x1xf32> to vector<64x32xf32>
    %199 = arith.subf %184, %198 : vector<64x32xf32>
    %cst_59 = arith.constant 9.99999974E-6 : f32
    %200 = vector.broadcast %cst_59 : f32 to vector<64x1xf32>
    %201 = arith.addf %197, %200 : vector<64x1xf32>
    %202 = math.rsqrt %201 : vector<64x1xf32>
    %203 = vector.broadcast %202 : vector<64x1xf32> to vector<64x32xf32>
    %204 = arith.mulf %199, %203 : vector<64x32xf32>
    %205 = vector.broadcast %4 : vector<1x32xf32> to vector<64x32xf32>
    %206 = arith.mulf %204, %205 : vector<64x32xf32>
    %207 = vector.broadcast %5 : vector<1x32xf32> to vector<64x32xf32>
    %208 = arith.addf %206, %207 : vector<64x32xf32>
    %209 = tpu.concatenate %133, %158, %183, %208 in 1 : vector<64x32xf32>, vector<64x32xf32>, vector<64x32xf32>, vector<64x32xf32> -> vector<64x128xf32>
    %210 = vector.shape_cast %209 : vector<64x128xf32> to vector<8x1x8x128xf32>
    %c0_60 = arith.constant 0 : index
    %c1 = arith.constant 1 : index
    %c0_61 = arith.constant 0 : index
    %c0_62 = arith.constant 0 : index
    %211 = vector.load %arg5[%c0_60, %c1, %c0_61, %c0_62] : memref<8x4x8x128xf32, #tpu.memory_space<vmem>>, vector<8x1x8x128xf32>
    tpu.vector_store %arg5[%c0_60, %c1, %c0_61, %c0_62], %210 {strides = array<i32>} : memref<8x4x8x128xf32, #tpu.memory_space<vmem>>, vector<8x1x8x128xf32>,
    %212 = vector.extract_strided_slice %3 {offsets = [0, 256], sizes = [64, 32], strides = [1, 1]} : vector<64x512xf32> to vector<64x32xf32>
    %cst_63 = arith.constant dense<0.000000e+00> : vector<64xf32>
    %213 = vector.multi_reduction <add>, %212, %cst_63 [1] : vector<64x32xf32> to vector<64xf32>
    %214 = vector.shape_cast %213 : vector<64xf32> to vector<64x1xf32>
    %cst_64 = arith.constant 3.125000e-02 : f32
    %215 = vector.broadcast %cst_64 : f32 to vector<64x1xf32>
    %216 = arith.mulf %214, %215 : vector<64x1xf32>
    %217 = arith.mulf %212, %212 : vector<64x32xf32>
    %cst_65 = arith.constant dense<0.000000e+00> : vector<64xf32>
    %218 = vector.multi_reduction <add>, %217, %cst_65 [1] : vector<64x32xf32> to vector<64xf32>
    %219 = vector.shape_cast %218 : vector<64xf32> to vector<64x1xf32>
    %cst_66 = arith.constant 3.125000e-02 : f32
    %220 = vector.broadcast %cst_66 : f32 to vector<64x1xf32>
    %221 = arith.mulf %219, %220 : vector<64x1xf32>
    %222 = arith.mulf %216, %216 : vector<64x1xf32>
    %223 = arith.subf %221, %222 : vector<64x1xf32>
    %cst_67 = arith.constant 0.000000e+00 : f32
    %224 = vector.broadcast %cst_67 : f32 to vector<64x1xf32>
    %225 = arith.maximumf %223, %224 : vector<64x1xf32>
    %226 = vector.broadcast %216 : vector<64x1xf32> to vector<64x32xf32>
    %227 = arith.subf %212, %226 : vector<64x32xf32>
    %cst_68 = arith.constant 9.99999974E-6 : f32
    %228 = vector.broadcast %cst_68 : f32 to vector<64x1xf32>
    %229 = arith.addf %225, %228 : vector<64x1xf32>
    %230 = math.rsqrt %229 : vector<64x1xf32>
    %231 = vector.broadcast %230 : vector<64x1xf32> to vector<64x32xf32>
    %232 = arith.mulf %227, %231 : vector<64x32xf32>
    %233 = vector.broadcast %4 : vector<1x32xf32> to vector<64x32xf32>
    %234 = arith.mulf %232, %233 : vector<64x32xf32>
    %235 = vector.broadcast %5 : vector<1x32xf32> to vector<64x32xf32>
    %236 = arith.addf %234, %235 : vector<64x32xf32>
    %237 = vector.extract_strided_slice %3 {offsets = [0, 288], sizes = [64, 32], strides = [1, 1]} : vector<64x512xf32> to vector<64x32xf32>
    %cst_69 = arith.constant dense<0.000000e+00> : vector<64xf32>
    %238 = vector.multi_reduction <add>, %237, %cst_69 [1] : vector<64x32xf32> to vector<64xf32>
    %239 = vector.shape_cast %238 : vector<64xf32> to vector<64x1xf32>
    %cst_70 = arith.constant 3.125000e-02 : f32
    %240 = vector.broadcast %cst_70 : f32 to vector<64x1xf32>
    %241 = arith.mulf %239, %240 : vector<64x1xf32>
    %242 = arith.mulf %237, %237 : vector<64x32xf32>
    %cst_71 = arith.constant dense<0.000000e+00> : vector<64xf32>
    %243 = vector.multi_reduction <add>, %242, %cst_71 [1] : vector<64x32xf32> to vector<64xf32>
    %244 = vector.shape_cast %243 : vector<64xf32> to vector<64x1xf32>
    %cst_72 = arith.constant 3.125000e-02 : f32
    %245 = vector.broadcast %cst_72 : f32 to vector<64x1xf32>
    %246 = arith.mulf %244, %245 : vector<64x1xf32>
    %247 = arith.mulf %241, %241 : vector<64x1xf32>
    %248 = arith.subf %246, %247 : vector<64x1xf32>
    %cst_73 = arith.constant 0.000000e+00 : f32
    %249 = vector.broadcast %cst_73 : f32 to vector<64x1xf32>
    %250 = arith.maximumf %248, %249 : vector<64x1xf32>
    %251 = vector.broadcast %241 : vector<64x1xf32> to vector<64x32xf32>
    %252 = arith.subf %237, %251 : vector<64x32xf32>
    %cst_74 = arith.constant 9.99999974E-6 : f32
    %253 = vector.broadcast %cst_74 : f32 to vector<64x1xf32>
    %254 = arith.addf %250, %253 : vector<64x1xf32>
    %255 = math.rsqrt %254 : vector<64x1xf32>
    %256 = vector.broadcast %255 : vector<64x1xf32> to vector<64x32xf32>
    %257 = arith.mulf %252, %256 : vector<64x32xf32>
    %258 = vector.broadcast %4 : vector<1x32xf32> to vector<64x32xf32>
    %259 = arith.mulf %257, %258 : vector<64x32xf32>
    %260 = vector.broadcast %5 : vector<1x32xf32> to vector<64x32xf32>
    %261 = arith.addf %259, %260 : vector<64x32xf32>
    %262 = vector.extract_strided_slice %3 {offsets = [0, 320], sizes = [64, 32], strides = [1, 1]} : vector<64x512xf32> to vector<64x32xf32>
    %cst_75 = arith.constant dense<0.000000e+00> : vector<64xf32>
    %263 = vector.multi_reduction <add>, %262, %cst_75 [1] : vector<64x32xf32> to vector<64xf32>
    %264 = vector.shape_cast %263 : vector<64xf32> to vector<64x1xf32>
    %cst_76 = arith.constant 3.125000e-02 : f32
    %265 = vector.broadcast %cst_76 : f32 to vector<64x1xf32>
    %266 = arith.mulf %264, %265 : vector<64x1xf32>
    %267 = arith.mulf %262, %262 : vector<64x32xf32>
    %cst_77 = arith.constant dense<0.000000e+00> : vector<64xf32>
    %268 = vector.multi_reduction <add>, %267, %cst_77 [1] : vector<64x32xf32> to vector<64xf32>
    %269 = vector.shape_cast %268 : vector<64xf32> to vector<64x1xf32>
    %cst_78 = arith.constant 3.125000e-02 : f32
    %270 = vector.broadcast %cst_78 : f32 to vector<64x1xf32>
    %271 = arith.mulf %269, %270 : vector<64x1xf32>
    %272 = arith.mulf %266, %266 : vector<64x1xf32>
    %273 = arith.subf %271, %272 : vector<64x1xf32>
    %cst_79 = arith.constant 0.000000e+00 : f32
    %274 = vector.broadcast %cst_79 : f32 to vector<64x1xf32>
    %275 = arith.maximumf %273, %274 : vector<64x1xf32>
    %276 = vector.broadcast %266 : vector<64x1xf32> to vector<64x32xf32>
    %277 = arith.subf %262, %276 : vector<64x32xf32>
    %cst_80 = arith.constant 9.99999974E-6 : f32
    %278 = vector.broadcast %cst_80 : f32 to vector<64x1xf32>
    %279 = arith.addf %275, %278 : vector<64x1xf32>
    %280 = math.rsqrt %279 : vector<64x1xf32>
    %281 = vector.broadcast %280 : vector<64x1xf32> to vector<64x32xf32>
    %282 = arith.mulf %277, %281 : vector<64x32xf32>
    %283 = vector.broadcast %4 : vector<1x32xf32> to vector<64x32xf32>
    %284 = arith.mulf %282, %283 : vector<64x32xf32>
    %285 = vector.broadcast %5 : vector<1x32xf32> to vector<64x32xf32>
    %286 = arith.addf %284, %285 : vector<64x32xf32>
    %287 = vector.extract_strided_slice %3 {offsets = [0, 352], sizes = [64, 32], strides = [1, 1]} : vector<64x512xf32> to vector<64x32xf32>
    %cst_81 = arith.constant dense<0.000000e+00> : vector<64xf32>
    %288 = vector.multi_reduction <add>, %287, %cst_81 [1] : vector<64x32xf32> to vector<64xf32>
    %289 = vector.shape_cast %288 : vector<64xf32> to vector<64x1xf32>
    %cst_82 = arith.constant 3.125000e-02 : f32
    %290 = vector.broadcast %cst_82 : f32 to vector<64x1xf32>
    %291 = arith.mulf %289, %290 : vector<64x1xf32>
    %292 = arith.mulf %287, %287 : vector<64x32xf32>
    %cst_83 = arith.constant dense<0.000000e+00> : vector<64xf32>
    %293 = vector.multi_reduction <add>, %292, %cst_83 [1] : vector<64x32xf32> to vector<64xf32>
    %294 = vector.shape_cast %293 : vector<64xf32> to vector<64x1xf32>
    %cst_84 = arith.constant 3.125000e-02 : f32
    %295 = vector.broadcast %cst_84 : f32 to vector<64x1xf32>
    %296 = arith.mulf %294, %295 : vector<64x1xf32>
    %297 = arith.mulf %291, %291 : vector<64x1xf32>
    %298 = arith.subf %296, %297 : vector<64x1xf32>
    %cst_85 = arith.constant 0.000000e+00 : f32
    %299 = vector.broadcast %cst_85 : f32 to vector<64x1xf32>
    %300 = arith.maximumf %298, %299 : vector<64x1xf32>
    %301 = vector.broadcast %291 : vector<64x1xf32> to vector<64x32xf32>
    %302 = arith.subf %287, %301 : vector<64x32xf32>
    %cst_86 = arith.constant 9.99999974E-6 : f32
    %303 = vector.broadcast %cst_86 : f32 to vector<64x1xf32>
    %304 = arith.addf %300, %303 : vector<64x1xf32>
    %305 = math.rsqrt %304 : vector<64x1xf32>
    %306 = vector.broadcast %305 : vector<64x1xf32> to vector<64x32xf32>
    %307 = arith.mulf %302, %306 : vector<64x32xf32>
    %308 = vector.broadcast %4 : vector<1x32xf32> to vector<64x32xf32>
    %309 = arith.mulf %307, %308 : vector<64x32xf32>
    %310 = vector.broadcast %5 : vector<1x32xf32> to vector<64x32xf32>
    %311 = arith.addf %309, %310 : vector<64x32xf32>
    %312 = tpu.concatenate %236, %261, %286, %311 in 1 : vector<64x32xf32>, vector<64x32xf32>, vector<64x32xf32>, vector<64x32xf32> -> vector<64x128xf32>
    %313 = vector.shape_cast %312 : vector<64x128xf32> to vector<8x1x8x128xf32>
    %c0_87 = arith.constant 0 : index
    %c2 = arith.constant 2 : index
    %c0_88 = arith.constant 0 : index
    %c0_89 = arith.constant 0 : index
    %314 = vector.load %arg5[%c0_87, %c2, %c0_88, %c0_89] : memref<8x4x8x128xf32, #tpu.memory_space<vmem>>, vector<8x1x8x128xf32>
    tpu.vector_store %arg5[%c0_87, %c2, %c0_88, %c0_89], %313 {strides = array<i32>} : memref<8x4x8x128xf32, #tpu.memory_space<vmem>>, vector<8x1x8x128xf32>,
    %315 = vector.extract_strided_slice %3 {offsets = [0, 384], sizes = [64, 32], strides = [1, 1]} : vector<64x512xf32> to vector<64x32xf32>
    %cst_90 = arith.constant dense<0.000000e+00> : vector<64xf32>
    %316 = vector.multi_reduction <add>, %315, %cst_90 [1] : vector<64x32xf32> to vector<64xf32>
    %317 = vector.shape_cast %316 : vector<64xf32> to vector<64x1xf32>
    %cst_91 = arith.constant 3.125000e-02 : f32
    %318 = vector.broadcast %cst_91 : f32 to vector<64x1xf32>
    %319 = arith.mulf %317, %318 : vector<64x1xf32>
    %320 = arith.mulf %315, %315 : vector<64x32xf32>
    %cst_92 = arith.constant dense<0.000000e+00> : vector<64xf32>
    %321 = vector.multi_reduction <add>, %320, %cst_92 [1] : vector<64x32xf32> to vector<64xf32>
    %322 = vector.shape_cast %321 : vector<64xf32> to vector<64x1xf32>
    %cst_93 = arith.constant 3.125000e-02 : f32
    %323 = vector.broadcast %cst_93 : f32 to vector<64x1xf32>
    %324 = arith.mulf %322, %323 : vector<64x1xf32>
    %325 = arith.mulf %319, %319 : vector<64x1xf32>
    %326 = arith.subf %324, %325 : vector<64x1xf32>
    %cst_94 = arith.constant 0.000000e+00 : f32
    %327 = vector.broadcast %cst_94 : f32 to vector<64x1xf32>
    %328 = arith.maximumf %326, %327 : vector<64x1xf32>
    %329 = vector.broadcast %319 : vector<64x1xf32> to vector<64x32xf32>
    %330 = arith.subf %315, %329 : vector<64x32xf32>
    %cst_95 = arith.constant 9.99999974E-6 : f32
    %331 = vector.broadcast %cst_95 : f32 to vector<64x1xf32>
    %332 = arith.addf %328, %331 : vector<64x1xf32>
    %333 = math.rsqrt %332 : vector<64x1xf32>
    %334 = vector.broadcast %333 : vector<64x1xf32> to vector<64x32xf32>
    %335 = arith.mulf %330, %334 : vector<64x32xf32>
    %336 = vector.broadcast %4 : vector<1x32xf32> to vector<64x32xf32>
    %337 = arith.mulf %335, %336 : vector<64x32xf32>
    %338 = vector.broadcast %5 : vector<1x32xf32> to vector<64x32xf32>
    %339 = arith.addf %337, %338 : vector<64x32xf32>
    %340 = vector.extract_strided_slice %3 {offsets = [0, 416], sizes = [64, 32], strides = [1, 1]} : vector<64x512xf32> to vector<64x32xf32>
    %cst_96 = arith.constant dense<0.000000e+00> : vector<64xf32>
    %341 = vector.multi_reduction <add>, %340, %cst_96 [1] : vector<64x32xf32> to vector<64xf32>
    %342 = vector.shape_cast %341 : vector<64xf32> to vector<64x1xf32>
    %cst_97 = arith.constant 3.125000e-02 : f32
    %343 = vector.broadcast %cst_97 : f32 to vector<64x1xf32>
    %344 = arith.mulf %342, %343 : vector<64x1xf32>
    %345 = arith.mulf %340, %340 : vector<64x32xf32>
    %cst_98 = arith.constant dense<0.000000e+00> : vector<64xf32>
    %346 = vector.multi_reduction <add>, %345, %cst_98 [1] : vector<64x32xf32> to vector<64xf32>
    %347 = vector.shape_cast %346 : vector<64xf32> to vector<64x1xf32>
    %cst_99 = arith.constant 3.125000e-02 : f32
    %348 = vector.broadcast %cst_99 : f32 to vector<64x1xf32>
    %349 = arith.mulf %347, %348 : vector<64x1xf32>
    %350 = arith.mulf %344, %344 : vector<64x1xf32>
    %351 = arith.subf %349, %350 : vector<64x1xf32>
    %cst_100 = arith.constant 0.000000e+00 : f32
    %352 = vector.broadcast %cst_100 : f32 to vector<64x1xf32>
    %353 = arith.maximumf %351, %352 : vector<64x1xf32>
    %354 = vector.broadcast %344 : vector<64x1xf32> to vector<64x32xf32>
    %355 = arith.subf %340, %354 : vector<64x32xf32>
    %cst_101 = arith.constant 9.99999974E-6 : f32
    %356 = vector.broadcast %cst_101 : f32 to vector<64x1xf32>
    %357 = arith.addf %353, %356 : vector<64x1xf32>
    %358 = math.rsqrt %357 : vector<64x1xf32>
    %359 = vector.broadcast %358 : vector<64x1xf32> to vector<64x32xf32>
    %360 = arith.mulf %355, %359 : vector<64x32xf32>
    %361 = vector.broadcast %4 : vector<1x32xf32> to vector<64x32xf32>
    %362 = arith.mulf %360, %361 : vector<64x32xf32>
    %363 = vector.broadcast %5 : vector<1x32xf32> to vector<64x32xf32>
    %364 = arith.addf %362, %363 : vector<64x32xf32>
    %365 = vector.extract_strided_slice %3 {offsets = [0, 448], sizes = [64, 32], strides = [1, 1]} : vector<64x512xf32> to vector<64x32xf32>
    %cst_102 = arith.constant dense<0.000000e+00> : vector<64xf32>
    %366 = vector.multi_reduction <add>, %365, %cst_102 [1] : vector<64x32xf32> to vector<64xf32>
    %367 = vector.shape_cast %366 : vector<64xf32> to vector<64x1xf32>
    %cst_103 = arith.constant 3.125000e-02 : f32
    %368 = vector.broadcast %cst_103 : f32 to vector<64x1xf32>
    %369 = arith.mulf %367, %368 : vector<64x1xf32>
    %370 = arith.mulf %365, %365 : vector<64x32xf32>
    %cst_104 = arith.constant dense<0.000000e+00> : vector<64xf32>
    %371 = vector.multi_reduction <add>, %370, %cst_104 [1] : vector<64x32xf32> to vector<64xf32>
    %372 = vector.shape_cast %371 : vector<64xf32> to vector<64x1xf32>
    %cst_105 = arith.constant 3.125000e-02 : f32
    %373 = vector.broadcast %cst_105 : f32 to vector<64x1xf32>
    %374 = arith.mulf %372, %373 : vector<64x1xf32>
    %375 = arith.mulf %369, %369 : vector<64x1xf32>
    %376 = arith.subf %374, %375 : vector<64x1xf32>
    %cst_106 = arith.constant 0.000000e+00 : f32
    %377 = vector.broadcast %cst_106 : f32 to vector<64x1xf32>
    %378 = arith.maximumf %376, %377 : vector<64x1xf32>
    %379 = vector.broadcast %369 : vector<64x1xf32> to vector<64x32xf32>
    %380 = arith.subf %365, %379 : vector<64x32xf32>
    %cst_107 = arith.constant 9.99999974E-6 : f32
    %381 = vector.broadcast %cst_107 : f32 to vector<64x1xf32>
    %382 = arith.addf %378, %381 : vector<64x1xf32>
    %383 = math.rsqrt %382 : vector<64x1xf32>
    %384 = vector.broadcast %383 : vector<64x1xf32> to vector<64x32xf32>
    %385 = arith.mulf %380, %384 : vector<64x32xf32>
    %386 = vector.broadcast %4 : vector<1x32xf32> to vector<64x32xf32>
    %387 = arith.mulf %385, %386 : vector<64x32xf32>
    %388 = vector.broadcast %5 : vector<1x32xf32> to vector<64x32xf32>
    %389 = arith.addf %387, %388 : vector<64x32xf32>
    %390 = vector.extract_strided_slice %3 {offsets = [0, 480], sizes = [64, 32], strides = [1, 1]} : vector<64x512xf32> to vector<64x32xf32>
    %cst_108 = arith.constant dense<0.000000e+00> : vector<64xf32>
    %391 = vector.multi_reduction <add>, %390, %cst_108 [1] : vector<64x32xf32> to vector<64xf32>
    %392 = vector.shape_cast %391 : vector<64xf32> to vector<64x1xf32>
    %cst_109 = arith.constant 3.125000e-02 : f32
    %393 = vector.broadcast %cst_109 : f32 to vector<64x1xf32>
    %394 = arith.mulf %392, %393 : vector<64x1xf32>
    %395 = arith.mulf %390, %390 : vector<64x32xf32>
    %cst_110 = arith.constant dense<0.000000e+00> : vector<64xf32>
    %396 = vector.multi_reduction <add>, %395, %cst_110 [1] : vector<64x32xf32> to vector<64xf32>
    %397 = vector.shape_cast %396 : vector<64xf32> to vector<64x1xf32>
    %cst_111 = arith.constant 3.125000e-02 : f32
    %398 = vector.broadcast %cst_111 : f32 to vector<64x1xf32>
    %399 = arith.mulf %397, %398 : vector<64x1xf32>
    %400 = arith.mulf %394, %394 : vector<64x1xf32>
    %401 = arith.subf %399, %400 : vector<64x1xf32>
    %cst_112 = arith.constant 0.000000e+00 : f32
    %402 = vector.broadcast %cst_112 : f32 to vector<64x1xf32>
    %403 = arith.maximumf %401, %402 : vector<64x1xf32>
    %404 = vector.broadcast %394 : vector<64x1xf32> to vector<64x32xf32>
    %405 = arith.subf %390, %404 : vector<64x32xf32>
    %cst_113 = arith.constant 9.99999974E-6 : f32
    %406 = vector.broadcast %cst_113 : f32 to vector<64x1xf32>
    %407 = arith.addf %403, %406 : vector<64x1xf32>
    %408 = math.rsqrt %407 : vector<64x1xf32>
    %409 = vector.broadcast %408 : vector<64x1xf32> to vector<64x32xf32>
    %410 = arith.mulf %405, %409 : vector<64x32xf32>
    %411 = vector.broadcast %4 : vector<1x32xf32> to vector<64x32xf32>
    %412 = arith.mulf %410, %411 : vector<64x32xf32>
    %413 = vector.broadcast %5 : vector<1x32xf32> to vector<64x32xf32>
    %414 = arith.addf %412, %413 : vector<64x32xf32>
    %415 = tpu.concatenate %339, %364, %389, %414 in 1 : vector<64x32xf32>, vector<64x32xf32>, vector<64x32xf32>, vector<64x32xf32> -> vector<64x128xf32>
    %416 = vector.shape_cast %415 : vector<64x128xf32> to vector<8x1x8x128xf32>
    %c0_114 = arith.constant 0 : index
    %c3 = arith.constant 3 : index
    %c0_115 = arith.constant 0 : index
    %c0_116 = arith.constant 0 : index
    %417 = vector.load %arg5[%c0_114, %c3, %c0_115, %c0_116] : memref<8x4x8x128xf32, #tpu.memory_space<vmem>>, vector<8x1x8x128xf32>
    tpu.vector_store %arg5[%c0_114, %c3, %c0_115, %c0_116], %416 {strides = array<i32>} : memref<8x4x8x128xf32, #tpu.memory_space<vmem>>, vector<8x1x8x128xf32>,
    return
  }
  func.func @transform_0(%arg0: i32) -> (i32, i32, i32) {
    %c0_i32 = arith.constant 0 : i32
    %c0_i32_0 = arith.constant 0 : i32
    %c0_i32_1 = arith.constant 0 : i32
    return %arg0, %c0_i32, %c0_i32_0 : i32, i32, i32
  }
  func.func @transform_1(%arg0: i32) -> (i32, i32) {
    %c0_i32 = arith.constant 0 : i32
    %c0_i32_0 = arith.constant 0 : i32
    %c0_i32_1 = arith.constant 0 : i32
    return %c0_i32, %c0_i32_0 : i32, i32
  }
  func.func @transform_2(%arg0: i32) -> (i32, i32) {
    %c0_i32 = arith.constant 0 : i32
    %c0_i32_0 = arith.constant 0 : i32
    %c0_i32_1 = arith.constant 0 : i32
    return %c0_i32, %c0_i32_0 : i32, i32
  }
  func.func @transform_3(%arg0: i32) -> (i32, i32) {
    %c0_i32 = arith.constant 0 : i32
    %c0_i32_0 = arith.constant 0 : i32
    %c0_i32_1 = arith.constant 0 : i32
    return %c0_i32, %c0_i32_0 : i32, i32
  }
  func.func @transform_4(%arg0: i32) -> (i32, i32, i32, i32) {
    %c0_i32 = arith.constant 0 : i32
    %c0_i32_0 = arith.constant 0 : i32
    %c0_i32_1 = arith.constant 0 : i32
    %c0_i32_2 = arith.constant 0 : i32
    return %arg0, %c0_i32, %c0_i32_0, %c0_i32_1 : i32, i32, i32, i32
  }
}

</mosaic_0001>

<llo_original>
// kernel: tpu_custom_call.1
$region0: #{tpu_custom_call.1}
  #allocation0 [shape = 'u32[]', space=smem, size = 0x4, offset = 0x4, fixed_abs, tag = 'smem constant byte address 0x4 - core index']
  #allocation1 [shape = 'u32[144,128]{1,0:T(1,128)}', space=vmem, size = 0x12000, scoped, tag = 'internal scratch']
  %s0 = inlined_call_operand.hbm [shape: f32[16,8,32], index: 0, kind: input, shape index: {}]
  %s1 = inlined_call_operand.hbm [shape: f32[32,512], index: 1, kind: input, shape index: {}]
  %s2 = inlined_call_operand.vmem [shape: f32[1,32], index: 2, kind: input, shape index: {}]
  %s3 = inlined_call_operand.vmem [shape: f32[1,32], index: 3, kind: input, shape index: {}]
  %s4 = inlined_call_operand.hbm [shape: f32[16,4,8,128], index: 4, kind: output, shape index: {}]
  %s5 = sld [smem:[#allocation0]]
  $region57: #{tpu_custom_call.1} parent=0
    _
  %s7 = ssub.s32 1, %s5
  %s8 = scalar_select 0, %s7, %s5
  $region1: #{tpu_custom_call.1} parent=0
    #allocation2 [shape = 'u8[65536]{0}', space=vmem, size = 0x10000, scoped, tag = 'input window, operand 0']
    #allocation3 [shape = 's32[2]{0}', space=sflag, size = 0x8, scoped, tag = 'scoped memory for tpu_custom_call.1']
    #allocation4 [shape = 's32[2]{0}', space=sflag, size = 0x8, scoped, tag = 'scoped memory for tpu_custom_call.1']
    #allocation5 [shape = 'u8[65536]{0}', space=vmem, size = 0x10000, scoped, tag = 'input window, operand 1, single buffered']
    #allocation6 [shape = 's32[1]{0}', space=sflag, size = 0x4, scoped, tag = 'scoped memory for tpu_custom_call.1']
    #allocation7 [shape = 'u8[262144]{0}', space=vmem, size = 0x40000, scoped, tag = 'output window, operand 0']
    %9 = vsyncpa [#allocation3], 0
    %s10 = scalar_lea.sflag [#allocation3], 1
    %11 = vsyncpa %s10, 0
    %12 = vsyncpa [#allocation6], 0
    %13 = vsyncpa [#allocation4], 0
    %s14 = scalar_lea.sflag [#allocation4], 1
    %15 = vsyncpa %s14, 0
    loop: start=0, step=1, limit=4
    $region2: #{tpu_custom_call.1} parent=1 // loop_pre_header
      _
    $region3: #{tpu_custom_call.1} parent=1 // loop_header
      %s17 = sphi 0, %s21
      %p18 = scmp.ge.s32.totalorder %s17, 4
      %s27 = sphi 0, %s29
      %s30 = sphi 0, %s27
      %s31 = sphi 0, %s30
      %s47 = sphi 0, %s31
      %s51 = sphi 0, %s51
      %s53 = sphi 0, %s51
      %s54 = sphi 0, %s53
      %s68 = sphi 0, %s54
      %s72 = sphi 0, %s72
      %s74 = sphi 0, %s72
      %s75 = sphi 0, %s74
      %s89 = sphi 0, %s75
      %s93 = sphi 0, %s93
      %s95 = sphi 0, %s93
      %s96 = sphi 0, %s95
      %s110 = sphi 0, %s96
      %s116 = sphi 0, %s118
      %s119 = sphi 0, %s116
      %s120 = sphi 0, %s119
      %s136 = sphi 0, %s120
    $region4: #{tpu_custom_call.1} parent=1 // loop_header_branch
      %20 = sbr.rel (%p18) target = $region8
    $region5: #{tpu_custom_call.1} parent=1 // loop_body
      %s22 = ssub.s32 %s17, 1
      %s23 = ssub.s32 %s17, 2
      %s24 = sadd.s32 %s17, 1
      %s25 = ssub.s32 %s17, %s24
      %p26 = scmp.eq.s32.totalorder %s25, 0
      %s28 = sadd.s32 %s27, 1
      %s29 = scalar_select %p26, %s27, %s28
      %p32 = pneg %p26
      %p33 = scmp.eq.s32.totalorder %s17, 1
      %p34 = por %p32, %p33
      %p35 = scmp.ne.s32.totalorder %s27, %s30
      %p36 = scmp.eq.s32.totalorder %s17, 0
      %p37 = por %p35, %p36
      %p38 = scmp.ne.s32.totalorder %s27, %s30
      %p39 = scmp.eq.s32.totalorder %s22, 1
      %p40 = por %p38, %p39
      %p41 = scmp.ne.s32.totalorder %s30, %s31
      %p42 = scmp.eq.s32.totalorder %s22, 0
      %p43 = por %p41, %p42
      %p44 = scmp.ne.s32.totalorder %s30, %s31
      %p45 = scmp.eq.s32.totalorder %s23, 1
      %p46 = por %p44, %p45
      %p48 = scmp.ne.s32.totalorder %s31, %s47
      %p49 = scmp.eq.s32.totalorder %s23, 0
      %p50 = por %p48, %p49
      %s52 = sadd.s32 %s51, 1
      %p55 = scmp.eq.s32.totalorder %s17, 1
      %p56 = scmp.ne.s32.totalorder %s51, %s53
      %p57 = scmp.eq.s32.totalorder %s17, 0
      %p58 = por %p56, %p57
      %p59 = scmp.ne.s32.totalorder %s51, %s53
      %p60 = scmp.eq.s32.totalorder %s22, 1
      %p61 = por %p59, %p60
      %p62 = scmp.ne.s32.totalorder %s53, %s54
      %p63 = scmp.eq.s32.totalorder %s22, 0
      %p64 = por %p62, %p63
      %p65 = scmp.ne.s32.totalorder %s53, %s54
      %p66 = scmp.eq.s32.totalorder %s23, 1
      %p67 = por %p65, %p66
      %p69 = scmp.ne.s32.totalorder %s54, %s68
      %p70 = scmp.eq.s32.totalorder %s23, 0
      %p71 = por %p69, %p70
      %s73 = sadd.s32 %s72, 1
      %p76 = scmp.eq.s32.totalorder %s17, 1
      %p77 = scmp.ne.s32.totalorder %s72, %s74
      %p78 = scmp.eq.s32.totalorder %s17, 0
      %p79 = por %p77, %p78
      %p80 = scmp.ne.s32.totalorder %s72, %s74
      %p81 = scmp.eq.s32.totalorder %s22, 1
      %p82 = por %p80, %p81
      %p83 = scmp.ne.s32.totalorder %s74, %s75
      %p84 = scmp.eq.s32.totalorder %s22, 0
      %p85 = por %p83, %p84
      %p86 = scmp.ne.s32.totalorder %s74, %s75
      %p87 = scmp.eq.s32.totalorder %s23, 1
      %p88 = por %p86, %p87
      %p90 = scmp.ne.s32.totalorder %s75, %s89
      %p91 = scmp.eq.s32.totalorder %s23, 0
      %p92 = por %p90, %p91
      %s94 = sadd.s32 %s93, 1
      %p97 = scmp.eq.s32.totalorder %s17, 1
      %p98 = scmp.ne.s32.totalorder %s93, %s95
      %p99 = scmp.eq.s32.totalorder %s17, 0
      %p100 = por %p98, %p99
      %p101 = scmp.ne.s32.totalorder %s93, %s95
      %p102 = scmp.eq.s32.totalorder %s22, 1
      %p103 = por %p101, %p102
      %p104 = scmp.ne.s32.totalorder %s95, %s96
      %p105 = scmp.eq.s32.totalorder %s22, 0
      %p106 = por %p104, %p105
      %p107 = scmp.ne.s32.totalorder %s95, %s96
      %p108 = scmp.eq.s32.totalorder %s23, 1
      %p109 = por %p107, %p108
      %p111 = scmp.ne.s32.totalorder %s96, %s110
      %p112 = scmp.eq.s32.totalorder %s23, 0
      %p113 = por %p111, %p112
      %s114 = ssub.s32 %s17, %s24
      %p115 = scmp.eq.s32.totalorder %s114, 0
      %s117 = sadd.s32 %s116, 1
      %s118 = scalar_select %p115, %s116, %s117
      %p121 = pneg %p115
      %p122 = scmp.eq.s32.totalorder %s17, 1
      %p123 = por %p121, %p122
      %p124 = scmp.ne.s32.totalorder %s116, %s119
      %p125 = scmp.eq.s32.totalorder %s17, 0
      %p126 = por %p124, %p125
      %p127 = scmp.ne.s32.totalorder %s116, %s119
      %p128 = scmp.eq.s32.totalorder %s22, 1
      %p129 = por %p127, %p128
      %p130 = scmp.ne.s32.totalorder %s119, %s120
      %p131 = scmp.eq.s32.totalorder %s22, 0
      %p132 = por %p130, %p131
      %p133 = scmp.ne.s32.totalorder %s119, %s120
      %p134 = scmp.eq.s32.totalorder %s23, 1
      %p135 = por %p133, %p134
      %p137 = scmp.ne.s32.totalorder %s120, %s136
      %p138 = scmp.eq.s32.totalorder %s23, 0
      %p139 = por %p137, %p138
      %p140 = scmp.le.s32.totalorder 1, %s17
      %p141 = scmp.lt.s32.totalorder %s17, 3
      %p142 = pnand %p140, %p141
      %p143 = pneg %p142
      // Predicated region
      $region9: #{tpu_custom_call.1} parent=5 // pred_check
        _
      $region10: #{tpu_custom_call.1} parent=5 // pred_check_branch
        %145 = sbr.rel (%p142) target = $region12
      $region11: #{tpu_custom_call.1} parent=5 // pred_region
        %s146 = ssub.s32 %s17, 1
        // Predicated region
        $region13: #{tpu_custom_call.1} parent=11 // pred_check
          %p147 = pneg %p64
        $region14: #{tpu_custom_call.1} parent=11 // pred_check_branch
          %149 = sbr.rel (%p147) target = $region16
        $region15: #{tpu_custom_call.1} parent=11 // pred_region
          %s151 = ssub.s32 2048, 2048
          %152 = vsyncadd [#allocation6], %s151
          %s153 = sshll.u32 [#allocation5], 4
          %s154 = int_to_ptr.vmem [resolvable:$true] %s153
          %159 = dma.hbm_to_vmem [thread:$0]  %s1, 2048, %s154, [#allocation6], 512, 512, 32
        $region16: #{tpu_custom_call.1} parent=11 // pred_fallthru
          _
        // Predicated region
        $region17: #{tpu_custom_call.1} parent=11 // pred_check
          %p160 = pneg %p85
        $region18: #{tpu_custom_call.1} parent=11 // pred_check_branch
          %162 = sbr.rel (%p160) target = $region20
        $region19: #{tpu_custom_call.1} parent=11 // pred_region
          _
        $region20: #{tpu_custom_call.1} parent=11 // pred_fallthru
          _
        // Predicated region
        $region21: #{tpu_custom_call.1} parent=11 // pred_check
          %p163 = pneg %p106
        $region22: #{tpu_custom_call.1} parent=11 // pred_check_branch
          %165 = sbr.rel (%p163) target = $region24
        $region23: #{tpu_custom_call.1} parent=11 // pred_region
          _
        $region24: #{tpu_custom_call.1} parent=11 // pred_fallthru
          _
      $region12: #{tpu_custom_call.1} parent=5 // pred_fallthru
        _
      %p166 = scmp.lt.s32.totalorder %s17, 2
      // Predicated region
      $region25: #{tpu_custom_call.1} parent=5 // pred_check
        %p167 = pneg %p166
      $region26: #{tpu_custom_call.1} parent=5 // pred_check_branch
        %169 = sbr.rel (%p167) target = $region28
      $region27: #{tpu_custom_call.1} parent=5 // pred_region
        // Predicated region
        $region29: #{tpu_custom_call.1} parent=27 // pred_check
          %p170 = pneg %p37
        $region30: #{tpu_custom_call.1} parent=27 // pred_check_branch
          %172 = sbr.rel (%p170) target = $region32
        $region31: #{tpu_custom_call.1} parent=27 // pred_region
          %s173 = sand.u32 %s27, 1
          %s174 = scalar_lea.sflag [#allocation3], %s173
          %s175 = sand.u32 %s27, 1
          %s176 = smul.addr %s175, 64
          %s177 = scalar_lea.vmem [#allocation2], %s176
          %s178 = smul.u32 8, %s17
          %s180 = ssub.s32 1024, 1024
          %181 = vsyncadd %s174, %s180
          %s182 = smul.addr %s178, 128
          %s183 = scalar_lea.hbm %s0, %s182
          %s184 = sshll.u32 %s177, 4
          %s185 = int_to_ptr.vmem [resolvable:$true] %s184
          %190 = dma.hbm_to_vmem [thread:$0]  %s183, 1024, %s185, %s174, 128, 128, 8
        $region32: #{tpu_custom_call.1} parent=27 // pred_fallthru
          _
      $region28: #{tpu_custom_call.1} parent=5 // pred_fallthru
        _
      %p191 = scmp.le.s32.totalorder 1, %s17
      %p192 = scmp.lt.s32.totalorder %s17, 3
      %p193 = pnand %p191, %p192
      %p194 = pneg %p193
      // Predicated region
      $region33: #{tpu_custom_call.1} parent=5 // pred_check
        _
      $region34: #{tpu_custom_call.1} parent=5 // pred_check_branch
        %196 = sbr.rel (%p193) target = $region36
      $region35: #{tpu_custom_call.1} parent=5 // pred_region
        %s197 = ssub.s32 %s17, 1
        %s198 = sand.u32 %s30, 1
        %s199 = scalar_lea.sflag [#allocation3], %s198
        %s200 = sand.u32 %s30, 1
        %s201 = smul.addr %s200, 64
        %s202 = scalar_lea.vmem [#allocation2], %s201
        // Predicated region
        $region37: #{tpu_custom_call.1} parent=35 // pred_check
          %p203 = pneg %p43
        $region38: #{tpu_custom_call.1} parent=35 // pred_check_branch
          %205 = sbr.rel (%p203) target = $region40
        $region39: #{tpu_custom_call.1} parent=35 // pred_region
          %206 = dma.done %s199, 1024
        $region40: #{tpu_custom_call.1} parent=35 // pred_fallthru
          _
        // Predicated region
        $region41: #{tpu_custom_call.1} parent=35 // pred_check
          %p207 = pneg %p64
        $region42: #{tpu_custom_call.1} parent=35 // pred_check_branch
          %209 = sbr.rel (%p207) target = $region44
        $region43: #{tpu_custom_call.1} parent=35 // pred_region
          %210 = dma.done [#allocation6], 2048
        $region44: #{tpu_custom_call.1} parent=35 // pred_fallthru
          _
        %s211 = sand.u32 %s30, 1
        %s212 = scalar_lea.sflag [#allocation3], %s211
        %s213 = sand.u32 %s30, 1
        %s214 = smul.addr %s213, 64
        %s215 = scalar_lea.vmem [#allocation2], %s214
        %p216 = pneg %p43
        %p217 = pneg %p40
        %p218 = pneg %p64
        %p219 = pneg %p61
        %p220 = pneg %p85
        %p221 = pneg %p82
        %p222 = pneg %p106
        %p223 = pneg %p103
        %p224 = pneg %p132
        %p225 = pneg %p129
        %s226 = sand.u32 %s119, 1
        %s227 = scalar_lea.sflag [#allocation4], %s226
        %s228 = sand.u32 %s119, 1
        %s229 = smul.addr %s228, 256
        %s230 = scalar_lea.vmem [#allocation7], %s229
        %s231 = smul.u32 8, %s22
        %s232 = smul.u32 8, %s22
        %v233 = vld [vmem:[%s202] sm:$0xff]
        %v234 = vld [vmem:[%s202 + $0x8] sm:$0xff]
        %v235 = vld [vmem:[%s202 + $0x10] sm:$0xff]
        %v236 = vld [vmem:[%s202 + $0x18] sm:$0xff]
        %v237 = vld [vmem:[%s202 + $0x20] sm:$0xff]
        %v238 = vld [vmem:[%s202 + $0x28] sm:$0xff]
        %v239 = vld [vmem:[%s202 + $0x30] sm:$0xff]
        %v240 = vld [vmem:[%s202 + $0x38] sm:$0xff]
        %v241 = vld [vmem:[#allocation5] sm:$0xff]
        %v242 = vld [vmem:[#allocation5 + $0x8] sm:$0xff]
        %v243 = vld [vmem:[#allocation5 + $0x10] sm:$0xff]
        %v244 = vld [vmem:[#allocation5 + $0x18] sm:$0xff]
        %v245 = vld [vmem:[#allocation5 + $0x20] sm:$0xff]
        %v246 = vld [vmem:[#allocation5 + $0x28] sm:$0xff]
        %v247 = vld [vmem:[#allocation5 + $0x30] sm:$0xff]
        %v248 = vld [vmem:[#allocation5 + $0x38] sm:$0xff]
        %v249 = vld [vmem:[#allocation5 + $0x40] sm:$0xff]
        %v250 = vld [vmem:[#allocation5 + $0x48] sm:$0xff]
        %v251 = vld [vmem:[#allocation5 + $0x50] sm:$0xff]
        %v252 = vld [vmem:[#allocation5 + $0x58] sm:$0xff]
        %v253 = vld [vmem:[#allocation5 + $0x60] sm:$0xff]
        %v254 = vld [vmem:[#allocation5 + $0x68] sm:$0xff]
        %v255 = vld [vmem:[#allocation5 + $0x70] sm:$0xff]
        %v256 = vld [vmem:[#allocation5 + $0x78] sm:$0xff]
        %vm257 = vcmask 261120
        %v259 = vsel %vm257, %v233, 0
        %v262 = vsel %vm257, %v234, 0
        %v265 = vsel %vm257, %v235, 0
        %v268 = vsel %vm257, %v236, 0
        %v271 = vsel %vm257, %v237, 0
        %v274 = vsel %vm257, %v238, 0
        %v277 = vsel %vm257, %v239, 0
        %v280 = vsel %vm257, %v240, 0
        %282 = vmatprep.subr.mxu0 0.0
        %283 = vmatpush1.msra.mxu0 0.0
        %284 = vmatprep.subr.mxu0 0.0
        %285 = vmatpush1.msra.mxu0 0.0
        %286 = vmatprep.subr.mxu0 0.0
        %287 = vmatpush1.msra.mxu0 0.0
        %288 = vmatprep.subr.mxu0 0.0
        %289 = vmatpush1.msra.mxu0 0.0
        %290 = vmatprep.subr.mxu0 0.0
        %291 = vmatpush1.msra.mxu0 0.0
        %292 = vmatprep.subr.mxu0 0.0
        %293 = vmatpush1.msra.mxu0 0.0
        %294 = vmatprep.subr.mxu0 0.0
        %295 = vmatpush1.msra.mxu0 0.0
        %296 = vmatprep.subr.mxu0 0.0
        %297 = vmatpush1.msra.mxu0 0.0
        %298 = vmatprep.subr.mxu0 0.0
        %299 = vmatpush1.msra.mxu0 0.0
        %300 = vmatprep.subr.mxu0 0.0
        %301 = vmatpush1.msra.mxu0 0.0
        %302 = vmatprep.subr.mxu0 0.0
        %303 = vmatpush1.msra.mxu0 0.0
        %304 = vmatprep.subr.mxu0 0.0
        %305 = vmatpush1.msra.mxu0 0.0
        %306 = vmatprep.subr.mxu0 %v254
        %307 = vmatpush1.msra.mxu0 %v253
        %308 = vmatprep.subr.mxu0 %v250
        %309 = vmatpush1.msra.mxu0 %v249
        %310 = vmatprep.subr.mxu0 %v246
        %311 = vmatpush1.msra.mxu0 %v245
        %312 = vmatprep.subr.mxu0 %v242
        %313 = vmatpush1.msra.mxu0 %v241
        %314 = vmatprep.subr.mxu0 0.0
        %315 = vmatpush2.msra.mxu0 0.0
        %316 = vmatprep.subr.mxu0 0.0
        %317 = vmatpush2.msra.mxu0 0.0
        %318 = vmatprep.subr.mxu0 0.0
        %319 = vmatpush2.msra.mxu0 0.0
        %320 = vmatprep.subr.mxu0 0.0
        %321 = vmatpush2.msra.mxu0 0.0
        %322 = vmatprep.subr.mxu0 0.0
        %323 = vmatpush2.msra.mxu0 0.0
        %324 = vmatprep.subr.mxu0 0.0
        %325 = vmatpush2.msra.mxu0 0.0
        %326 = vmatprep.subr.mxu0 0.0
        %327 = vmatpush2.msra.mxu0 0.0
        %328 = vmatprep.subr.mxu0 0.0
        %329 = vmatpush2.msra.mxu0 0.0
        %330 = vmatprep.subr.mxu0 0.0
        %331 = vmatpush2.msra.mxu0 0.0
        %332 = vmatprep.subr.mxu0 0.0
        %333 = vmatpush2.msra.mxu0 0.0
        %334 = vmatprep.subr.mxu0 0.0
        %335 = vmatpush2.msra.mxu0 0.0
        %336 = vmatprep.subr.mxu0 0.0
        %337 = vmatpush2.msra.mxu0 0.0
        %338 = vmatprep.subr.mxu0 0.0
        %339 = vmatpush2.msra.mxu0 0.0
        %340 = vmatprep.subr.mxu0 0.0
        %341 = vmatpush2.msra.mxu0 0.0
        %342 = vmatprep.subr.mxu0 0.0
        %343 = vmatpush2.msra.mxu0 0.0
        %344 = vmatprep.subr.mxu0 0.0
        %345 = vmatpush2.msra.mxu0 0.0
        %346 = vmatprep.mubr.f32.mxu0 0.0
        %347 = vmatmul.mubr.f32.gmra.mxu0 %v259
        %v348 = vpop.f32.mrf.mxu0
        %v349 = vadd.f32 0.0, %v348
        %v350 = vpop.f32.mrf.mxu0
        %v351 = vadd.f32 0.0, %v350
        %352 = vmatprep.mubr.f32.mxu0 0.0
        %353 = vmatmul.mubr.f32.gmra.mxu0 %v262
        %v354 = vpop.f32.mrf.mxu0
        %v355 = vadd.f32 0.0, %v354
        %v356 = vpop.f32.mrf.mxu0
        %v357 = vadd.f32 0.0, %v356
        %358 = vmatprep.mubr.f32.mxu0 0.0
        %359 = vmatmul.mubr.f32.gmra.mxu0 %v265
        %v360 = vpop.f32.mrf.mxu0
        %v361 = vadd.f32 0.0, %v360
        %v362 = vpop.f32.mrf.mxu0
        %v363 = vadd.f32 0.0, %v362
        %364 = vmatprep.mubr.f32.mxu0 0.0
        %365 = vmatmul.mubr.f32.gmra.mxu0 %v268
        %v366 = vpop.f32.mrf.mxu0
        %v367 = vadd.f32 0.0, %v366
        %v368 = vpop.f32.mrf.mxu0
        %v369 = vadd.f32 0.0, %v368
        %370 = vmatprep.mubr.f32.mxu0 0.0
        %371 = vmatmul.mubr.f32.gmra.mxu0 %v271
        %v372 = vpop.f32.mrf.mxu0
        %v373 = vadd.f32 0.0, %v372
        %v374 = vpop.f32.mrf.mxu0
        %v375 = vadd.f32 0.0, %v374
        %376 = vmatprep.mubr.f32.mxu0 0.0
        %377 = vmatmul.mubr.f32.gmra.mxu0 %v274
        %v378 = vpop.f32.mrf.mxu0
        %v379 = vadd.f32 0.0, %v378
        %v380 = vpop.f32.mrf.mxu0
        %v381 = vadd.f32 0.0, %v380
        %382 = vmatprep.mubr.f32.mxu0 0.0
        %383 = vmatmul.mubr.f32.gmra.mxu0 %v277
        %v384 = vpop.f32.mrf.mxu0
        %v385 = vadd.f32 0.0, %v384
        %v386 = vpop.f32.mrf.mxu0
        %v387 = vadd.f32 0.0, %v386
        %388 = vmatprep.mubr.f32.mxu0 0.0
        %389 = vmatmul.mubr.f32.gmra.mxu0 %v280
        %v390 = vpop.f32.mrf.mxu0
        %v391 = vadd.f32 0.0, %v390
        %v392 = vpop.f32.mrf.mxu0
        %v393 = vadd.f32 0.0, %v392
        %394 = vdwg.mxu0
        %395 = vmatprep.subr.mxu0 0.0
        %396 = vmatpush1.msra.mxu0 0.0
        %397 = vmatprep.subr.mxu0 0.0
        %398 = vmatpush1.msra.mxu0 0.0
        %399 = vmatprep.subr.mxu0 0.0
        %400 = vmatpush1.msra.mxu0 0.0
        %401 = vmatprep.subr.mxu0 0.0
        %402 = vmatpush1.msra.mxu0 0.0
        %403 = vmatprep.subr.mxu0 0.0
        %404 = vmatpush1.msra.mxu0 0.0
        %405 = vmatprep.subr.mxu0 0.0
        %406 = vmatpush1.msra.mxu0 0.0
        %407 = vmatprep.subr.mxu0 0.0
        %408 = vmatpush1.msra.mxu0 0.0
        %409 = vmatprep.subr.mxu0 0.0
        %410 = vmatpush1.msra.mxu0 0.0
        %411 = vmatprep.subr.mxu0 0.0
        %412 = vmatpush1.msra.mxu0 0.0
        %413 = vmatprep.subr.mxu0 0.0
        %414 = vmatpush1.msra.mxu0 0.0
        %415 = vmatprep.subr.mxu0 0.0
        %416 = vmatpush1.msra.mxu0 0.0
        %417 = vmatprep.subr.mxu0 0.0
        %418 = vmatpush1.msra.mxu0 0.0
        %419 = vmatprep.subr.mxu0 %v256
        %420 = vmatpush1.msra.mxu0 %v255
        %421 = vmatprep.subr.mxu0 %v252
        %422 = vmatpush1.msra.mxu0 %v251
        %423 = vmatprep.subr.mxu0 %v248
        %424 = vmatpush1.msra.mxu0 %v247
        %425 = vmatprep.subr.mxu0 %v244
        %426 = vmatpush1.msra.mxu0 %v243
        %427 = vmatprep.subr.mxu0 0.0
        %428 = vmatpush2.msra.mxu0 0.0
        %429 = vmatprep.subr.mxu0 0.0
        %430 = vmatpush2.msra.mxu0 0.0
        %431 = vmatprep.subr.mxu0 0.0
        %432 = vmatpush2.msra.mxu0 0.0
        %433 = vmatprep.subr.mxu0 0.0
        %434 = vmatpush2.msra.mxu0 0.0
        %435 = vmatprep.subr.mxu0 0.0
        %436 = vmatpush2.msra.mxu0 0.0
        %437 = vmatprep.subr.mxu0 0.0
        %438 = vmatpush2.msra.mxu0 0.0
        %439 = vmatprep.subr.mxu0 0.0
        %440 = vmatpush2.msra.mxu0 0.0
        %441 = vmatprep.subr.mxu0 0.0
        %442 = vmatpush2.msra.mxu0 0.0
        %443 = vmatprep.subr.mxu0 0.0
        %444 = vmatpush2.msra.mxu0 0.0
        %445 = vmatprep.subr.mxu0 0.0
        %446 = vmatpush2.msra.mxu0 0.0
        %447 = vmatprep.subr.mxu0 0.0
        %448 = vmatpush2.msra.mxu0 0.0
        %449 = vmatprep.subr.mxu0 0.0
        %450 = vmatpush2.msra.mxu0 0.0
        %451 = vmatprep.subr.mxu0 0.0
        %452 = vmatpush2.msra.mxu0 0.0
        %453 = vmatprep.subr.mxu0 0.0
        %454 = vmatpush2.msra.mxu0 0.0
        %455 = vmatprep.subr.mxu0 0.0
        %456 = vmatpush2.msra.mxu0 0.0
        %457 = vmatprep.subr.mxu0 0.0
        %458 = vmatpush2.msra.mxu0 0.0
        %459 = vmatprep.mubr.f32.mxu0 0.0
        %460 = vmatmul.mubr.f32.gmra.mxu0 %v259
        %v461 = vpop.f32.mrf.mxu0
        %v462 = vadd.f32 0.0, %v461
        %v463 = vpop.f32.mrf.mxu0
        %v464 = vadd.f32 0.0, %v463
        %465 = vmatprep.mubr.f32.mxu0 0.0
        %466 = vmatmul.mubr.f32.gmra.mxu0 %v262
        %v467 = vpop.f32.mrf.mxu0
        %v468 = vadd.f32 0.0, %v467
        %v469 = vpop.f32.mrf.mxu0
        %v470 = vadd.f32 0.0, %v469
        %471 = vmatprep.mubr.f32.mxu0 0.0
        %472 = vmatmul.mubr.f32.gmra.mxu0 %v265
        %v473 = vpop.f32.mrf.mxu0
        %v474 = vadd.f32 0.0, %v473
        %v475 = vpop.f32.mrf.mxu0
        %v476 = vadd.f32 0.0, %v475
        %477 = vmatprep.mubr.f32.mxu0 0.0
        %478 = vmatmul.mubr.f32.gmra.mxu0 %v268
        %v479 = vpop.f32.mrf.mxu0
        %v480 = vadd.f32 0.0, %v479
        %v481 = vpop.f32.mrf.mxu0
        %v482 = vadd.f32 0.0, %v481
        %483 = vmatprep.mubr.f32.mxu0 0.0
        %484 = vmatmul.mubr.f32.gmra.mxu0 %v271
        %v485 = vpop.f32.mrf.mxu0
        %v486 = vadd.f32 0.0, %v485
        %v487 = vpop.f32.mrf.mxu0
        %v488 = vadd.f32 0.0, %v487
        %489 = vmatprep.mubr.f32.mxu0 0.0
        %490 = vmatmul.mubr.f32.gmra.mxu0 %v274
        %v491 = vpop.f32.mrf.mxu0
        %v492 = vadd.f32 0.0, %v491
        %v493 = vpop.f32.mrf.mxu0
        %v494 = vadd.f32 0.0, %v493
        %495 = vmatprep.mubr.f32.mxu0 0.0
        %496 = vmatmul.mubr.f32.gmra.mxu0 %v277
        %v497 = vpop.f32.mrf.mxu0
        %v498 = vadd.f32 0.0, %v497
        %v499 = vpop.f32.mrf.mxu0
        %v500 = vadd.f32 0.0, %v499
        %501 = vmatprep.mubr.f32.mxu0 0.0
        %502 = vmatmul.mubr.f32.gmra.mxu0 %v280
        %v503 = vpop.f32.mrf.mxu0
        %v504 = vadd.f32 0.0, %v503
        %v505 = vpop.f32.mrf.mxu0
        %v506 = vadd.f32 0.0, %v505
        %507 = vdwg.mxu0
        %v508 = vld [vmem:[%s2] sm:$0x1]
        %v509 = vld [vmem:[%s3] sm:$0x1]
        %v510 = vsel %vm257, %v349, 0.0
        %511 = vadd.xlane.f32.xlu0 %v510
        %v512 = vpop.xlane.xlu0 %511
        %v513 = vsel %vm257, %v355, 0.0
        %514 = vadd.xlane.f32.xlu0 %v513
        %v515 = vpop.xlane.xlu0 %514
        %v516 = vsel %vm257, %v361, 0.0
        %517 = vadd.xlane.f32.xlu0 %v516
        %v518 = vpop.xlane.xlu0 %517
        %v519 = vsel %vm257, %v367, 0.0
        %520 = vadd.xlane.f32.xlu0 %v519
        %v521 = vpop.xlane.xlu0 %520
        %v522 = vsel %vm257, %v373, 0.0
        %523 = vadd.xlane.f32.xlu0 %v522
        %v524 = vpop.xlane.xlu0 %523
        %v525 = vsel %vm257, %v379, 0.0
        %526 = vadd.xlane.f32.xlu0 %v525
        %v527 = vpop.xlane.xlu0 %526
        %v528 = vsel %vm257, %v385, 0.0
        %529 = vadd.xlane.f32.xlu0 %v528
        %v530 = vpop.xlane.xlu0 %529
        %v531 = vsel %vm257, %v391, 0.0
        %532 = vadd.xlane.f32.xlu0 %v531
        %v533 = vpop.xlane.xlu0 %532
        %v534 = vmul.f32 %v512, 0.03125
        %v535 = vmul.f32 %v515, 0.03125
        %v536 = vmul.f32 %v518, 0.03125
        %v537 = vmul.f32 %v521, 0.03125
        %v538 = vmul.f32 %v524, 0.03125
        %v539 = vmul.f32 %v527, 0.03125
        %v540 = vmul.f32 %v530, 0.03125
        %v541 = vmul.f32 %v533, 0.03125
        %v542 = vmul.f32 %v349, %v349
        %v543 = vmul.f32 %v355, %v355
        %v544 = vmul.f32 %v361, %v361
        %v545 = vmul.f32 %v367, %v367
        %v546 = vmul.f32 %v373, %v373
        %v547 = vmul.f32 %v379, %v379
        %v548 = vmul.f32 %v385, %v385
        %v549 = vmul.f32 %v391, %v391
        %v550 = vsel %vm257, %v542, 0.0
        %551 = vadd.xlane.f32.xlu0 %v550
        %v552 = vpop.xlane.xlu0 %551
        %v553 = vsel %vm257, %v543, 0.0
        %554 = vadd.xlane.f32.xlu0 %v553
        %v555 = vpop.xlane.xlu0 %554
        %v556 = vsel %vm257, %v544, 0.0
        %557 = vadd.xlane.f32.xlu0 %v556
        %v558 = vpop.xlane.xlu0 %557
        %v559 = vsel %vm257, %v545, 0.0
        %560 = vadd.xlane.f32.xlu0 %v559
        %v561 = vpop.xlane.xlu0 %560
        %v562 = vsel %vm257, %v546, 0.0
        %563 = vadd.xlane.f32.xlu0 %v562
        %v564 = vpop.xlane.xlu0 %563
        %v565 = vsel %vm257, %v547, 0.0
        %566 = vadd.xlane.f32.xlu0 %v565
        %v567 = vpop.xlane.xlu0 %566
        %v568 = vsel %vm257, %v548, 0.0
        %569 = vadd.xlane.f32.xlu0 %v568
        %v570 = vpop.xlane.xlu0 %569
        %v571 = vsel %vm257, %v549, 0.0
        %572 = vadd.xlane.f32.xlu0 %v571
        %v573 = vpop.xlane.xlu0 %572
        %v574 = vmul.f32 %v552, 0.03125
        %v575 = vmul.f32 %v555, 0.03125
        %v576 = vmul.f32 %v558, 0.03125
        %v577 = vmul.f32 %v561, 0.03125
        %v578 = vmul.f32 %v564, 0.03125
        %v579 = vmul.f32 %v567, 0.03125
        %v580 = vmul.f32 %v570, 0.03125
        %v581 = vmul.f32 %v573, 0.03125
        %v582 = vmul.f32 %v534, %v534
        %v583 = vmul.f32 %v535, %v535
        %v584 = vmul.f32 %v536, %v536
        %v585 = vmul.f32 %v537, %v537
        %v586 = vmul.f32 %v538, %v538
        %v587 = vmul.f32 %v539, %v539
        %v588 = vmul.f32 %v540, %v540
        %v589 = vmul.f32 %v541, %v541
        %v590 = vsub.f32 %v574, %v582
        %v591 = vsub.f32 %v575, %v583
        %v592 = vsub.f32 %v576, %v584
        %v593 = vsub.f32 %v577, %v585
        %v594 = vsub.f32 %v578, %v586
        %v595 = vsub.f32 %v579, %v587
        %v596 = vsub.f32 %v580, %v588
        %v597 = vsub.f32 %v581, %v589
        %v598 = vmax.f32 %v590, 0.0
        %v599 = vmax.f32 %v591, 0.0
        %v600 = vmax.f32 %v592, 0.0
        %v601 = vmax.f32 %v593, 0.0
        %v602 = vmax.f32 %v594, 0.0
        %v603 = vmax.f32 %v595, 0.0
        %v604 = vmax.f32 %v596, 0.0
        %v605 = vmax.f32 %v597, 0.0
        %v606 = vsub.f32 %v349, %v534
        %v607 = vsub.f32 %v355, %v535
        %v608 = vsub.f32 %v361, %v536
        %v609 = vsub.f32 %v367, %v537
        %v610 = vsub.f32 %v373, %v538
        %v611 = vsub.f32 %v379, %v539
        %v612 = vsub.f32 %v385, %v540
        %v613 = vsub.f32 %v391, %v541
        %v614 = vadd.f32 %v598, 1e-05
        %v615 = vadd.f32 %v599, 1e-05
        %v616 = vadd.f32 %v600, 1e-05
        %v617 = vadd.f32 %v601, 1e-05
        %v618 = vadd.f32 %v602, 1e-05
        %v619 = vadd.f32 %v603, 1e-05
        %v620 = vadd.f32 %v604, 1e-05
        %v621 = vadd.f32 %v605, 1e-05
        %v622 = vrsqrt.pop %v614
        %v623 = vrsqrt.pop %v615
        %v624 = vrsqrt.pop %v616
        %v625 = vrsqrt.pop %v617
        %v626 = vrsqrt.pop %v618
        %v627 = vrsqrt.pop %v619
        %v628 = vrsqrt.pop %v620
        %v629 = vrsqrt.pop %v621
        %v630 = vmul.f32 %v606, %v622
        %v631 = vmul.f32 %v607, %v623
        %v632 = vmul.f32 %v608, %v624
        %v633 = vmul.f32 %v609, %v625
        %v634 = vmul.f32 %v610, %v626
        %v635 = vmul.f32 %v611, %v627
        %v636 = vmul.f32 %v612, %v628
        %v637 = vmul.f32 %v613, %v629
        %v639 = vlaneseq
        %v640 = vshrl.u32 %v639, 7
        %v641 = vsub.s32 0, %v640
        %v642 = vrot.slane %v508, %v641
        %v644 = vmul.f32 %v630, %v642
        %v645 = vmul.f32 %v631, %v642
        %v646 = vmul.f32 %v632, %v642
        %v647 = vmul.f32 %v633, %v642
        %v648 = vmul.f32 %v634, %v642
        %v649 = vmul.f32 %v635, %v642
        %v650 = vmul.f32 %v636, %v642
        %v651 = vmul.f32 %v637, %v642
        %v653 = vlaneseq
        %v654 = vshrl.u32 %v653, 7
        %v655 = vsub.s32 0, %v654
        %v656 = vrot.slane %v509, %v655
        %v658 = vadd.f32 %v644, %v656
        %v659 = vadd.f32 %v645, %v656
        %v660 = vadd.f32 %v646, %v656
        %v661 = vadd.f32 %v647, %v656
        %v662 = vadd.f32 %v648, %v656
        %v663 = vadd.f32 %v649, %v656
        %v664 = vadd.f32 %v650, %v656
        %v665 = vadd.f32 %v651, %v656
        %674 = vrot.lane.b32.xlu0 %v349, 96
        %v675 = vpop.permute.xlu0 %674
        %676 = vrot.lane.b32.xlu0 %v355, 96
        %v677 = vpop.permute.xlu0 %676
        %678 = vrot.lane.b32.xlu0 %v361, 96
        %v679 = vpop.permute.xlu0 %678
        %680 = vrot.lane.b32.xlu0 %v367, 96
        %v681 = vpop.permute.xlu0 %680
        %682 = vrot.lane.b32.xlu0 %v373, 96
        %v683 = vpop.permute.xlu0 %682
        %684 = vrot.lane.b32.xlu0 %v379, 96
        %v685 = vpop.permute.xlu0 %684
        %686 = vrot.lane.b32.xlu0 %v385, 96
        %v687 = vpop.permute.xlu0 %686
        %688 = vrot.lane.b32.xlu0 %v391, 96
        %v689 = vpop.permute.xlu0 %688
        %v698 = vsel %vm257, %v675, 0.0
        %699 = vadd.xlane.f32.xlu0 %v698
        %v700 = vpop.xlane.xlu0 %699
        %v701 = vsel %vm257, %v677, 0.0
        %702 = vadd.xlane.f32.xlu0 %v701
        %v703 = vpop.xlane.xlu0 %702
        %v704 = vsel %vm257, %v679, 0.0
        %705 = vadd.xlane.f32.xlu0 %v704
        %v706 = vpop.xlane.xlu0 %705
        %v707 = vsel %vm257, %v681, 0.0
        %708 = vadd.xlane.f32.xlu0 %v707
        %v709 = vpop.xlane.xlu0 %708
        %v710 = vsel %vm257, %v683, 0.0
        %711 = vadd.xlane.f32.xlu0 %v710
        %v712 = vpop.xlane.xlu0 %711
        %v713 = vsel %vm257, %v685, 0.0
        %714 = vadd.xlane.f32.xlu0 %v713
        %v715 = vpop.xlane.xlu0 %714
        %v716 = vsel %vm257, %v687, 0.0
        %717 = vadd.xlane.f32.xlu0 %v716
        %v718 = vpop.xlane.xlu0 %717
        %v719 = vsel %vm257, %v689, 0.0
        %720 = vadd.xlane.f32.xlu0 %v719
        %v721 = vpop.xlane.xlu0 %720
        %v722 = vmul.f32 %v700, 0.03125
        %v723 = vmul.f32 %v703, 0.03125
        %v724 = vmul.f32 %v706, 0.03125
        %v725 = vmul.f32 %v709, 0.03125
        %v726 = vmul.f32 %v712, 0.03125
        %v727 = vmul.f32 %v715, 0.03125
        %v728 = vmul.f32 %v718, 0.03125
        %v729 = vmul.f32 %v721, 0.03125
        %738 = vrot.lane.b32.xlu0 %v542, 96
        %v739 = vpop.permute.xlu0 %738
        %740 = vrot.lane.b32.xlu0 %v543, 96
        %v741 = vpop.permute.xlu0 %740
        %742 = vrot.lane.b32.xlu0 %v544, 96
        %v743 = vpop.permute.xlu0 %742
        %744 = vrot.lane.b32.xlu0 %v545, 96
        %v745 = vpop.permute.xlu0 %744
        %746 = vrot.lane.b32.xlu0 %v546, 96
        %v747 = vpop.permute.xlu0 %746
        %748 = vrot.lane.b32.xlu0 %v547, 96
        %v749 = vpop.permute.xlu0 %748
        %750 = vrot.lane.b32.xlu0 %v548, 96
        %v751 = vpop.permute.xlu0 %750
        %752 = vrot.lane.b32.xlu0 %v549, 96
        %v753 = vpop.permute.xlu0 %752
        %v762 = vsel %vm257, %v739, 0.0
        %763 = vadd.xlane.f32.xlu0 %v762
        %v764 = vpop.xlane.xlu0 %763
        %v765 = vsel %vm257, %v741, 0.0
        %766 = vadd.xlane.f32.xlu0 %v765
        %v767 = vpop.xlane.xlu0 %766
        %v768 = vsel %vm257, %v743, 0.0
        %769 = vadd.xlane.f32.xlu0 %v768
        %v770 = vpop.xlane.xlu0 %769
        %v771 = vsel %vm257, %v745, 0.0
        %772 = vadd.xlane.f32.xlu0 %v771
        %v773 = vpop.xlane.xlu0 %772
        %v774 = vsel %vm257, %v747, 0.0
        %775 = vadd.xlane.f32.xlu0 %v774
        %v776 = vpop.xlane.xlu0 %775
        %v777 = vsel %vm257, %v749, 0.0
        %778 = vadd.xlane.f32.xlu0 %v777
        %v779 = vpop.xlane.xlu0 %778
        %v780 = vsel %vm257, %v751, 0.0
        %781 = vadd.xlane.f32.xlu0 %v780
        %v782 = vpop.xlane.xlu0 %781
        %v783 = vsel %vm257, %v753, 0.0
        %784 = vadd.xlane.f32.xlu0 %v783
        %v785 = vpop.xlane.xlu0 %784
        %v786 = vmul.f32 %v764, 0.03125
        %v787 = vmul.f32 %v767, 0.03125
        %v788 = vmul.f32 %v770, 0.03125
        %v789 = vmul.f32 %v773, 0.03125
        %v790 = vmul.f32 %v776, 0.03125
        %v791 = vmul.f32 %v779, 0.03125
        %v792 = vmul.f32 %v782, 0.03125
        %v793 = vmul.f32 %v785, 0.03125
        %v794 = vmul.f32 %v722, %v722
        %v795 = vmul.f32 %v723, %v723
        %v796 = vmul.f32 %v724, %v724
        %v797 = vmul.f32 %v725, %v725
        %v798 = vmul.f32 %v726, %v726
        %v799 = vmul.f32 %v727, %v727
        %v800 = vmul.f32 %v728, %v728
        %v801 = vmul.f32 %v729, %v729
        %v802 = vsub.f32 %v786, %v794
        %v803 = vsub.f32 %v787, %v795
        %v804 = vsub.f32 %v788, %v796
        %v805 = vsub.f32 %v789, %v797
        %v806 = vsub.f32 %v790, %v798
        %v807 = vsub.f32 %v791, %v799
        %v808 = vsub.f32 %v792, %v800
        %v809 = vsub.f32 %v793, %v801
        %v810 = vmax.f32 %v802, 0.0
        %v811 = vmax.f32 %v803, 0.0
        %v812 = vmax.f32 %v804, 0.0
        %v813 = vmax.f32 %v805, 0.0
        %v814 = vmax.f32 %v806, 0.0
        %v815 = vmax.f32 %v807, 0.0
        %v816 = vmax.f32 %v808, 0.0
        %v817 = vmax.f32 %v809, 0.0
        %v818 = vsub.f32 %v349, %v722
        %v819 = vsub.f32 %v355, %v723
        %v820 = vsub.f32 %v361, %v724
        %v821 = vsub.f32 %v367, %v725
        %v822 = vsub.f32 %v373, %v726
        %v823 = vsub.f32 %v379, %v727
        %v824 = vsub.f32 %v385, %v728
        %v825 = vsub.f32 %v391, %v729
        %v826 = vadd.f32 %v810, 1e-05
        %v827 = vadd.f32 %v811, 1e-05
        %v828 = vadd.f32 %v812, 1e-05
        %v829 = vadd.f32 %v813, 1e-05
        %v830 = vadd.f32 %v814, 1e-05
        %v831 = vadd.f32 %v815, 1e-05
        %v832 = vadd.f32 %v816, 1e-05
        %v833 = vadd.f32 %v817, 1e-05
        %v834 = vrsqrt.pop %v826
        %v835 = vrsqrt.pop %v827
        %v836 = vrsqrt.pop %v828
        %v837 = vrsqrt.pop %v829
        %v838 = vrsqrt.pop %v830
        %v839 = vrsqrt.pop %v831
        %v840 = vrsqrt.pop %v832
        %v841 = vrsqrt.pop %v833
        %v842 = vmul.f32 %v818, %v834
        %v843 = vmul.f32 %v819, %v835
        %v844 = vmul.f32 %v820, %v836
        %v845 = vmul.f32 %v821, %v837
        %v846 = vmul.f32 %v822, %v838
        %v847 = vmul.f32 %v823, %v839
        %v848 = vmul.f32 %v824, %v840
        %v849 = vmul.f32 %v825, %v841
        %850 = vrot.lane.b32.xlu0 %v642, 32
        %v851 = vpop.permute.xlu0 %850
        %v853 = vmul.f32 %v842, %v851
        %v854 = vmul.f32 %v843, %v851
        %v855 = vmul.f32 %v844, %v851
        %v856 = vmul.f32 %v845, %v851
        %v857 = vmul.f32 %v846, %v851
        %v858 = vmul.f32 %v847, %v851
        %v859 = vmul.f32 %v848, %v851
        %v860 = vmul.f32 %v849, %v851
        %861 = vrot.lane.b32.xlu0 %v656, 32
        %v862 = vpop.permute.xlu0 %861
        %v864 = vadd.f32 %v853, %v862
        %v865 = vadd.f32 %v854, %v862
        %v866 = vadd.f32 %v855, %v862
        %v867 = vadd.f32 %v856, %v862
        %v868 = vadd.f32 %v857, %v862
        %v869 = vadd.f32 %v858, %v862
        %v870 = vadd.f32 %v859, %v862
        %v871 = vadd.f32 %v860, %v862
        %872 = vrot.lane.b32.xlu0 %v349, 64
        %v873 = vpop.permute.xlu0 %872
        %874 = vrot.lane.b32.xlu0 %v355, 64
        %v875 = vpop.permute.xlu0 %874
        %876 = vrot.lane.b32.xlu0 %v361, 64
        %v877 = vpop.permute.xlu0 %876
        %878 = vrot.lane.b32.xlu0 %v367, 64
        %v879 = vpop.permute.xlu0 %878
        %880 = vrot.lane.b32.xlu0 %v373, 64
        %v881 = vpop.permute.xlu0 %880
        %882 = vrot.lane.b32.xlu0 %v379, 64
        %v883 = vpop.permute.xlu0 %882
        %884 = vrot.lane.b32.xlu0 %v385, 64
        %v885 = vpop.permute.xlu0 %884
        %886 = vrot.lane.b32.xlu0 %v391, 64
        %v887 = vpop.permute.xlu0 %886
        %v896 = vsel %vm257, %v873, 0.0
        %897 = vadd.xlane.f32.xlu0 %v896
        %v898 = vpop.xlane.xlu0 %897
        %v899 = vsel %vm257, %v875, 0.0
        %900 = vadd.xlane.f32.xlu0 %v899
        %v901 = vpop.xlane.xlu0 %900
        %v902 = vsel %vm257, %v877, 0.0
        %903 = vadd.xlane.f32.xlu0 %v902
        %v904 = vpop.xlane.xlu0 %903
        %v905 = vsel %vm257, %v879, 0.0
        %906 = vadd.xlane.f32.xlu0 %v905
        %v907 = vpop.xlane.xlu0 %906
        %v908 = vsel %vm257, %v881, 0.0
        %909 = vadd.xlane.f32.xlu0 %v908
        %v910 = vpop.xlane.xlu0 %909
        %v911 = vsel %vm257, %v883, 0.0
        %912 = vadd.xlane.f32.xlu0 %v911
        %v913 = vpop.xlane.xlu0 %912
        %v914 = vsel %vm257, %v885, 0.0
        %915 = vadd.xlane.f32.xlu0 %v914
        %v916 = vpop.xlane.xlu0 %915
        %v917 = vsel %vm257, %v887, 0.0
        %918 = vadd.xlane.f32.xlu0 %v917
        %v919 = vpop.xlane.xlu0 %918
        %v920 = vmul.f32 %v898, 0.03125
        %v921 = vmul.f32 %v901, 0.03125
        %v922 = vmul.f32 %v904, 0.03125
        %v923 = vmul.f32 %v907, 0.03125
        %v924 = vmul.f32 %v910, 0.03125
        %v925 = vmul.f32 %v913, 0.03125
        %v926 = vmul.f32 %v916, 0.03125
        %v927 = vmul.f32 %v919, 0.03125
        %928 = vrot.lane.b32.xlu0 %v542, 64
        %v929 = vpop.permute.xlu0 %928
        %930 = vrot.lane.b32.xlu0 %v543, 64
        %v931 = vpop.permute.xlu0 %930
        %932 = vrot.lane.b32.xlu0 %v544, 64
        %v933 = vpop.permute.xlu0 %932
        %934 = vrot.lane.b32.xlu0 %v545, 64
        %v935 = vpop.permute.xlu0 %934
        %936 = vrot.lane.b32.xlu0 %v546, 64
        %v937 = vpop.permute.xlu0 %936
        %938 = vrot.lane.b32.xlu0 %v547, 64
        %v939 = vpop.permute.xlu0 %938
        %940 = vrot.lane.b32.xlu0 %v548, 64
        %v941 = vpop.permute.xlu0 %940
        %942 = vrot.lane.b32.xlu0 %v549, 64
        %v943 = vpop.permute.xlu0 %942
        %v952 = vsel %vm257, %v929, 0.0
        %953 = vadd.xlane.f32.xlu0 %v952
        %v954 = vpop.xlane.xlu0 %953
        %v955 = vsel %vm257, %v931, 0.0
        %956 = vadd.xlane.f32.xlu0 %v955
        %v957 = vpop.xlane.xlu0 %956
        %v958 = vsel %vm257, %v933, 0.0
        %959 = vadd.xlane.f32.xlu0 %v958
        %v960 = vpop.xlane.xlu0 %959
        %v961 = vsel %vm257, %v935, 0.0
        %962 = vadd.xlane.f32.xlu0 %v961
        %v963 = vpop.xlane.xlu0 %962
        %v964 = vsel %vm257, %v937, 0.0
        %965 = vadd.xlane.f32.xlu0 %v964
        %v966 = vpop.xlane.xlu0 %965
        %v967 = vsel %vm257, %v939, 0.0
        %968 = vadd.xlane.f32.xlu0 %v967
        %v969 = vpop.xlane.xlu0 %968
        %v970 = vsel %vm257, %v941, 0.0
        %971 = vadd.xlane.f32.xlu0 %v970
        %v972 = vpop.xlane.xlu0 %971
        %v973 = vsel %vm257, %v943, 0.0
        %974 = vadd.xlane.f32.xlu0 %v973
        %v975 = vpop.xlane.xlu0 %974
        %v976 = vmul.f32 %v954, 0.03125
        %v977 = vmul.f32 %v957, 0.03125
        %v978 = vmul.f32 %v960, 0.03125
        %v979 = vmul.f32 %v963, 0.03125
        %v980 = vmul.f32 %v966, 0.03125
        %v981 = vmul.f32 %v969, 0.03125
        %v982 = vmul.f32 %v972, 0.03125
        %v983 = vmul.f32 %v975, 0.03125
        %v984 = vmul.f32 %v920, %v920
        %v985 = vmul.f32 %v921, %v921
        %v986 = vmul.f32 %v922, %v922
        %v987 = vmul.f32 %v923, %v923
        %v988 = vmul.f32 %v924, %v924
        %v989 = vmul.f32 %v925, %v925
        %v990 = vmul.f32 %v926, %v926
        %v991 = vmul.f32 %v927, %v927
        %v992 = vsub.f32 %v976, %v984
        %v993 = vsub.f32 %v977, %v985
        %v994 = vsub.f32 %v978, %v986
        %v995 = vsub.f32 %v979, %v987
        %v996 = vsub.f32 %v980, %v988
        %v997 = vsub.f32 %v981, %v989
        %v998 = vsub.f32 %v982, %v990
        %v999 = vsub.f32 %v983, %v991
        %v1000 = vmax.f32 %v992, 0.0
        %v1001 = vmax.f32 %v993, 0.0
        %v1002 = vmax.f32 %v994, 0.0
        %v1003 = vmax.f32 %v995, 0.0
        %v1004 = vmax.f32 %v996, 0.0
        %v1005 = vmax.f32 %v997, 0.0
        %v1006 = vmax.f32 %v998, 0.0
        %v1007 = vmax.f32 %v999, 0.0
        %v1008 = vsub.f32 %v349, %v920
        %v1009 = vsub.f32 %v355, %v921
        %v1010 = vsub.f32 %v361, %v922
        %v1011 = vsub.f32 %v367, %v923
        %v1012 = vsub.f32 %v373, %v924
        %v1013 = vsub.f32 %v379, %v925
        %v1014 = vsub.f32 %v385, %v926
        %v1015 = vsub.f32 %v391, %v927
        %v1016 = vadd.f32 %v1000, 1e-05
        %v1017 = vadd.f32 %v1001, 1e-05
        %v1018 = vadd.f32 %v1002, 1e-05
        %v1019 = vadd.f32 %v1003, 1e-05
        %v1020 = vadd.f32 %v1004, 1e-05
        %v1021 = vadd.f32 %v1005, 1e-05
        %v1022 = vadd.f32 %v1006, 1e-05
        %v1023 = vadd.f32 %v1007, 1e-05
        %v1024 = vrsqrt.pop %v1016
        %v1025 = vrsqrt.pop %v1017
        %v1026 = vrsqrt.pop %v1018
        %v1027 = vrsqrt.pop %v1019
        %v1028 = vrsqrt.pop %v1020
        %v1029 = vrsqrt.pop %v1021
        %v1030 = vrsqrt.pop %v1022
        %v1031 = vrsqrt.pop %v1023
        %v1032 = vmul.f32 %v1008, %v1024
        %v1033 = vmul.f32 %v1009, %v1025
        %v1034 = vmul.f32 %v1010, %v1026
        %v1035 = vmul.f32 %v1011, %v1027
        %v1036 = vmul.f32 %v1012, %v1028
        %v1037 = vmul.f32 %v1013, %v1029
        %v1038 = vmul.f32 %v1014, %v1030
        %v1039 = vmul.f32 %v1015, %v1031
        %1040 = vrot.lane.b32.xlu0 %v642, 64
        %v1041 = vpop.permute.xlu0 %1040
        %v1043 = vmul.f32 %v1032, %v1041
        %v1044 = vmul.f32 %v1033, %v1041
        %v1045 = vmul.f32 %v1034, %v1041
        %v1046 = vmul.f32 %v1035, %v1041
        %v1047 = vmul.f32 %v1036, %v1041
        %v1048 = vmul.f32 %v1037, %v1041
        %v1049 = vmul.f32 %v1038, %v1041
        %v1050 = vmul.f32 %v1039, %v1041
        %1051 = vrot.lane.b32.xlu0 %v656, 64
        %v1052 = vpop.permute.xlu0 %1051
        %v1054 = vadd.f32 %v1043, %v1052
        %v1055 = vadd.f32 %v1044, %v1052
        %v1056 = vadd.f32 %v1045, %v1052
        %v1057 = vadd.f32 %v1046, %v1052
        %v1058 = vadd.f32 %v1047, %v1052
        %v1059 = vadd.f32 %v1048, %v1052
        %v1060 = vadd.f32 %v1049, %v1052
        %v1061 = vadd.f32 %v1050, %v1052
        %1062 = vrot.lane.b32.xlu0 %v349, 32
        %v1063 = vpop.permute.xlu0 %1062
        %1064 = vrot.lane.b32.xlu0 %v355, 32
        %v1065 = vpop.permute.xlu0 %1064
        %1066 = vrot.lane.b32.xlu0 %v361, 32
        %v1067 = vpop.permute.xlu0 %1066
        %1068 = vrot.lane.b32.xlu0 %v367, 32
        %v1069 = vpop.permute.xlu0 %1068
        %1070 = vrot.lane.b32.xlu0 %v373, 32
        %v1071 = vpop.permute.xlu0 %1070
        %1072 = vrot.lane.b32.xlu0 %v379, 32
        %v1073 = vpop.permute.xlu0 %1072
        %1074 = vrot.lane.b32.xlu0 %v385, 32
        %v1075 = vpop.permute.xlu0 %1074
        %1076 = vrot.lane.b32.xlu0 %v391, 32
        %v1077 = vpop.permute.xlu0 %1076
        %v1086 = vsel %vm257, %v1063, 0.0
        %1087 = vadd.xlane.f32.xlu0 %v1086
        %v1088 = vpop.xlane.xlu0 %1087
        %v1089 = vsel %vm257, %v1065, 0.0
        %1090 = vadd.xlane.f32.xlu0 %v1089
        %v1091 = vpop.xlane.xlu0 %1090
        %v1092 = vsel %vm257, %v1067, 0.0
        %1093 = vadd.xlane.f32.xlu0 %v1092
        %v1094 = vpop.xlane.xlu0 %1093
        %v1095 = vsel %vm257, %v1069, 0.0
        %1096 = vadd.xlane.f32.xlu0 %v1095
        %v1097 = vpop.xlane.xlu0 %1096
        %v1098 = vsel %vm257, %v1071, 0.0
        %1099 = vadd.xlane.f32.xlu0 %v1098
        %v1100 = vpop.xlane.xlu0 %1099
        %v1101 = vsel %vm257, %v1073, 0.0
        %1102 = vadd.xlane.f32.xlu0 %v1101
        %v1103 = vpop.xlane.xlu0 %1102
        %v1104 = vsel %vm257, %v1075, 0.0
        %1105 = vadd.xlane.f32.xlu0 %v1104
        %v1106 = vpop.xlane.xlu0 %1105
        %v1107 = vsel %vm257, %v1077, 0.0
        %1108 = vadd.xlane.f32.xlu0 %v1107
        %v1109 = vpop.xlane.xlu0 %1108
        %v1110 = vmul.f32 %v1088, 0.03125
        %v1111 = vmul.f32 %v1091, 0.03125
        %v1112 = vmul.f32 %v1094, 0.03125
        %v1113 = vmul.f32 %v1097, 0.03125
        %v1114 = vmul.f32 %v1100, 0.03125
        %v1115 = vmul.f32 %v1103, 0.03125
        %v1116 = vmul.f32 %v1106, 0.03125
        %v1117 = vmul.f32 %v1109, 0.03125
        %1118 = vrot.lane.b32.xlu0 %v542, 32
        %v1119 = vpop.permute.xlu0 %1118
        %1120 = vrot.lane.b32.xlu0 %v543, 32
        %v1121 = vpop.permute.xlu0 %1120
        %1122 = vrot.lane.b32.xlu0 %v544, 32
        %v1123 = vpop.permute.xlu0 %1122
        %1124 = vrot.lane.b32.xlu0 %v545, 32
        %v1125 = vpop.permute.xlu0 %1124
        %1126 = vrot.lane.b32.xlu0 %v546, 32
        %v1127 = vpop.permute.xlu0 %1126
        %1128 = vrot.lane.b32.xlu0 %v547, 32
        %v1129 = vpop.permute.xlu0 %1128
        %1130 = vrot.lane.b32.xlu0 %v548, 32
        %v1131 = vpop.permute.xlu0 %1130
        %1132 = vrot.lane.b32.xlu0 %v549, 32
        %v1133 = vpop.permute.xlu0 %1132
        %v1142 = vsel %vm257, %v1119, 0.0
        %1143 = vadd.xlane.f32.xlu0 %v1142
        %v1144 = vpop.xlane.xlu0 %1143
        %v1145 = vsel %vm257, %v1121, 0.0
        %1146 = vadd.xlane.f32.xlu0 %v1145
        %v1147 = vpop.xlane.xlu0 %1146
        %v1148 = vsel %vm257, %v1123, 0.0
        %1149 = vadd.xlane.f32.xlu0 %v1148
        %v1150 = vpop.xlane.xlu0 %1149
        %v1151 = vsel %vm257, %v1125, 0.0
        %1152 = vadd.xlane.f32.xlu0 %v1151
        %v1153 = vpop.xlane.xlu0 %1152
        %v1154 = vsel %vm257, %v1127, 0.0
        %1155 = vadd.xlane.f32.xlu0 %v1154
        %v1156 = vpop.xlane.xlu0 %1155
        %v1157 = vsel %vm257, %v1129, 0.0
        %1158 = vadd.xlane.f32.xlu0 %v1157
        %v1159 = vpop.xlane.xlu0 %1158
        %v1160 = vsel %vm257, %v1131, 0.0
        %1161 = vadd.xlane.f32.xlu0 %v1160
        %v1162 = vpop.xlane.xlu0 %1161
        %v1163 = vsel %vm257, %v1133, 0.0
        %1164 = vadd.xlane.f32.xlu0 %v1163
        %v1165 = vpop.xlane.xlu0 %1164
        %v1166 = vmul.f32 %v1144, 0.03125
        %v1167 = vmul.f32 %v1147, 0.03125
        %v1168 = vmul.f32 %v1150, 0.03125
        %v1169 = vmul.f32 %v1153, 0.03125
        %v1170 = vmul.f32 %v1156, 0.03125
        %v1171 = vmul.f32 %v1159, 0.03125
        %v1172 = vmul.f32 %v1162, 0.03125
        %v1173 = vmul.f32 %v1165, 0.03125
        %v1174 = vmul.f32 %v1110, %v1110
        %v1175 = vmul.f32 %v1111, %v1111
        %v1176 = vmul.f32 %v1112, %v1112
        %v1177 = vmul.f32 %v1113, %v1113
        %v1178 = vmul.f32 %v1114, %v1114
        %v1179 = vmul.f32 %v1115, %v1115
        %v1180 = vmul.f32 %v1116, %v1116
        %v1181 = vmul.f32 %v1117, %v1117
        %v1182 = vsub.f32 %v1166, %v1174
        %v1183 = vsub.f32 %v1167, %v1175
        %v1184 = vsub.f32 %v1168, %v1176
        %v1185 = vsub.f32 %v1169, %v1177
        %v1186 = vsub.f32 %v1170, %v1178
        %v1187 = vsub.f32 %v1171, %v1179
        %v1188 = vsub.f32 %v1172, %v1180
        %v1189 = vsub.f32 %v1173, %v1181
        %v1190 = vmax.f32 %v1182, 0.0
        %v1191 = vmax.f32 %v1183, 0.0
        %v1192 = vmax.f32 %v1184, 0.0
        %v1193 = vmax.f32 %v1185, 0.0
        %v1194 = vmax.f32 %v1186, 0.0
        %v1195 = vmax.f32 %v1187, 0.0
        %v1196 = vmax.f32 %v1188, 0.0
        %v1197 = vmax.f32 %v1189, 0.0
        %v1198 = vsub.f32 %v349, %v1110
        %v1199 = vsub.f32 %v355, %v1111
        %v1200 = vsub.f32 %v361, %v1112
        %v1201 = vsub.f32 %v367, %v1113
        %v1202 = vsub.f32 %v373, %v1114
        %v1203 = vsub.f32 %v379, %v1115
        %v1204 = vsub.f32 %v385, %v1116
        %v1205 = vsub.f32 %v391, %v1117
        %v1206 = vadd.f32 %v1190, 1e-05
        %v1207 = vadd.f32 %v1191, 1e-05
        %v1208 = vadd.f32 %v1192, 1e-05
        %v1209 = vadd.f32 %v1193, 1e-05
        %v1210 = vadd.f32 %v1194, 1e-05
        %v1211 = vadd.f32 %v1195, 1e-05
        %v1212 = vadd.f32 %v1196, 1e-05
        %v1213 = vadd.f32 %v1197, 1e-05
        %v1214 = vrsqrt.pop %v1206
        %v1215 = vrsqrt.pop %v1207
        %v1216 = vrsqrt.pop %v1208
        %v1217 = vrsqrt.pop %v1209
        %v1218 = vrsqrt.pop %v1210
        %v1219 = vrsqrt.pop %v1211
        %v1220 = vrsqrt.pop %v1212
        %v1221 = vrsqrt.pop %v1213
        %v1222 = vmul.f32 %v1198, %v1214
        %v1223 = vmul.f32 %v1199, %v1215
        %v1224 = vmul.f32 %v1200, %v1216
        %v1225 = vmul.f32 %v1201, %v1217
        %v1226 = vmul.f32 %v1202, %v1218
        %v1227 = vmul.f32 %v1203, %v1219
        %v1228 = vmul.f32 %v1204, %v1220
        %v1229 = vmul.f32 %v1205, %v1221
        %1230 = vrot.lane.b32.xlu0 %v642, 96
        %v1231 = vpop.permute.xlu0 %1230
        %v1233 = vmul.f32 %v1222, %v1231
        %v1234 = vmul.f32 %v1223, %v1231
        %v1235 = vmul.f32 %v1224, %v1231
        %v1236 = vmul.f32 %v1225, %v1231
        %v1237 = vmul.f32 %v1226, %v1231
        %v1238 = vmul.f32 %v1227, %v1231
        %v1239 = vmul.f32 %v1228, %v1231
        %v1240 = vmul.f32 %v1229, %v1231
        %1241 = vrot.lane.b32.xlu0 %v656, 96
        %v1242 = vpop.permute.xlu0 %1241
        %v1244 = vadd.f32 %v1233, %v1242
        %v1245 = vadd.f32 %v1234, %v1242
        %v1246 = vadd.f32 %v1235, %v1242
        %v1247 = vadd.f32 %v1236, %v1242
        %v1248 = vadd.f32 %v1237, %v1242
        %v1249 = vadd.f32 %v1238, %v1242
        %v1250 = vadd.f32 %v1239, %v1242
        %v1251 = vadd.f32 %v1240, %v1242
        %v1252 = vsel %vm257, %v658, %v864
        %v1253 = vsel %vm257, %v659, %v865
        %v1254 = vsel %vm257, %v660, %v866
        %v1255 = vsel %vm257, %v661, %v867
        %v1256 = vsel %vm257, %v662, %v868
        %v1257 = vsel %vm257, %v663, %v869
        %v1258 = vsel %vm257, %v664, %v870
        %v1259 = vsel %vm257, %v665, %v871
        %vm1260 = vcmask 523264
        %v1261 = vsel %vm1260, %v1252, %v1054
        %v1262 = vsel %vm1260, %v1253, %v1055
        %v1263 = vsel %vm1260, %v1254, %v1056
        %v1264 = vsel %vm1260, %v1255, %v1057
        %v1265 = vsel %vm1260, %v1256, %v1058
        %v1266 = vsel %vm1260, %v1257, %v1059
        %v1267 = vsel %vm1260, %v1258, %v1060
        %v1268 = vsel %vm1260, %v1259, %v1061
        %vm1269 = vcmask 785408
        %v1270 = vsel %vm1269, %v1261, %v1244
        %v1271 = vsel %vm1269, %v1262, %v1245
        %v1272 = vsel %vm1269, %v1263, %v1246
        %v1273 = vsel %vm1269, %v1264, %v1247
        %v1274 = vsel %vm1269, %v1265, %v1248
        %v1275 = vsel %vm1269, %v1266, %v1249
        %v1276 = vsel %vm1269, %v1267, %v1250
        %v1277 = vsel %vm1269, %v1268, %v1251
        %1278 = vst [vmem:[%s230] sm:$0xff] %v1270
        %1279 = vst [vmem:[%s230 + $0x20] sm:$0xff] %v1271
        %1280 = vst [vmem:[%s230 + $0x40] sm:$0xff] %v1272
        %1281 = vst [vmem:[%s230 + $0x60] sm:$0xff] %v1273
        %1282 = vst [vmem:[%s230 + $0x80] sm:$0xff] %v1274
        %1283 = vst [vmem:[%s230 + $0xa0] sm:$0xff] %v1275
        %1284 = vst [vmem:[%s230 + $0xc0] sm:$0xff] %v1276
        %1285 = vst [vmem:[%s230 + $0xe0] sm:$0xff] %v1277
        %v1286 = vsel %vm257, %v351, 0.0
        %1287 = vadd.xlane.f32.xlu0 %v1286
        %v1288 = vpop.xlane.xlu0 %1287
        %v1289 = vsel %vm257, %v357, 0.0
        %1290 = vadd.xlane.f32.xlu0 %v1289
        %v1291 = vpop.xlane.xlu0 %1290
        %v1292 = vsel %vm257, %v363, 0.0
        %1293 = vadd.xlane.f32.xlu0 %v1292
        %v1294 = vpop.xlane.xlu0 %1293
        %v1295 = vsel %vm257, %v369, 0.0
        %1296 = vadd.xlane.f32.xlu0 %v1295
        %v1297 = vpop.xlane.xlu0 %1296
        %v1298 = vsel %vm257, %v375, 0.0
        %1299 = vadd.xlane.f32.xlu0 %v1298
        %v1300 = vpop.xlane.xlu0 %1299
        %v1301 = vsel %vm257, %v381, 0.0
        %1302 = vadd.xlane.f32.xlu0 %v1301
        %v1303 = vpop.xlane.xlu0 %1302
        %v1304 = vsel %vm257, %v387, 0.0
        %1305 = vadd.xlane.f32.xlu0 %v1304
        %v1306 = vpop.xlane.xlu0 %1305
        %v1307 = vsel %vm257, %v393, 0.0
        %1308 = vadd.xlane.f32.xlu0 %v1307
        %v1309 = vpop.xlane.xlu0 %1308
        %v1310 = vmul.f32 %v1288, 0.03125
        %v1311 = vmul.f32 %v1291, 0.03125
        %v1312 = vmul.f32 %v1294, 0.03125
        %v1313 = vmul.f32 %v1297, 0.03125
        %v1314 = vmul.f32 %v1300, 0.03125
        %v1315 = vmul.f32 %v1303, 0.03125
        %v1316 = vmul.f32 %v1306, 0.03125
        %v1317 = vmul.f32 %v1309, 0.03125
        %v1318 = vmul.f32 %v351, %v351
        %v1319 = vmul.f32 %v357, %v357
        %v1320 = vmul.f32 %v363, %v363
        %v1321 = vmul.f32 %v369, %v369
        %v1322 = vmul.f32 %v375, %v375
        %v1323 = vmul.f32 %v381, %v381
        %v1324 = vmul.f32 %v387, %v387
        %v1325 = vmul.f32 %v393, %v393
        %v1326 = vsel %vm257, %v1318, 0.0
        %1327 = vadd.xlane.f32.xlu0 %v1326
        %v1328 = vpop.xlane.xlu0 %1327
        %v1329 = vsel %vm257, %v1319, 0.0
        %1330 = vadd.xlane.f32.xlu0 %v1329
        %v1331 = vpop.xlane.xlu0 %1330
        %v1332 = vsel %vm257, %v1320, 0.0
        %1333 = vadd.xlane.f32.xlu0 %v1332
        %v1334 = vpop.xlane.xlu0 %1333
        %v1335 = vsel %vm257, %v1321, 0.0
        %1336 = vadd.xlane.f32.xlu0 %v1335
        %v1337 = vpop.xlane.xlu0 %1336
        %v1338 = vsel %vm257, %v1322, 0.0
        %1339 = vadd.xlane.f32.xlu0 %v1338
        %v1340 = vpop.xlane.xlu0 %1339
        %v1341 = vsel %vm257, %v1323, 0.0
        %1342 = vadd.xlane.f32.xlu0 %v1341
        %v1343 = vpop.xlane.xlu0 %1342
        %v1344 = vsel %vm257, %v1324, 0.0
        %1345 = vadd.xlane.f32.xlu0 %v1344
        %v1346 = vpop.xlane.xlu0 %1345
        %v1347 = vsel %vm257, %v1325, 0.0
        %1348 = vadd.xlane.f32.xlu0 %v1347
        %v1349 = vpop.xlane.xlu0 %1348
        %v1350 = vmul.f32 %v1328, 0.03125
        %v1351 = vmul.f32 %v1331, 0.03125
        %v1352 = vmul.f32 %v1334, 0.03125
        %v1353 = vmul.f32 %v1337, 0.03125
        %v1354 = vmul.f32 %v1340, 0.03125
        %v1355 = vmul.f32 %v1343, 0.03125
        %v1356 = vmul.f32 %v1346, 0.03125
        %v1357 = vmul.f32 %v1349, 0.03125
        %v1358 = vmul.f32 %v1310, %v1310
        %v1359 = vmul.f32 %v1311, %v1311
        %v1360 = vmul.f32 %v1312, %v1312
        %v1361 = vmul.f32 %v1313, %v1313
        %v1362 = vmul.f32 %v1314, %v1314
        %v1363 = vmul.f32 %v1315, %v1315
        %v1364 = vmul.f32 %v1316, %v1316
        %v1365 = vmul.f32 %v1317, %v1317
        %v1366 = vsub.f32 %v1350, %v1358
        %v1367 = vsub.f32 %v1351, %v1359
        %v1368 = vsub.f32 %v1352, %v1360
        %v1369 = vsub.f32 %v1353, %v1361
        %v1370 = vsub.f32 %v1354, %v1362
        %v1371 = vsub.f32 %v1355, %v1363
        %v1372 = vsub.f32 %v1356, %v1364
        %v1373 = vsub.f32 %v1357, %v1365
        %v1374 = vmax.f32 %v1366, 0.0
        %v1375 = vmax.f32 %v1367, 0.0
        %v1376 = vmax.f32 %v1368, 0.0
        %v1377 = vmax.f32 %v1369, 0.0
        %v1378 = vmax.f32 %v1370, 0.0
        %v1379 = vmax.f32 %v1371, 0.0
        %v1380 = vmax.f32 %v1372, 0.0
        %v1381 = vmax.f32 %v1373, 0.0
        %v1382 = vsub.f32 %v351, %v1310
        %v1383 = vsub.f32 %v357, %v1311
        %v1384 = vsub.f32 %v363, %v1312
        %v1385 = vsub.f32 %v369, %v1313
        %v1386 = vsub.f32 %v375, %v1314
        %v1387 = vsub.f32 %v381, %v1315
        %v1388 = vsub.f32 %v387, %v1316
        %v1389 = vsub.f32 %v393, %v1317
        %v1390 = vadd.f32 %v1374, 1e-05
        %v1391 = vadd.f32 %v1375, 1e-05
        %v1392 = vadd.f32 %v1376, 1e-05
        %v1393 = vadd.f32 %v1377, 1e-05
        %v1394 = vadd.f32 %v1378, 1e-05
        %v1395 = vadd.f32 %v1379, 1e-05
        %v1396 = vadd.f32 %v1380, 1e-05
        %v1397 = vadd.f32 %v1381, 1e-05
        %v1398 = vrsqrt.pop %v1390
        %v1399 = vrsqrt.pop %v1391
        %v1400 = vrsqrt.pop %v1392
        %v1401 = vrsqrt.pop %v1393
        %v1402 = vrsqrt.pop %v1394
        %v1403 = vrsqrt.pop %v1395
        %v1404 = vrsqrt.pop %v1396
        %v1405 = vrsqrt.pop %v1397
        %v1406 = vmul.f32 %v1382, %v1398
        %v1407 = vmul.f32 %v1383, %v1399
        %v1408 = vmul.f32 %v1384, %v1400
        %v1409 = vmul.f32 %v1385, %v1401
        %v1410 = vmul.f32 %v1386, %v1402
        %v1411 = vmul.f32 %v1387, %v1403
        %v1412 = vmul.f32 %v1388, %v1404
        %v1413 = vmul.f32 %v1389, %v1405
        %v1414 = vmul.f32 %v1406, %v642
        %v1415 = vmul.f32 %v1407, %v642
        %v1416 = vmul.f32 %v1408, %v642
        %v1417 = vmul.f32 %v1409, %v642
        %v1418 = vmul.f32 %v1410, %v642
        %v1419 = vmul.f32 %v1411, %v642
        %v1420 = vmul.f32 %v1412, %v642
        %v1421 = vmul.f32 %v1413, %v642
        %v1422 = vadd.f32 %v1414, %v656
        %v1423 = vadd.f32 %v1415, %v656
        %v1424 = vadd.f32 %v1416, %v656
        %v1425 = vadd.f32 %v1417, %v656
        %v1426 = vadd.f32 %v1418, %v656
        %v1427 = vadd.f32 %v1419, %v656
        %v1428 = vadd.f32 %v1420, %v656
        %v1429 = vadd.f32 %v1421, %v656
        %1438 = vrot.lane.b32.xlu0 %v351, 96
        %v1439 = vpop.permute.xlu0 %1438
        %1440 = vrot.lane.b32.xlu0 %v357, 96
        %v1441 = vpop.permute.xlu0 %1440
        %1442 = vrot.lane.b32.xlu0 %v363, 96
        %v1443 = vpop.permute.xlu0 %1442
        %1444 = vrot.lane.b32.xlu0 %v369, 96
        %v1445 = vpop.permute.xlu0 %1444
        %1446 = vrot.lane.b32.xlu0 %v375, 96
        %v1447 = vpop.permute.xlu0 %1446
        %1448 = vrot.lane.b32.xlu0 %v381, 96
        %v1449 = vpop.permute.xlu0 %1448
        %1450 = vrot.lane.b32.xlu0 %v387, 96
        %v1451 = vpop.permute.xlu0 %1450
        %1452 = vrot.lane.b32.xlu0 %v393, 96
        %v1453 = vpop.permute.xlu0 %1452
        %v1462 = vsel %vm257, %v1439, 0.0
        %1463 = vadd.xlane.f32.xlu0 %v1462
        %v1464 = vpop.xlane.xlu0 %1463
        %v1465 = vsel %vm257, %v1441, 0.0
        %1466 = vadd.xlane.f32.xlu0 %v1465
        %v1467 = vpop.xlane.xlu0 %1466
        %v1468 = vsel %vm257, %v1443, 0.0
        %1469 = vadd.xlane.f32.xlu0 %v1468
        %v1470 = vpop.xlane.xlu0 %1469
        %v1471 = vsel %vm257, %v1445, 0.0
        %1472 = vadd.xlane.f32.xlu0 %v1471
        %v1473 = vpop.xlane.xlu0 %1472
        %v1474 = vsel %vm257, %v1447, 0.0
        %1475 = vadd.xlane.f32.xlu0 %v1474
        %v1476 = vpop.xlane.xlu0 %1475
        %v1477 = vsel %vm257, %v1449, 0.0
        %1478 = vadd.xlane.f32.xlu0 %v1477
        %v1479 = vpop.xlane.xlu0 %1478
        %v1480 = vsel %vm257, %v1451, 0.0
        %1481 = vadd.xlane.f32.xlu0 %v1480
        %v1482 = vpop.xlane.xlu0 %1481
        %v1483 = vsel %vm257, %v1453, 0.0
        %1484 = vadd.xlane.f32.xlu0 %v1483
        %v1485 = vpop.xlane.xlu0 %1484
        %v1486 = vmul.f32 %v1464, 0.03125
        %v1487 = vmul.f32 %v1467, 0.03125
        %v1488 = vmul.f32 %v1470, 0.03125
        %v1489 = vmul.f32 %v1473, 0.03125
        %v1490 = vmul.f32 %v1476, 0.03125
        %v1491 = vmul.f32 %v1479, 0.03125
        %v1492 = vmul.f32 %v1482, 0.03125
        %v1493 = vmul.f32 %v1485, 0.03125
        %1502 = vrot.lane.b32.xlu0 %v1318, 96
        %v1503 = vpop.permute.xlu0 %1502
        %1504 = vrot.lane.b32.xlu0 %v1319, 96
        %v1505 = vpop.permute.xlu0 %1504
        %1506 = vrot.lane.b32.xlu0 %v1320, 96
        %v1507 = vpop.permute.xlu0 %1506
        %1508 = vrot.lane.b32.xlu0 %v1321, 96
        %v1509 = vpop.permute.xlu0 %1508
        %1510 = vrot.lane.b32.xlu0 %v1322, 96
        %v1511 = vpop.permute.xlu0 %1510
        %1512 = vrot.lane.b32.xlu0 %v1323, 96
        %v1513 = vpop.permute.xlu0 %1512
        %1514 = vrot.lane.b32.xlu0 %v1324, 96
        %v1515 = vpop.permute.xlu0 %1514
        %1516 = vrot.lane.b32.xlu0 %v1325, 96
        %v1517 = vpop.permute.xlu0 %1516
        %v1526 = vsel %vm257, %v1503, 0.0
        %1527 = vadd.xlane.f32.xlu0 %v1526
        %v1528 = vpop.xlane.xlu0 %1527
        %v1529 = vsel %vm257, %v1505, 0.0
        %1530 = vadd.xlane.f32.xlu0 %v1529
        %v1531 = vpop.xlane.xlu0 %1530
        %v1532 = vsel %vm257, %v1507, 0.0
        %1533 = vadd.xlane.f32.xlu0 %v1532
        %v1534 = vpop.xlane.xlu0 %1533
        %v1535 = vsel %vm257, %v1509, 0.0
        %1536 = vadd.xlane.f32.xlu0 %v1535
        %v1537 = vpop.xlane.xlu0 %1536
        %v1538 = vsel %vm257, %v1511, 0.0
        %1539 = vadd.xlane.f32.xlu0 %v1538
        %v1540 = vpop.xlane.xlu0 %1539
        %v1541 = vsel %vm257, %v1513, 0.0
        %1542 = vadd.xlane.f32.xlu0 %v1541
        %v1543 = vpop.xlane.xlu0 %1542
        %v1544 = vsel %vm257, %v1515, 0.0
        %1545 = vadd.xlane.f32.xlu0 %v1544
        %v1546 = vpop.xlane.xlu0 %1545
        %v1547 = vsel %vm257, %v1517, 0.0
        %1548 = vadd.xlane.f32.xlu0 %v1547
        %v1549 = vpop.xlane.xlu0 %1548
        %v1550 = vmul.f32 %v1528, 0.03125
        %v1551 = vmul.f32 %v1531, 0.03125
        %v1552 = vmul.f32 %v1534, 0.03125
        %v1553 = vmul.f32 %v1537, 0.03125
        %v1554 = vmul.f32 %v1540, 0.03125
        %v1555 = vmul.f32 %v1543, 0.03125
        %v1556 = vmul.f32 %v1546, 0.03125
        %v1557 = vmul.f32 %v1549, 0.03125
        %v1558 = vmul.f32 %v1486, %v1486
        %v1559 = vmul.f32 %v1487, %v1487
        %v1560 = vmul.f32 %v1488, %v1488
        %v1561 = vmul.f32 %v1489, %v1489
        %v1562 = vmul.f32 %v1490, %v1490
        %v1563 = vmul.f32 %v1491, %v1491
        %v1564 = vmul.f32 %v1492, %v1492
        %v1565 = vmul.f32 %v1493, %v1493
        %v1566 = vsub.f32 %v1550, %v1558
        %v1567 = vsub.f32 %v1551, %v1559
        %v1568 = vsub.f32 %v1552, %v1560
        %v1569 = vsub.f32 %v1553, %v1561
        %v1570 = vsub.f32 %v1554, %v1562
        %v1571 = vsub.f32 %v1555, %v1563
        %v1572 = vsub.f32 %v1556, %v1564
        %v1573 = vsub.f32 %v1557, %v1565
        %v1574 = vmax.f32 %v1566, 0.0
        %v1575 = vmax.f32 %v1567, 0.0
        %v1576 = vmax.f32 %v1568, 0.0
        %v1577 = vmax.f32 %v1569, 0.0
        %v1578 = vmax.f32 %v1570, 0.0
        %v1579 = vmax.f32 %v1571, 0.0
        %v1580 = vmax.f32 %v1572, 0.0
        %v1581 = vmax.f32 %v1573, 0.0
        %v1582 = vsub.f32 %v351, %v1486
        %v1583 = vsub.f32 %v357, %v1487
        %v1584 = vsub.f32 %v363, %v1488
        %v1585 = vsub.f32 %v369, %v1489
        %v1586 = vsub.f32 %v375, %v1490
        %v1587 = vsub.f32 %v381, %v1491
        %v1588 = vsub.f32 %v387, %v1492
        %v1589 = vsub.f32 %v393, %v1493
        %v1590 = vadd.f32 %v1574, 1e-05
        %v1591 = vadd.f32 %v1575, 1e-05
        %v1592 = vadd.f32 %v1576, 1e-05
        %v1593 = vadd.f32 %v1577, 1e-05
        %v1594 = vadd.f32 %v1578, 1e-05
        %v1595 = vadd.f32 %v1579, 1e-05
        %v1596 = vadd.f32 %v1580, 1e-05
        %v1597 = vadd.f32 %v1581, 1e-05
        %v1598 = vrsqrt.pop %v1590
        %v1599 = vrsqrt.pop %v1591
        %v1600 = vrsqrt.pop %v1592
        %v1601 = vrsqrt.pop %v1593
        %v1602 = vrsqrt.pop %v1594
        %v1603 = vrsqrt.pop %v1595
        %v1604 = vrsqrt.pop %v1596
        %v1605 = vrsqrt.pop %v1597
        %v1606 = vmul.f32 %v1582, %v1598
        %v1607 = vmul.f32 %v1583, %v1599
        %v1608 = vmul.f32 %v1584, %v1600
        %v1609 = vmul.f32 %v1585, %v1601
        %v1610 = vmul.f32 %v1586, %v1602
        %v1611 = vmul.f32 %v1587, %v1603
        %v1612 = vmul.f32 %v1588, %v1604
        %v1613 = vmul.f32 %v1589, %v1605
        %v1614 = vmul.f32 %v1606, %v851
        %v1615 = vmul.f32 %v1607, %v851
        %v1616 = vmul.f32 %v1608, %v851
        %v1617 = vmul.f32 %v1609, %v851
        %v1618 = vmul.f32 %v1610, %v851
        %v1619 = vmul.f32 %v1611, %v851
        %v1620 = vmul.f32 %v1612, %v851
        %v1621 = vmul.f32 %v1613, %v851
        %v1622 = vadd.f32 %v1614, %v862
        %v1623 = vadd.f32 %v1615, %v862
        %v1624 = vadd.f32 %v1616, %v862
        %v1625 = vadd.f32 %v1617, %v862
        %v1626 = vadd.f32 %v1618, %v862
        %v1627 = vadd.f32 %v1619, %v862
        %v1628 = vadd.f32 %v1620, %v862
        %v1629 = vadd.f32 %v1621, %v862
        %1630 = vrot.lane.b32.xlu0 %v351, 64
        %v1631 = vpop.permute.xlu0 %1630
        %1632 = vrot.lane.b32.xlu0 %v357, 64
        %v1633 = vpop.permute.xlu0 %1632
        %1634 = vrot.lane.b32.xlu0 %v363, 64
        %v1635 = vpop.permute.xlu0 %1634
        %1636 = vrot.lane.b32.xlu0 %v369, 64
        %v1637 = vpop.permute.xlu0 %1636
        %1638 = vrot.lane.b32.xlu0 %v375, 64
        %v1639 = vpop.permute.xlu0 %1638
        %1640 = vrot.lane.b32.xlu0 %v381, 64
        %v1641 = vpop.permute.xlu0 %1640
        %1642 = vrot.lane.b32.xlu0 %v387, 64
        %v1643 = vpop.permute.xlu0 %1642
        %1644 = vrot.lane.b32.xlu0 %v393, 64
        %v1645 = vpop.permute.xlu0 %1644
        %v1654 = vsel %vm257, %v1631, 0.0
        %1655 = vadd.xlane.f32.xlu0 %v1654
        %v1656 = vpop.xlane.xlu0 %1655
        %v1657 = vsel %vm257, %v1633, 0.0
        %1658 = vadd.xlane.f32.xlu0 %v1657
        %v1659 = vpop.xlane.xlu0 %1658
        %v1660 = vsel %vm257, %v1635, 0.0
        %1661 = vadd.xlane.f32.xlu0 %v1660
        %v1662 = vpop.xlane.xlu0 %1661
        %v1663 = vsel %vm257, %v1637, 0.0
        %1664 = vadd.xlane.f32.xlu0 %v1663
        %v1665 = vpop.xlane.xlu0 %1664
        %v1666 = vsel %vm257, %v1639, 0.0
        %1667 = vadd.xlane.f32.xlu0 %v1666
        %v1668 = vpop.xlane.xlu0 %1667
        %v1669 = vsel %vm257, %v1641, 0.0
        %1670 = vadd.xlane.f32.xlu0 %v1669
        %v1671 = vpop.xlane.xlu0 %1670
        %v1672 = vsel %vm257, %v1643, 0.0
        %1673 = vadd.xlane.f32.xlu0 %v1672
        %v1674 = vpop.xlane.xlu0 %1673
        %v1675 = vsel %vm257, %v1645, 0.0
        %1676 = vadd.xlane.f32.xlu0 %v1675
        %v1677 = vpop.xlane.xlu0 %1676
        %v1678 = vmul.f32 %v1656, 0.03125
        %v1679 = vmul.f32 %v1659, 0.03125
        %v1680 = vmul.f32 %v1662, 0.03125
        %v1681 = vmul.f32 %v1665, 0.03125
        %v1682 = vmul.f32 %v1668, 0.03125
        %v1683 = vmul.f32 %v1671, 0.03125
        %v1684 = vmul.f32 %v1674, 0.03125
        %v1685 = vmul.f32 %v1677, 0.03125
        %1686 = vrot.lane.b32.xlu0 %v1318, 64
        %v1687 = vpop.permute.xlu0 %1686
        %1688 = vrot.lane.b32.xlu0 %v1319, 64
        %v1689 = vpop.permute.xlu0 %1688
        %1690 = vrot.lane.b32.xlu0 %v1320, 64
        %v1691 = vpop.permute.xlu0 %1690
        %1692 = vrot.lane.b32.xlu0 %v1321, 64
        %v1693 = vpop.permute.xlu0 %1692
        %1694 = vrot.lane.b32.xlu0 %v1322, 64
        %v1695 = vpop.permute.xlu0 %1694
        %1696 = vrot.lane.b32.xlu0 %v1323, 64
        %v1697 = vpop.permute.xlu0 %1696
        %1698 = vrot.lane.b32.xlu0 %v1324, 64
        %v1699 = vpop.permute.xlu0 %1698
        %1700 = vrot.lane.b32.xlu0 %v1325, 64
        %v1701 = vpop.permute.xlu0 %1700
        %v1710 = vsel %vm257, %v1687, 0.0
        %1711 = vadd.xlane.f32.xlu0 %v1710
        %v1712 = vpop.xlane.xlu0 %1711
        %v1713 = vsel %vm257, %v1689, 0.0
        %1714 = vadd.xlane.f32.xlu0 %v1713
        %v1715 = vpop.xlane.xlu0 %1714
        %v1716 = vsel %vm257, %v1691, 0.0
        %1717 = vadd.xlane.f32.xlu0 %v1716
        %v1718 = vpop.xlane.xlu0 %1717
        %v1719 = vsel %vm257, %v1693, 0.0
        %1720 = vadd.xlane.f32.xlu0 %v1719
        %v1721 = vpop.xlane.xlu0 %1720
        %v1722 = vsel %vm257, %v1695, 0.0
        %1723 = vadd.xlane.f32.xlu0 %v1722
        %v1724 = vpop.xlane.xlu0 %1723
        %v1725 = vsel %vm257, %v1697, 0.0
        %1726 = vadd.xlane.f32.xlu0 %v1725
        %v1727 = vpop.xlane.xlu0 %1726
        %v1728 = vsel %vm257, %v1699, 0.0
        %1729 = vadd.xlane.f32.xlu0 %v1728
        %v1730 = vpop.xlane.xlu0 %1729
        %v1731 = vsel %vm257, %v1701, 0.0
        %1732 = vadd.xlane.f32.xlu0 %v1731
        %v1733 = vpop.xlane.xlu0 %1732
        %v1734 = vmul.f32 %v1712, 0.03125
        %v1735 = vmul.f32 %v1715, 0.03125
        %v1736 = vmul.f32 %v1718, 0.03125
        %v1737 = vmul.f32 %v1721, 0.03125
        %v1738 = vmul.f32 %v1724, 0.03125
        %v1739 = vmul.f32 %v1727, 0.03125
        %v1740 = vmul.f32 %v1730, 0.03125
        %v1741 = vmul.f32 %v1733, 0.03125
        %v1742 = vmul.f32 %v1678, %v1678
        %v1743 = vmul.f32 %v1679, %v1679
        %v1744 = vmul.f32 %v1680, %v1680
        %v1745 = vmul.f32 %v1681, %v1681
        %v1746 = vmul.f32 %v1682, %v1682
        %v1747 = vmul.f32 %v1683, %v1683
        %v1748 = vmul.f32 %v1684, %v1684
        %v1749 = vmul.f32 %v1685, %v1685
        %v1750 = vsub.f32 %v1734, %v1742
        %v1751 = vsub.f32 %v1735, %v1743
        %v1752 = vsub.f32 %v1736, %v1744
        %v1753 = vsub.f32 %v1737, %v1745
        %v1754 = vsub.f32 %v1738, %v1746
        %v1755 = vsub.f32 %v1739, %v1747
        %v1756 = vsub.f32 %v1740, %v1748
        %v1757 = vsub.f32 %v1741, %v1749
        %v1758 = vmax.f32 %v1750, 0.0
        %v1759 = vmax.f32 %v1751, 0.0
        %v1760 = vmax.f32 %v1752, 0.0
        %v1761 = vmax.f32 %v1753, 0.0
        %v1762 = vmax.f32 %v1754, 0.0
        %v1763 = vmax.f32 %v1755, 0.0
        %v1764 = vmax.f32 %v1756, 0.0
        %v1765 = vmax.f32 %v1757, 0.0
        %v1766 = vsub.f32 %v351, %v1678
        %v1767 = vsub.f32 %v357, %v1679
        %v1768 = vsub.f32 %v363, %v1680
        %v1769 = vsub.f32 %v369, %v1681
        %v1770 = vsub.f32 %v375, %v1682
        %v1771 = vsub.f32 %v381, %v1683
        %v1772 = vsub.f32 %v387, %v1684
        %v1773 = vsub.f32 %v393, %v1685
        %v1774 = vadd.f32 %v1758, 1e-05
        %v1775 = vadd.f32 %v1759, 1e-05
        %v1776 = vadd.f32 %v1760, 1e-05
        %v1777 = vadd.f32 %v1761, 1e-05
        %v1778 = vadd.f32 %v1762, 1e-05
        %v1779 = vadd.f32 %v1763, 1e-05
        %v1780 = vadd.f32 %v1764, 1e-05
        %v1781 = vadd.f32 %v1765, 1e-05
        %v1782 = vrsqrt.pop %v1774
        %v1783 = vrsqrt.pop %v1775
        %v1784 = vrsqrt.pop %v1776
        %v1785 = vrsqrt.pop %v1777
        %v1786 = vrsqrt.pop %v1778
        %v1787 = vrsqrt.pop %v1779
        %v1788 = vrsqrt.pop %v1780
        %v1789 = vrsqrt.pop %v1781
        %v1790 = vmul.f32 %v1766, %v1782
        %v1791 = vmul.f32 %v1767, %v1783
        %v1792 = vmul.f32 %v1768, %v1784
        %v1793 = vmul.f32 %v1769, %v1785
        %v1794 = vmul.f32 %v1770, %v1786
        %v1795 = vmul.f32 %v1771, %v1787
        %v1796 = vmul.f32 %v1772, %v1788
        %v1797 = vmul.f32 %v1773, %v1789
        %v1798 = vmul.f32 %v1790, %v1041
        %v1799 = vmul.f32 %v1791, %v1041
        %v1800 = vmul.f32 %v1792, %v1041
        %v1801 = vmul.f32 %v1793, %v1041
        %v1802 = vmul.f32 %v1794, %v1041
        %v1803 = vmul.f32 %v1795, %v1041
        %v1804 = vmul.f32 %v1796, %v1041
        %v1805 = vmul.f32 %v1797, %v1041
        %v1806 = vadd.f32 %v1798, %v1052
        %v1807 = vadd.f32 %v1799, %v1052
        %v1808 = vadd.f32 %v1800, %v1052
        %v1809 = vadd.f32 %v1801, %v1052
        %v1810 = vadd.f32 %v1802, %v1052
        %v1811 = vadd.f32 %v1803, %v1052
        %v1812 = vadd.f32 %v1804, %v1052
        %v1813 = vadd.f32 %v1805, %v1052
        %1814 = vrot.lane.b32.xlu0 %v351, 32
        %v1815 = vpop.permute.xlu0 %1814
        %1816 = vrot.lane.b32.xlu0 %v357, 32
        %v1817 = vpop.permute.xlu0 %1816
        %1818 = vrot.lane.b32.xlu0 %v363, 32
        %v1819 = vpop.permute.xlu0 %1818
        %1820 = vrot.lane.b32.xlu0 %v369, 32
        %v1821 = vpop.permute.xlu0 %1820
        %1822 = vrot.lane.b32.xlu0 %v375, 32
        %v1823 = vpop.permute.xlu0 %1822
        %1824 = vrot.lane.b32.xlu0 %v381, 32
        %v1825 = vpop.permute.xlu0 %1824
        %1826 = vrot.lane.b32.xlu0 %v387, 32
        %v1827 = vpop.permute.xlu0 %1826
        %1828 = vrot.lane.b32.xlu0 %v393, 32
        %v1829 = vpop.permute.xlu0 %1828
        %v1838 = vsel %vm257, %v1815, 0.0
        %1839 = vadd.xlane.f32.xlu0 %v1838
        %v1840 = vpop.xlane.xlu0 %1839
        %v1841 = vsel %vm257, %v1817, 0.0
        %1842 = vadd.xlane.f32.xlu0 %v1841
        %v1843 = vpop.xlane.xlu0 %1842
        %v1844 = vsel %vm257, %v1819, 0.0
        %1845 = vadd.xlane.f32.xlu0 %v1844
        %v1846 = vpop.xlane.xlu0 %1845
        %v1847 = vsel %vm257, %v1821, 0.0
        %1848 = vadd.xlane.f32.xlu0 %v1847
        %v1849 = vpop.xlane.xlu0 %1848
        %v1850 = vsel %vm257, %v1823, 0.0
        %1851 = vadd.xlane.f32.xlu0 %v1850
        %v1852 = vpop.xlane.xlu0 %1851
        %v1853 = vsel %vm257, %v1825, 0.0
        %1854 = vadd.xlane.f32.xlu0 %v1853
        %v1855 = vpop.xlane.xlu0 %1854
        %v1856 = vsel %vm257, %v1827, 0.0
        %1857 = vadd.xlane.f32.xlu0 %v1856
        %v1858 = vpop.xlane.xlu0 %1857
        %v1859 = vsel %vm257, %v1829, 0.0
        %1860 = vadd.xlane.f32.xlu0 %v1859
        %v1861 = vpop.xlane.xlu0 %1860
        %v1862 = vmul.f32 %v1840, 0.03125
        %v1863 = vmul.f32 %v1843, 0.03125
        %v1864 = vmul.f32 %v1846, 0.03125
        %v1865 = vmul.f32 %v1849, 0.03125
        %v1866 = vmul.f32 %v1852, 0.03125
        %v1867 = vmul.f32 %v1855, 0.03125
        %v1868 = vmul.f32 %v1858, 0.03125
        %v1869 = vmul.f32 %v1861, 0.03125
        %1870 = vrot.lane.b32.xlu0 %v1318, 32
        %v1871 = vpop.permute.xlu0 %1870
        %1872 = vrot.lane.b32.xlu0 %v1319, 32
        %v1873 = vpop.permute.xlu0 %1872
        %1874 = vrot.lane.b32.xlu0 %v1320, 32
        %v1875 = vpop.permute.xlu0 %1874
        %1876 = vrot.lane.b32.xlu0 %v1321, 32
        %v1877 = vpop.permute.xlu0 %1876
        %1878 = vrot.lane.b32.xlu0 %v1322, 32
        %v1879 = vpop.permute.xlu0 %1878
        %1880 = vrot.lane.b32.xlu0 %v1323, 32
        %v1881 = vpop.permute.xlu0 %1880
        %1882 = vrot.lane.b32.xlu0 %v1324, 32
        %v1883 = vpop.permute.xlu0 %1882
        %1884 = vrot.lane.b32.xlu0 %v1325, 32
        %v1885 = vpop.permute.xlu0 %1884
        %v1894 = vsel %vm257, %v1871, 0.0
        %1895 = vadd.xlane.f32.xlu0 %v1894
        %v1896 = vpop.xlane.xlu0 %1895
        %v1897 = vsel %vm257, %v1873, 0.0
        %1898 = vadd.xlane.f32.xlu0 %v1897
        %v1899 = vpop.xlane.xlu0 %1898
        %v1900 = vsel %vm257, %v1875, 0.0
        %1901 = vadd.xlane.f32.xlu0 %v1900
        %v1902 = vpop.xlane.xlu0 %1901
        %v1903 = vsel %vm257, %v1877, 0.0
        %1904 = vadd.xlane.f32.xlu0 %v1903
        %v1905 = vpop.xlane.xlu0 %1904
        %v1906 = vsel %vm257, %v1879, 0.0
        %1907 = vadd.xlane.f32.xlu0 %v1906
        %v1908 = vpop.xlane.xlu0 %1907
        %v1909 = vsel %vm257, %v1881, 0.0
        %1910 = vadd.xlane.f32.xlu0 %v1909
        %v1911 = vpop.xlane.xlu0 %1910
        %v1912 = vsel %vm257, %v1883, 0.0
        %1913 = vadd.xlane.f32.xlu0 %v1912
        %v1914 = vpop.xlane.xlu0 %1913
        %v1915 = vsel %vm257, %v1885, 0.0
        %1916 = vadd.xlane.f32.xlu0 %v1915
        %v1917 = vpop.xlane.xlu0 %1916
        %v1918 = vmul.f32 %v1896, 0.03125
        %v1919 = vmul.f32 %v1899, 0.03125
        %v1920 = vmul.f32 %v1902, 0.03125
        %v1921 = vmul.f32 %v1905, 0.03125
        %v1922 = vmul.f32 %v1908, 0.03125
        %v1923 = vmul.f32 %v1911, 0.03125
        %v1924 = vmul.f32 %v1914, 0.03125
        %v1925 = vmul.f32 %v1917, 0.03125
        %v1926 = vmul.f32 %v1862, %v1862
        %v1927 = vmul.f32 %v1863, %v1863
        %v1928 = vmul.f32 %v1864, %v1864
        %v1929 = vmul.f32 %v1865, %v1865
        %v1930 = vmul.f32 %v1866, %v1866
        %v1931 = vmul.f32 %v1867, %v1867
        %v1932 = vmul.f32 %v1868, %v1868
        %v1933 = vmul.f32 %v1869, %v1869
        %v1934 = vsub.f32 %v1918, %v1926
        %v1935 = vsub.f32 %v1919, %v1927
        %v1936 = vsub.f32 %v1920, %v1928
        %v1937 = vsub.f32 %v1921, %v1929
        %v1938 = vsub.f32 %v1922, %v1930
        %v1939 = vsub.f32 %v1923, %v1931
        %v1940 = vsub.f32 %v1924, %v1932
        %v1941 = vsub.f32 %v1925, %v1933
        %v1942 = vmax.f32 %v1934, 0.0
        %v1943 = vmax.f32 %v1935, 0.0
        %v1944 = vmax.f32 %v1936, 0.0
        %v1945 = vmax.f32 %v1937, 0.0
        %v1946 = vmax.f32 %v1938, 0.0
        %v1947 = vmax.f32 %v1939, 0.0
        %v1948 = vmax.f32 %v1940, 0.0
        %v1949 = vmax.f32 %v1941, 0.0
        %v1950 = vsub.f32 %v351, %v1862
        %v1951 = vsub.f32 %v357, %v1863
        %v1952 = vsub.f32 %v363, %v1864
        %v1953 = vsub.f32 %v369, %v1865
        %v1954 = vsub.f32 %v375, %v1866
        %v1955 = vsub.f32 %v381, %v1867
        %v1956 = vsub.f32 %v387, %v1868
        %v1957 = vsub.f32 %v393, %v1869
        %v1958 = vadd.f32 %v1942, 1e-05
        %v1959 = vadd.f32 %v1943, 1e-05
        %v1960 = vadd.f32 %v1944, 1e-05
        %v1961 = vadd.f32 %v1945, 1e-05
        %v1962 = vadd.f32 %v1946, 1e-05
        %v1963 = vadd.f32 %v1947, 1e-05
        %v1964 = vadd.f32 %v1948, 1e-05
        %v1965 = vadd.f32 %v1949, 1e-05
        %v1966 = vrsqrt.pop %v1958
        %v1967 = vrsqrt.pop %v1959
        %v1968 = vrsqrt.pop %v1960
        %v1969 = vrsqrt.pop %v1961
        %v1970 = vrsqrt.pop %v1962
        %v1971 = vrsqrt.pop %v1963
        %v1972 = vrsqrt.pop %v1964
        %v1973 = vrsqrt.pop %v1965
        %v1974 = vmul.f32 %v1950, %v1966
        %v1975 = vmul.f32 %v1951, %v1967
        %v1976 = vmul.f32 %v1952, %v1968
        %v1977 = vmul.f32 %v1953, %v1969
        %v1978 = vmul.f32 %v1954, %v1970
        %v1979 = vmul.f32 %v1955, %v1971
        %v1980 = vmul.f32 %v1956, %v1972
        %v1981 = vmul.f32 %v1957, %v1973
        %v1982 = vmul.f32 %v1974, %v1231
        %v1983 = vmul.f32 %v1975, %v1231
        %v1984 = vmul.f32 %v1976, %v1231
        %v1985 = vmul.f32 %v1977, %v1231
        %v1986 = vmul.f32 %v1978, %v1231
        %v1987 = vmul.f32 %v1979, %v1231
        %v1988 = vmul.f32 %v1980, %v1231
        %v1989 = vmul.f32 %v1981, %v1231
        %v1990 = vadd.f32 %v1982, %v1242
        %v1991 = vadd.f32 %v1983, %v1242
        %v1992 = vadd.f32 %v1984, %v1242
        %v1993 = vadd.f32 %v1985, %v1242
        %v1994 = vadd.f32 %v1986, %v1242
        %v1995 = vadd.f32 %v1987, %v1242
        %v1996 = vadd.f32 %v1988, %v1242
        %v1997 = vadd.f32 %v1989, %v1242
        %v1998 = vsel %vm257, %v1422, %v1622
        %v1999 = vsel %vm257, %v1423, %v1623
        %v2000 = vsel %vm257, %v1424, %v1624
        %v2001 = vsel %vm257, %v1425, %v1625
        %v2002 = vsel %vm257, %v1426, %v1626
        %v2003 = vsel %vm257, %v1427, %v1627
        %v2004 = vsel %vm257, %v1428, %v1628
        %v2005 = vsel %vm257, %v1429, %v1629
        %v2006 = vsel %vm1260, %v1998, %v1806
        %v2007 = vsel %vm1260, %v1999, %v1807
        %v2008 = vsel %vm1260, %v2000, %v1808
        %v2009 = vsel %vm1260, %v2001, %v1809
        %v2010 = vsel %vm1260, %v2002, %v1810
        %v2011 = vsel %vm1260, %v2003, %v1811
        %v2012 = vsel %vm1260, %v2004, %v1812
        %v2013 = vsel %vm1260, %v2005, %v1813
        %v2014 = vsel %vm1269, %v2006, %v1990
        %v2015 = vsel %vm1269, %v2007, %v1991
        %v2016 = vsel %vm1269, %v2008, %v1992
        %v2017 = vsel %vm1269, %v2009, %v1993
        %v2018 = vsel %vm1269, %v2010, %v1994
        %v2019 = vsel %vm1269, %v2011, %v1995
        %v2020 = vsel %vm1269, %v2012, %v1996
        %v2021 = vsel %vm1269, %v2013, %v1997
        %s2022 = scalar_lea.vmem %s230, 8 [#allocation7]
        %2023 = vst [vmem:[%s2022] sm:$0xff] %v2014
        %2024 = vst [vmem:[%s2022 + $0x20] sm:$0xff] %v2015
        %2025 = vst [vmem:[%s2022 + $0x40] sm:$0xff] %v2016
        %2026 = vst [vmem:[%s2022 + $0x60] sm:$0xff] %v2017
        %2027 = vst [vmem:[%s2022 + $0x80] sm:$0xff] %v2018
        %2028 = vst [vmem:[%s2022 + $0xa0] sm:$0xff] %v2019
        %2029 = vst [vmem:[%s2022 + $0xc0] sm:$0xff] %v2020
        %2030 = vst [vmem:[%s2022 + $0xe0] sm:$0xff] %v2021
        %v2031 = vsel %vm257, %v462, 0.0
        %2032 = vadd.xlane.f32.xlu0 %v2031
        %v2033 = vpop.xlane.xlu0 %2032
        %v2034 = vsel %vm257, %v468, 0.0
        %2035 = vadd.xlane.f32.xlu0 %v2034
        %v2036 = vpop.xlane.xlu0 %2035
        %v2037 = vsel %vm257, %v474, 0.0
        %2038 = vadd.xlane.f32.xlu0 %v2037
        %v2039 = vpop.xlane.xlu0 %2038
        %v2040 = vsel %vm257, %v480, 0.0
        %2041 = vadd.xlane.f32.xlu0 %v2040
        %v2042 = vpop.xlane.xlu0 %2041
        %v2043 = vsel %vm257, %v486, 0.0
        %2044 = vadd.xlane.f32.xlu0 %v2043
        %v2045 = vpop.xlane.xlu0 %2044
        %v2046 = vsel %vm257, %v492, 0.0
        %2047 = vadd.xlane.f32.xlu0 %v2046
        %v2048 = vpop.xlane.xlu0 %2047
        %v2049 = vsel %vm257, %v498, 0.0
        %2050 = vadd.xlane.f32.xlu0 %v2049
        %v2051 = vpop.xlane.xlu0 %2050
        %v2052 = vsel %vm257, %v504, 0.0
        %2053 = vadd.xlane.f32.xlu0 %v2052
        %v2054 = vpop.xlane.xlu0 %2053
        %v2055 = vmul.f32 %v2033, 0.03125
        %v2056 = vmul.f32 %v2036, 0.03125
        %v2057 = vmul.f32 %v2039, 0.03125
        %v2058 = vmul.f32 %v2042, 0.03125
        %v2059 = vmul.f32 %v2045, 0.03125
        %v2060 = vmul.f32 %v2048, 0.03125
        %v2061 = vmul.f32 %v2051, 0.03125
        %v2062 = vmul.f32 %v2054, 0.03125
        %v2063 = vmul.f32 %v462, %v462
        %v2064 = vmul.f32 %v468, %v468
        %v2065 = vmul.f32 %v474, %v474
        %v2066 = vmul.f32 %v480, %v480
        %v2067 = vmul.f32 %v486, %v486
        %v2068 = vmul.f32 %v492, %v492
        %v2069 = vmul.f32 %v498, %v498
        %v2070 = vmul.f32 %v504, %v504
        %v2071 = vsel %vm257, %v2063, 0.0
        %2072 = vadd.xlane.f32.xlu0 %v2071
        %v2073 = vpop.xlane.xlu0 %2072
        %v2074 = vsel %vm257, %v2064, 0.0
        %2075 = vadd.xlane.f32.xlu0 %v2074
        %v2076 = vpop.xlane.xlu0 %2075
        %v2077 = vsel %vm257, %v2065, 0.0
        %2078 = vadd.xlane.f32.xlu0 %v2077
        %v2079 = vpop.xlane.xlu0 %2078
        %v2080 = vsel %vm257, %v2066, 0.0
        %2081 = vadd.xlane.f32.xlu0 %v2080
        %v2082 = vpop.xlane.xlu0 %2081
        %v2083 = vsel %vm257, %v2067, 0.0
        %2084 = vadd.xlane.f32.xlu0 %v2083
        %v2085 = vpop.xlane.xlu0 %2084
        %v2086 = vsel %vm257, %v2068, 0.0
        %2087 = vadd.xlane.f32.xlu0 %v2086
        %v2088 = vpop.xlane.xlu0 %2087
        %v2089 = vsel %vm257, %v2069, 0.0
        %2090 = vadd.xlane.f32.xlu0 %v2089
        %v2091 = vpop.xlane.xlu0 %2090
        %v2092 = vsel %vm257, %v2070, 0.0
        %2093 = vadd.xlane.f32.xlu0 %v2092
        %v2094 = vpop.xlane.xlu0 %2093
        %v2095 = vmul.f32 %v2073, 0.03125
        %v2096 = vmul.f32 %v2076, 0.03125
        %v2097 = vmul.f32 %v2079, 0.03125
        %v2098 = vmul.f32 %v2082, 0.03125
        %v2099 = vmul.f32 %v2085, 0.03125
        %v2100 = vmul.f32 %v2088, 0.03125
        %v2101 = vmul.f32 %v2091, 0.03125
        %v2102 = vmul.f32 %v2094, 0.03125
        %v2103 = vmul.f32 %v2055, %v2055
        %v2104 = vmul.f32 %v2056, %v2056
        %v2105 = vmul.f32 %v2057, %v2057
        %v2106 = vmul.f32 %v2058, %v2058
        %v2107 = vmul.f32 %v2059, %v2059
        %v2108 = vmul.f32 %v2060, %v2060
        %v2109 = vmul.f32 %v2061, %v2061
        %v2110 = vmul.f32 %v2062, %v2062
        %v2111 = vsub.f32 %v2095, %v2103
        %v2112 = vsub.f32 %v2096, %v2104
        %v2113 = vsub.f32 %v2097, %v2105
        %v2114 = vsub.f32 %v2098, %v2106
        %v2115 = vsub.f32 %v2099, %v2107
        %v2116 = vsub.f32 %v2100, %v2108
        %v2117 = vsub.f32 %v2101, %v2109
        %v2118 = vsub.f32 %v2102, %v2110
        %v2119 = vmax.f32 %v2111, 0.0
        %v2120 = vmax.f32 %v2112, 0.0
        %v2121 = vmax.f32 %v2113, 0.0
        %v2122 = vmax.f32 %v2114, 0.0
        %v2123 = vmax.f32 %v2115, 0.0
        %v2124 = vmax.f32 %v2116, 0.0
        %v2125 = vmax.f32 %v2117, 0.0
        %v2126 = vmax.f32 %v2118, 0.0
        %v2127 = vsub.f32 %v462, %v2055
        %v2128 = vsub.f32 %v468, %v2056
        %v2129 = vsub.f32 %v474, %v2057
        %v2130 = vsub.f32 %v480, %v2058
        %v2131 = vsub.f32 %v486, %v2059
        %v2132 = vsub.f32 %v492, %v2060
        %v2133 = vsub.f32 %v498, %v2061
        %v2134 = vsub.f32 %v504, %v2062
        %v2135 = vadd.f32 %v2119, 1e-05
        %v2136 = vadd.f32 %v2120, 1e-05
        %v2137 = vadd.f32 %v2121, 1e-05
        %v2138 = vadd.f32 %v2122, 1e-05
        %v2139 = vadd.f32 %v2123, 1e-05
        %v2140 = vadd.f32 %v2124, 1e-05
        %v2141 = vadd.f32 %v2125, 1e-05
        %v2142 = vadd.f32 %v2126, 1e-05
        %v2143 = vrsqrt.pop %v2135
        %v2144 = vrsqrt.pop %v2136
        %v2145 = vrsqrt.pop %v2137
        %v2146 = vrsqrt.pop %v2138
        %v2147 = vrsqrt.pop %v2139
        %v2148 = vrsqrt.pop %v2140
        %v2149 = vrsqrt.pop %v2141
        %v2150 = vrsqrt.pop %v2142
        %v2151 = vmul.f32 %v2127, %v2143
        %v2152 = vmul.f32 %v2128, %v2144
        %v2153 = vmul.f32 %v2129, %v2145
        %v2154 = vmul.f32 %v2130, %v2146
        %v2155 = vmul.f32 %v2131, %v2147
        %v2156 = vmul.f32 %v2132, %v2148
        %v2157 = vmul.f32 %v2133, %v2149
        %v2158 = vmul.f32 %v2134, %v2150
        %v2159 = vmul.f32 %v2151, %v642
        %v2160 = vmul.f32 %v2152, %v642
        %v2161 = vmul.f32 %v2153, %v642
        %v2162 = vmul.f32 %v2154, %v642
        %v2163 = vmul.f32 %v2155, %v642
        %v2164 = vmul.f32 %v2156, %v642
        %v2165 = vmul.f32 %v2157, %v642
        %v2166 = vmul.f32 %v2158, %v642
        %v2167 = vadd.f32 %v2159, %v656
        %v2168 = vadd.f32 %v2160, %v656
        %v2169 = vadd.f32 %v2161, %v656
        %v2170 = vadd.f32 %v2162, %v656
        %v2171 = vadd.f32 %v2163, %v656
        %v2172 = vadd.f32 %v2164, %v656
        %v2173 = vadd.f32 %v2165, %v656
        %v2174 = vadd.f32 %v2166, %v656
        %2183 = vrot.lane.b32.xlu0 %v462, 96
        %v2184 = vpop.permute.xlu0 %2183
        %2185 = vrot.lane.b32.xlu0 %v468, 96
        %v2186 = vpop.permute.xlu0 %2185
        %2187 = vrot.lane.b32.xlu0 %v474, 96
        %v2188 = vpop.permute.xlu0 %2187
        %2189 = vrot.lane.b32.xlu0 %v480, 96
        %v2190 = vpop.permute.xlu0 %2189
        %2191 = vrot.lane.b32.xlu0 %v486, 96
        %v2192 = vpop.permute.xlu0 %2191
        %2193 = vrot.lane.b32.xlu0 %v492, 96
        %v2194 = vpop.permute.xlu0 %2193
        %2195 = vrot.lane.b32.xlu0 %v498, 96
        %v2196 = vpop.permute.xlu0 %2195
        %2197 = vrot.lane.b32.xlu0 %v504, 96
        %v2198 = vpop.permute.xlu0 %2197
        %v2207 = vsel %vm257, %v2184, 0.0
        %2208 = vadd.xlane.f32.xlu0 %v2207
        %v2209 = vpop.xlane.xlu0 %2208
        %v2210 = vsel %vm257, %v2186, 0.0
        %2211 = vadd.xlane.f32.xlu0 %v2210
        %v2212 = vpop.xlane.xlu0 %2211
        %v2213 = vsel %vm257, %v2188, 0.0
        %2214 = vadd.xlane.f32.xlu0 %v2213
        %v2215 = vpop.xlane.xlu0 %2214
        %v2216 = vsel %vm257, %v2190, 0.0
        %2217 = vadd.xlane.f32.xlu0 %v2216
        %v2218 = vpop.xlane.xlu0 %2217
        %v2219 = vsel %vm257, %v2192, 0.0
        %2220 = vadd.xlane.f32.xlu0 %v2219
        %v2221 = vpop.xlane.xlu0 %2220
        %v2222 = vsel %vm257, %v2194, 0.0
        %2223 = vadd.xlane.f32.xlu0 %v2222
        %v2224 = vpop.xlane.xlu0 %2223
        %v2225 = vsel %vm257, %v2196, 0.0
        %2226 = vadd.xlane.f32.xlu0 %v2225
        %v2227 = vpop.xlane.xlu0 %2226
        %v2228 = vsel %vm257, %v2198, 0.0
        %2229 = vadd.xlane.f32.xlu0 %v2228
        %v2230 = vpop.xlane.xlu0 %2229
        %v2231 = vmul.f32 %v2209, 0.03125
        %v2232 = vmul.f32 %v2212, 0.03125
        %v2233 = vmul.f32 %v2215, 0.03125
        %v2234 = vmul.f32 %v2218, 0.03125
        %v2235 = vmul.f32 %v2221, 0.03125
        %v2236 = vmul.f32 %v2224, 0.03125
        %v2237 = vmul.f32 %v2227, 0.03125
        %v2238 = vmul.f32 %v2230, 0.03125
        %2247 = vrot.lane.b32.xlu0 %v2063, 96
        %v2248 = vpop.permute.xlu0 %2247
        %2249 = vrot.lane.b32.xlu0 %v2064, 96
        %v2250 = vpop.permute.xlu0 %2249
        %2251 = vrot.lane.b32.xlu0 %v2065, 96
        %v2252 = vpop.permute.xlu0 %2251
        %2253 = vrot.lane.b32.xlu0 %v2066, 96
        %v2254 = vpop.permute.xlu0 %2253
        %2255 = vrot.lane.b32.xlu0 %v2067, 96
        %v2256 = vpop.permute.xlu0 %2255
        %2257 = vrot.lane.b32.xlu0 %v2068, 96
        %v2258 = vpop.permute.xlu0 %2257
        %2259 = vrot.lane.b32.xlu0 %v2069, 96
        %v2260 = vpop.permute.xlu0 %2259
        %2261 = vrot.lane.b32.xlu0 %v2070, 96
        %v2262 = vpop.permute.xlu0 %2261
        %v2271 = vsel %vm257, %v2248, 0.0
        %2272 = vadd.xlane.f32.xlu0 %v2271
        %v2273 = vpop.xlane.xlu0 %2272
        %v2274 = vsel %vm257, %v2250, 0.0
        %2275 = vadd.xlane.f32.xlu0 %v2274
        %v2276 = vpop.xlane.xlu0 %2275
        %v2277 = vsel %vm257, %v2252, 0.0
        %2278 = vadd.xlane.f32.xlu0 %v2277
        %v2279 = vpop.xlane.xlu0 %2278
        %v2280 = vsel %vm257, %v2254, 0.0
        %2281 = vadd.xlane.f32.xlu0 %v2280
        %v2282 = vpop.xlane.xlu0 %2281
        %v2283 = vsel %vm257, %v2256, 0.0
        %2284 = vadd.xlane.f32.xlu0 %v2283
        %v2285 = vpop.xlane.xlu0 %2284
        %v2286 = vsel %vm257, %v2258, 0.0
        %2287 = vadd.xlane.f32.xlu0 %v2286
        %v2288 = vpop.xlane.xlu0 %2287
        %v2289 = vsel %vm257, %v2260, 0.0
        %2290 = vadd.xlane.f32.xlu0 %v2289
        %v2291 = vpop.xlane.xlu0 %2290
        %v2292 = vsel %vm257, %v2262, 0.0
        %2293 = vadd.xlane.f32.xlu0 %v2292
        %v2294 = vpop.xlane.xlu0 %2293
        %v2295 = vmul.f32 %v2273, 0.03125
        %v2296 = vmul.f32 %v2276, 0.03125
        %v2297 = vmul.f32 %v2279, 0.03125
        %v2298 = vmul.f32 %v2282, 0.03125
        %v2299 = vmul.f32 %v2285, 0.03125
        %v2300 = vmul.f32 %v2288, 0.03125
        %v2301 = vmul.f32 %v2291, 0.03125
        %v2302 = vmul.f32 %v2294, 0.03125
        %v2303 = vmul.f32 %v2231, %v2231
        %v2304 = vmul.f32 %v2232, %v2232
        %v2305 = vmul.f32 %v2233, %v2233
        %v2306 = vmul.f32 %v2234, %v2234
        %v2307 = vmul.f32 %v2235, %v2235
        %v2308 = vmul.f32 %v2236, %v2236
        %v2309 = vmul.f32 %v2237, %v2237
        %v2310 = vmul.f32 %v2238, %v2238
        %v2311 = vsub.f32 %v2295, %v2303
        %v2312 = vsub.f32 %v2296, %v2304
        %v2313 = vsub.f32 %v2297, %v2305
        %v2314 = vsub.f32 %v2298, %v2306
        %v2315 = vsub.f32 %v2299, %v2307
        %v2316 = vsub.f32 %v2300, %v2308
        %v2317 = vsub.f32 %v2301, %v2309
        %v2318 = vsub.f32 %v2302, %v2310
        %v2319 = vmax.f32 %v2311, 0.0
        %v2320 = vmax.f32 %v2312, 0.0
        %v2321 = vmax.f32 %v2313, 0.0
        %v2322 = vmax.f32 %v2314, 0.0
        %v2323 = vmax.f32 %v2315, 0.0
        %v2324 = vmax.f32 %v2316, 0.0
        %v2325 = vmax.f32 %v2317, 0.0
        %v2326 = vmax.f32 %v2318, 0.0
        %v2327 = vsub.f32 %v462, %v2231
        %v2328 = vsub.f32 %v468, %v2232
        %v2329 = vsub.f32 %v474, %v2233
        %v2330 = vsub.f32 %v480, %v2234
        %v2331 = vsub.f32 %v486, %v2235
        %v2332 = vsub.f32 %v492, %v2236
        %v2333 = vsub.f32 %v498, %v2237
        %v2334 = vsub.f32 %v504, %v2238
        %v2335 = vadd.f32 %v2319, 1e-05
        %v2336 = vadd.f32 %v2320, 1e-05
        %v2337 = vadd.f32 %v2321, 1e-05
        %v2338 = vadd.f32 %v2322, 1e-05
        %v2339 = vadd.f32 %v2323, 1e-05
        %v2340 = vadd.f32 %v2324, 1e-05
        %v2341 = vadd.f32 %v2325, 1e-05
        %v2342 = vadd.f32 %v2326, 1e-05
        %v2343 = vrsqrt.pop %v2335
        %v2344 = vrsqrt.pop %v2336
        %v2345 = vrsqrt.pop %v2337
        %v2346 = vrsqrt.pop %v2338
        %v2347 = vrsqrt.pop %v2339
        %v2348 = vrsqrt.pop %v2340
        %v2349 = vrsqrt.pop %v2341
        %v2350 = vrsqrt.pop %v2342
        %v2351 = vmul.f32 %v2327, %v2343
        %v2352 = vmul.f32 %v2328, %v2344
        %v2353 = vmul.f32 %v2329, %v2345
        %v2354 = vmul.f32 %v2330, %v2346
        %v2355 = vmul.f32 %v2331, %v2347
        %v2356 = vmul.f32 %v2332, %v2348
        %v2357 = vmul.f32 %v2333, %v2349
        %v2358 = vmul.f32 %v2334, %v2350
        %v2359 = vmul.f32 %v2351, %v851
        %v2360 = vmul.f32 %v2352, %v851
        %v2361 = vmul.f32 %v2353, %v851
        %v2362 = vmul.f32 %v2354, %v851
        %v2363 = vmul.f32 %v2355, %v851
        %v2364 = vmul.f32 %v2356, %v851
        %v2365 = vmul.f32 %v2357, %v851
        %v2366 = vmul.f32 %v2358, %v851
        %v2367 = vadd.f32 %v2359, %v862
        %v2368 = vadd.f32 %v2360, %v862
        %v2369 = vadd.f32 %v2361, %v862
        %v2370 = vadd.f32 %v2362, %v862
        %v2371 = vadd.f32 %v2363, %v862
        %v2372 = vadd.f32 %v2364, %v862
        %v2373 = vadd.f32 %v2365, %v862
        %v2374 = vadd.f32 %v2366, %v862
        %2375 = vrot.lane.b32.xlu0 %v462, 64
        %v2376 = vpop.permute.xlu0 %2375
        %2377 = vrot.lane.b32.xlu0 %v468, 64
        %v2378 = vpop.permute.xlu0 %2377
        %2379 = vrot.lane.b32.xlu0 %v474, 64
        %v2380 = vpop.permute.xlu0 %2379
        %2381 = vrot.lane.b32.xlu0 %v480, 64
        %v2382 = vpop.permute.xlu0 %2381
        %2383 = vrot.lane.b32.xlu0 %v486, 64
        %v2384 = vpop.permute.xlu0 %2383
        %2385 = vrot.lane.b32.xlu0 %v492, 64
        %v2386 = vpop.permute.xlu0 %2385
        %2387 = vrot.lane.b32.xlu0 %v498, 64
        %v2388 = vpop.permute.xlu0 %2387
        %2389 = vrot.lane.b32.xlu0 %v504, 64
        %v2390 = vpop.permute.xlu0 %2389
        %v2399 = vsel %vm257, %v2376, 0.0
        %2400 = vadd.xlane.f32.xlu0 %v2399
        %v2401 = vpop.xlane.xlu0 %2400
        %v2402 = vsel %vm257, %v2378, 0.0
        %2403 = vadd.xlane.f32.xlu0 %v2402
        %v2404 = vpop.xlane.xlu0 %2403
        %v2405 = vsel %vm257, %v2380, 0.0
        %2406 = vadd.xlane.f32.xlu0 %v2405
        %v2407 = vpop.xlane.xlu0 %2406
        %v2408 = vsel %vm257, %v2382, 0.0
        %2409 = vadd.xlane.f32.xlu0 %v2408
        %v2410 = vpop.xlane.xlu0 %2409
        %v2411 = vsel %vm257, %v2384, 0.0
        %2412 = vadd.xlane.f32.xlu0 %v2411
        %v2413 = vpop.xlane.xlu0 %2412
        %v2414 = vsel %vm257, %v2386, 0.0
        %2415 = vadd.xlane.f32.xlu0 %v2414
        %v2416 = vpop.xlane.xlu0 %2415
        %v2417 = vsel %vm257, %v2388, 0.0
        %2418 = vadd.xlane.f32.xlu0 %v2417
        %v2419 = vpop.xlane.xlu0 %2418
        %v2420 = vsel %vm257, %v2390, 0.0
        %2421 = vadd.xlane.f32.xlu0 %v2420
        %v2422 = vpop.xlane.xlu0 %2421
        %v2423 = vmul.f32 %v2401, 0.03125
        %v2424 = vmul.f32 %v2404, 0.03125
        %v2425 = vmul.f32 %v2407, 0.03125
        %v2426 = vmul.f32 %v2410, 0.03125
        %v2427 = vmul.f32 %v2413, 0.03125
        %v2428 = vmul.f32 %v2416, 0.03125
        %v2429 = vmul.f32 %v2419, 0.03125
        %v2430 = vmul.f32 %v2422, 0.03125
        %2431 = vrot.lane.b32.xlu0 %v2063, 64
        %v2432 = vpop.permute.xlu0 %2431
        %2433 = vrot.lane.b32.xlu0 %v2064, 64
        %v2434 = vpop.permute.xlu0 %2433
        %2435 = vrot.lane.b32.xlu0 %v2065, 64
        %v2436 = vpop.permute.xlu0 %2435
        %2437 = vrot.lane.b32.xlu0 %v2066, 64
        %v2438 = vpop.permute.xlu0 %2437
        %2439 = vrot.lane.b32.xlu0 %v2067, 64
        %v2440 = vpop.permute.xlu0 %2439
        %2441 = vrot.lane.b32.xlu0 %v2068, 64
        %v2442 = vpop.permute.xlu0 %2441
        %2443 = vrot.lane.b32.xlu0 %v2069, 64
        %v2444 = vpop.permute.xlu0 %2443
        %2445 = vrot.lane.b32.xlu0 %v2070, 64
        %v2446 = vpop.permute.xlu0 %2445
        %v2455 = vsel %vm257, %v2432, 0.0
        %2456 = vadd.xlane.f32.xlu0 %v2455
        %v2457 = vpop.xlane.xlu0 %2456
        %v2458 = vsel %vm257, %v2434, 0.0
        %2459 = vadd.xlane.f32.xlu0 %v2458
        %v2460 = vpop.xlane.xlu0 %2459
        %v2461 = vsel %vm257, %v2436, 0.0
        %2462 = vadd.xlane.f32.xlu0 %v2461
        %v2463 = vpop.xlane.xlu0 %2462
        %v2464 = vsel %vm257, %v2438, 0.0
        %2465 = vadd.xlane.f32.xlu0 %v2464
        %v2466 = vpop.xlane.xlu0 %2465
        %v2467 = vsel %vm257, %v2440, 0.0
        %2468 = vadd.xlane.f32.xlu0 %v2467
        %v2469 = vpop.xlane.xlu0 %2468
        %v2470 = vsel %vm257, %v2442, 0.0
        %2471 = vadd.xlane.f32.xlu0 %v2470
        %v2472 = vpop.xlane.xlu0 %2471
        %v2473 = vsel %vm257, %v2444, 0.0
        %2474 = vadd.xlane.f32.xlu0 %v2473
        %v2475 = vpop.xlane.xlu0 %2474
        %v2476 = vsel %vm257, %v2446, 0.0
        %2477 = vadd.xlane.f32.xlu0 %v2476
        %v2478 = vpop.xlane.xlu0 %2477
        %v2479 = vmul.f32 %v2457, 0.03125
        %v2480 = vmul.f32 %v2460, 0.03125
        %v2481 = vmul.f32 %v2463, 0.03125
        %v2482 = vmul.f32 %v2466, 0.03125
        %v2483 = vmul.f32 %v2469, 0.03125
        %v2484 = vmul.f32 %v2472, 0.03125
        %v2485 = vmul.f32 %v2475, 0.03125
        %v2486 = vmul.f32 %v2478, 0.03125
        %v2487 = vmul.f32 %v2423, %v2423
        %v2488 = vmul.f32 %v2424, %v2424
        %v2489 = vmul.f32 %v2425, %v2425
        %v2490 = vmul.f32 %v2426, %v2426
        %v2491 = vmul.f32 %v2427, %v2427
        %v2492 = vmul.f32 %v2428, %v2428
        %v2493 = vmul.f32 %v2429, %v2429
        %v2494 = vmul.f32 %v2430, %v2430
        %v2495 = vsub.f32 %v2479, %v2487
        %v2496 = vsub.f32 %v2480, %v2488
        %v2497 = vsub.f32 %v2481, %v2489
        %v2498 = vsub.f32 %v2482, %v2490
        %v2499 = vsub.f32 %v2483, %v2491
        %v2500 = vsub.f32 %v2484, %v2492
        %v2501 = vsub.f32 %v2485, %v2493
        %v2502 = vsub.f32 %v2486, %v2494
        %v2503 = vmax.f32 %v2495, 0.0
        %v2504 = vmax.f32 %v2496, 0.0
        %v2505 = vmax.f32 %v2497, 0.0
        %v2506 = vmax.f32 %v2498, 0.0
        %v2507 = vmax.f32 %v2499, 0.0
        %v2508 = vmax.f32 %v2500, 0.0
        %v2509 = vmax.f32 %v2501, 0.0
        %v2510 = vmax.f32 %v2502, 0.0
        %v2511 = vsub.f32 %v462, %v2423
        %v2512 = vsub.f32 %v468, %v2424
        %v2513 = vsub.f32 %v474, %v2425
        %v2514 = vsub.f32 %v480, %v2426
        %v2515 = vsub.f32 %v486, %v2427
        %v2516 = vsub.f32 %v492, %v2428
        %v2517 = vsub.f32 %v498, %v2429
        %v2518 = vsub.f32 %v504, %v2430
        %v2519 = vadd.f32 %v2503, 1e-05
        %v2520 = vadd.f32 %v2504, 1e-05
        %v2521 = vadd.f32 %v2505, 1e-05
        %v2522 = vadd.f32 %v2506, 1e-05
        %v2523 = vadd.f32 %v2507, 1e-05
        %v2524 = vadd.f32 %v2508, 1e-05
        %v2525 = vadd.f32 %v2509, 1e-05
        %v2526 = vadd.f32 %v2510, 1e-05
        %v2527 = vrsqrt.pop %v2519
        %v2528 = vrsqrt.pop %v2520
        %v2529 = vrsqrt.pop %v2521
        %v2530 = vrsqrt.pop %v2522
        %v2531 = vrsqrt.pop %v2523
        %v2532 = vrsqrt.pop %v2524
        %v2533 = vrsqrt.pop %v2525
        %v2534 = vrsqrt.pop %v2526
        %v2535 = vmul.f32 %v2511, %v2527
        %v2536 = vmul.f32 %v2512, %v2528
        %v2537 = vmul.f32 %v2513, %v2529
        %v2538 = vmul.f32 %v2514, %v2530
        %v2539 = vmul.f32 %v2515, %v2531
        %v2540 = vmul.f32 %v2516, %v2532
        %v2541 = vmul.f32 %v2517, %v2533
        %v2542 = vmul.f32 %v2518, %v2534
        %v2543 = vmul.f32 %v2535, %v1041
        %v2544 = vmul.f32 %v2536, %v1041
        %v2545 = vmul.f32 %v2537, %v1041
        %v2546 = vmul.f32 %v2538, %v1041
        %v2547 = vmul.f32 %v2539, %v1041
        %v2548 = vmul.f32 %v2540, %v1041
        %v2549 = vmul.f32 %v2541, %v1041
        %v2550 = vmul.f32 %v2542, %v1041
        %v2551 = vadd.f32 %v2543, %v1052
        %v2552 = vadd.f32 %v2544, %v1052
        %v2553 = vadd.f32 %v2545, %v1052
        %v2554 = vadd.f32 %v2546, %v1052
        %v2555 = vadd.f32 %v2547, %v1052
        %v2556 = vadd.f32 %v2548, %v1052
        %v2557 = vadd.f32 %v2549, %v1052
        %v2558 = vadd.f32 %v2550, %v1052
        %2559 = vrot.lane.b32.xlu0 %v462, 32
        %v2560 = vpop.permute.xlu0 %2559
        %2561 = vrot.lane.b32.xlu0 %v468, 32
        %v2562 = vpop.permute.xlu0 %2561
        %2563 = vrot.lane.b32.xlu0 %v474, 32
        %v2564 = vpop.permute.xlu0 %2563
        %2565 = vrot.lane.b32.xlu0 %v480, 32
        %v2566 = vpop.permute.xlu0 %2565
        %2567 = vrot.lane.b32.xlu0 %v486, 32
        %v2568 = vpop.permute.xlu0 %2567
        %2569 = vrot.lane.b32.xlu0 %v492, 32
        %v2570 = vpop.permute.xlu0 %2569
        %2571 = vrot.lane.b32.xlu0 %v498, 32
        %v2572 = vpop.permute.xlu0 %2571
        %2573 = vrot.lane.b32.xlu0 %v504, 32
        %v2574 = vpop.permute.xlu0 %2573
        %v2583 = vsel %vm257, %v2560, 0.0
        %2584 = vadd.xlane.f32.xlu0 %v2583
        %v2585 = vpop.xlane.xlu0 %2584
        %v2586 = vsel %vm257, %v2562, 0.0
        %2587 = vadd.xlane.f32.xlu0 %v2586
        %v2588 = vpop.xlane.xlu0 %2587
        %v2589 = vsel %vm257, %v2564, 0.0
        %2590 = vadd.xlane.f32.xlu0 %v2589
        %v2591 = vpop.xlane.xlu0 %2590
        %v2592 = vsel %vm257, %v2566, 0.0
        %2593 = vadd.xlane.f32.xlu0 %v2592
        %v2594 = vpop.xlane.xlu0 %2593
        %v2595 = vsel %vm257, %v2568, 0.0
        %2596 = vadd.xlane.f32.xlu0 %v2595
        %v2597 = vpop.xlane.xlu0 %2596
        %v2598 = vsel %vm257, %v2570, 0.0
        %2599 = vadd.xlane.f32.xlu0 %v2598
        %v2600 = vpop.xlane.xlu0 %2599
        %v2601 = vsel %vm257, %v2572, 0.0
        %2602 = vadd.xlane.f32.xlu0 %v2601
        %v2603 = vpop.xlane.xlu0 %2602
        %v2604 = vsel %vm257, %v2574, 0.0
        %2605 = vadd.xlane.f32.xlu0 %v2604
        %v2606 = vpop.xlane.xlu0 %2605
        %v2607 = vmul.f32 %v2585, 0.03125
        %v2608 = vmul.f32 %v2588, 0.03125
        %v2609 = vmul.f32 %v2591, 0.03125
        %v2610 = vmul.f32 %v2594, 0.03125
        %v2611 = vmul.f32 %v2597, 0.03125
        %v2612 = vmul.f32 %v2600, 0.03125
        %v2613 = vmul.f32 %v2603, 0.03125
        %v2614 = vmul.f32 %v2606, 0.03125
        %2615 = vrot.lane.b32.xlu0 %v2063, 32
        %v2616 = vpop.permute.xlu0 %2615
        %2617 = vrot.lane.b32.xlu0 %v2064, 32
        %v2618 = vpop.permute.xlu0 %2617
        %2619 = vrot.lane.b32.xlu0 %v2065, 32
        %v2620 = vpop.permute.xlu0 %2619
        %2621 = vrot.lane.b32.xlu0 %v2066, 32
        %v2622 = vpop.permute.xlu0 %2621
        %2623 = vrot.lane.b32.xlu0 %v2067, 32
        %v2624 = vpop.permute.xlu0 %2623
        %2625 = vrot.lane.b32.xlu0 %v2068, 32
        %v2626 = vpop.permute.xlu0 %2625
        %2627 = vrot.lane.b32.xlu0 %v2069, 32
        %v2628 = vpop.permute.xlu0 %2627
        %2629 = vrot.lane.b32.xlu0 %v2070, 32
        %v2630 = vpop.permute.xlu0 %2629
        %v2639 = vsel %vm257, %v2616, 0.0
        %2640 = vadd.xlane.f32.xlu0 %v2639
        %v2641 = vpop.xlane.xlu0 %2640
        %v2642 = vsel %vm257, %v2618, 0.0
        %2643 = vadd.xlane.f32.xlu0 %v2642
        %v2644 = vpop.xlane.xlu0 %2643
        %v2645 = vsel %vm257, %v2620, 0.0
        %2646 = vadd.xlane.f32.xlu0 %v2645
        %v2647 = vpop.xlane.xlu0 %2646
        %v2648 = vsel %vm257, %v2622, 0.0
        %2649 = vadd.xlane.f32.xlu0 %v2648
        %v2650 = vpop.xlane.xlu0 %2649
        %v2651 = vsel %vm257, %v2624, 0.0
        %2652 = vadd.xlane.f32.xlu0 %v2651
        %v2653 = vpop.xlane.xlu0 %2652
        %v2654 = vsel %vm257, %v2626, 0.0
        %2655 = vadd.xlane.f32.xlu0 %v2654
        %v2656 = vpop.xlane.xlu0 %2655
        %v2657 = vsel %vm257, %v2628, 0.0
        %2658 = vadd.xlane.f32.xlu0 %v2657
        %v2659 = vpop.xlane.xlu0 %2658
        %v2660 = vsel %vm257, %v2630, 0.0
        %2661 = vadd.xlane.f32.xlu0 %v2660
        %v2662 = vpop.xlane.xlu0 %2661
        %v2663 = vmul.f32 %v2641, 0.03125
        %v2664 = vmul.f32 %v2644, 0.03125
        %v2665 = vmul.f32 %v2647, 0.03125
        %v2666 = vmul.f32 %v2650, 0.03125
        %v2667 = vmul.f32 %v2653, 0.03125
        %v2668 = vmul.f32 %v2656, 0.03125
        %v2669 = vmul.f32 %v2659, 0.03125
        %v2670 = vmul.f32 %v2662, 0.03125
        %v2671 = vmul.f32 %v2607, %v2607
        %v2672 = vmul.f32 %v2608, %v2608
        %v2673 = vmul.f32 %v2609, %v2609
        %v2674 = vmul.f32 %v2610, %v2610
        %v2675 = vmul.f32 %v2611, %v2611
        %v2676 = vmul.f32 %v2612, %v2612
        %v2677 = vmul.f32 %v2613, %v2613
        %v2678 = vmul.f32 %v2614, %v2614
        %v2679 = vsub.f32 %v2663, %v2671
        %v2680 = vsub.f32 %v2664, %v2672
        %v2681 = vsub.f32 %v2665, %v2673
        %v2682 = vsub.f32 %v2666, %v2674
        %v2683 = vsub.f32 %v2667, %v2675
        %v2684 = vsub.f32 %v2668, %v2676
        %v2685 = vsub.f32 %v2669, %v2677
        %v2686 = vsub.f32 %v2670, %v2678
        %v2687 = vmax.f32 %v2679, 0.0
        %v2688 = vmax.f32 %v2680, 0.0
        %v2689 = vmax.f32 %v2681, 0.0
        %v2690 = vmax.f32 %v2682, 0.0
        %v2691 = vmax.f32 %v2683, 0.0
        %v2692 = vmax.f32 %v2684, 0.0
        %v2693 = vmax.f32 %v2685, 0.0
        %v2694 = vmax.f32 %v2686, 0.0
        %v2695 = vsub.f32 %v462, %v2607
        %v2696 = vsub.f32 %v468, %v2608
        %v2697 = vsub.f32 %v474, %v2609
        %v2698 = vsub.f32 %v480, %v2610
        %v2699 = vsub.f32 %v486, %v2611
        %v2700 = vsub.f32 %v492, %v2612
        %v2701 = vsub.f32 %v498, %v2613
        %v2702 = vsub.f32 %v504, %v2614
        %v2703 = vadd.f32 %v2687, 1e-05
        %v2704 = vadd.f32 %v2688, 1e-05
        %v2705 = vadd.f32 %v2689, 1e-05
        %v2706 = vadd.f32 %v2690, 1e-05
        %v2707 = vadd.f32 %v2691, 1e-05
        %v2708 = vadd.f32 %v2692, 1e-05
        %v2709 = vadd.f32 %v2693, 1e-05
        %v2710 = vadd.f32 %v2694, 1e-05
        %v2711 = vrsqrt.pop %v2703
        %v2712 = vrsqrt.pop %v2704
        %v2713 = vrsqrt.pop %v2705
        %v2714 = vrsqrt.pop %v2706
        %v2715 = vrsqrt.pop %v2707
        %v2716 = vrsqrt.pop %v2708
        %v2717 = vrsqrt.pop %v2709
        %v2718 = vrsqrt.pop %v2710
        %v2719 = vmul.f32 %v2695, %v2711
        %v2720 = vmul.f32 %v2696, %v2712
        %v2721 = vmul.f32 %v2697, %v2713
        %v2722 = vmul.f32 %v2698, %v2714
        %v2723 = vmul.f32 %v2699, %v2715
        %v2724 = vmul.f32 %v2700, %v2716
        %v2725 = vmul.f32 %v2701, %v2717
        %v2726 = vmul.f32 %v2702, %v2718
        %v2727 = vmul.f32 %v2719, %v1231
        %v2728 = vmul.f32 %v2720, %v1231
        %v2729 = vmul.f32 %v2721, %v1231
        %v2730 = vmul.f32 %v2722, %v1231
        %v2731 = vmul.f32 %v2723, %v1231
        %v2732 = vmul.f32 %v2724, %v1231
        %v2733 = vmul.f32 %v2725, %v1231
        %v2734 = vmul.f32 %v2726, %v1231
        %v2735 = vadd.f32 %v2727, %v1242
        %v2736 = vadd.f32 %v2728, %v1242
        %v2737 = vadd.f32 %v2729, %v1242
        %v2738 = vadd.f32 %v2730, %v1242
        %v2739 = vadd.f32 %v2731, %v1242
        %v2740 = vadd.f32 %v2732, %v1242
        %v2741 = vadd.f32 %v2733, %v1242
        %v2742 = vadd.f32 %v2734, %v1242
        %v2743 = vsel %vm257, %v2167, %v2367
        %v2744 = vsel %vm257, %v2168, %v2368
        %v2745 = vsel %vm257, %v2169, %v2369
        %v2746 = vsel %vm257, %v2170, %v2370
        %v2747 = vsel %vm257, %v2171, %v2371
        %v2748 = vsel %vm257, %v2172, %v2372
        %v2749 = vsel %vm257, %v2173, %v2373
        %v2750 = vsel %vm257, %v2174, %v2374
        %v2751 = vsel %vm1260, %v2743, %v2551
        %v2752 = vsel %vm1260, %v2744, %v2552
        %v2753 = vsel %vm1260, %v2745, %v2553
        %v2754 = vsel %vm1260, %v2746, %v2554
        %v2755 = vsel %vm1260, %v2747, %v2555
        %v2756 = vsel %vm1260, %v2748, %v2556
        %v2757 = vsel %vm1260, %v2749, %v2557
        %v2758 = vsel %vm1260, %v2750, %v2558
        %v2759 = vsel %vm1269, %v2751, %v2735
        %v2760 = vsel %vm1269, %v2752, %v2736
        %v2761 = vsel %vm1269, %v2753, %v2737
        %v2762 = vsel %vm1269, %v2754, %v2738
        %v2763 = vsel %vm1269, %v2755, %v2739
        %v2764 = vsel %vm1269, %v2756, %v2740
        %v2765 = vsel %vm1269, %v2757, %v2741
        %v2766 = vsel %vm1269, %v2758, %v2742
        %s2767 = scalar_lea.vmem %s230, 16 [#allocation7]
        %2768 = vst [vmem:[%s2767] sm:$0xff] %v2759
        %2769 = vst [vmem:[%s2767 + $0x20] sm:$0xff] %v2760
        %2770 = vst [vmem:[%s2767 + $0x40] sm:$0xff] %v2761
        %2771 = vst [vmem:[%s2767 + $0x60] sm:$0xff] %v2762
        %2772 = vst [vmem:[%s2767 + $0x80] sm:$0xff] %v2763
        %2773 = vst [vmem:[%s2767 + $0xa0] sm:$0xff] %v2764
        %2774 = vst [vmem:[%s2767 + $0xc0] sm:$0xff] %v2765
        %2775 = vst [vmem:[%s2767 + $0xe0] sm:$0xff] %v2766
        %v2776 = vsel %vm257, %v464, 0.0
        %2777 = vadd.xlane.f32.xlu0 %v2776
        %v2778 = vpop.xlane.xlu0 %2777
        %v2779 = vsel %vm257, %v470, 0.0
        %2780 = vadd.xlane.f32.xlu0 %v2779
        %v2781 = vpop.xlane.xlu0 %2780
        %v2782 = vsel %vm257, %v476, 0.0
        %2783 = vadd.xlane.f32.xlu0 %v2782
        %v2784 = vpop.xlane.xlu0 %2783
        %v2785 = vsel %vm257, %v482, 0.0
        %2786 = vadd.xlane.f32.xlu0 %v2785
        %v2787 = vpop.xlane.xlu0 %2786
        %v2788 = vsel %vm257, %v488, 0.0
        %2789 = vadd.xlane.f32.xlu0 %v2788
        %v2790 = vpop.xlane.xlu0 %2789
        %v2791 = vsel %vm257, %v494, 0.0
        %2792 = vadd.xlane.f32.xlu0 %v2791
        %v2793 = vpop.xlane.xlu0 %2792
        %v2794 = vsel %vm257, %v500, 0.0
        %2795 = vadd.xlane.f32.xlu0 %v2794
        %v2796 = vpop.xlane.xlu0 %2795
        %v2797 = vsel %vm257, %v506, 0.0
        %2798 = vadd.xlane.f32.xlu0 %v2797
        %v2799 = vpop.xlane.xlu0 %2798
        %v2800 = vmul.f32 %v2778, 0.03125
        %v2801 = vmul.f32 %v2781, 0.03125
        %v2802 = vmul.f32 %v2784, 0.03125
        %v2803 = vmul.f32 %v2787, 0.03125
        %v2804 = vmul.f32 %v2790, 0.03125
        %v2805 = vmul.f32 %v2793, 0.03125
        %v2806 = vmul.f32 %v2796, 0.03125
        %v2807 = vmul.f32 %v2799, 0.03125
        %v2808 = vmul.f32 %v464, %v464
        %v2809 = vmul.f32 %v470, %v470
        %v2810 = vmul.f32 %v476, %v476
        %v2811 = vmul.f32 %v482, %v482
        %v2812 = vmul.f32 %v488, %v488
        %v2813 = vmul.f32 %v494, %v494
        %v2814 = vmul.f32 %v500, %v500
        %v2815 = vmul.f32 %v506, %v506
        %v2816 = vsel %vm257, %v2808, 0.0
        %2817 = vadd.xlane.f32.xlu0 %v2816
        %v2818 = vpop.xlane.xlu0 %2817
        %v2819 = vsel %vm257, %v2809, 0.0
        %2820 = vadd.xlane.f32.xlu0 %v2819
        %v2821 = vpop.xlane.xlu0 %2820
        %v2822 = vsel %vm257, %v2810, 0.0
        %2823 = vadd.xlane.f32.xlu0 %v2822
        %v2824 = vpop.xlane.xlu0 %2823
        %v2825 = vsel %vm257, %v2811, 0.0
        %2826 = vadd.xlane.f32.xlu0 %v2825
        %v2827 = vpop.xlane.xlu0 %2826
        %v2828 = vsel %vm257, %v2812, 0.0
        %2829 = vadd.xlane.f32.xlu0 %v2828
        %v2830 = vpop.xlane.xlu0 %2829
        %v2831 = vsel %vm257, %v2813, 0.0
        %2832 = vadd.xlane.f32.xlu0 %v2831
        %v2833 = vpop.xlane.xlu0 %2832
        %v2834 = vsel %vm257, %v2814, 0.0
        %2835 = vadd.xlane.f32.xlu0 %v2834
        %v2836 = vpop.xlane.xlu0 %2835
        %v2837 = vsel %vm257, %v2815, 0.0
        %2838 = vadd.xlane.f32.xlu0 %v2837
        %v2839 = vpop.xlane.xlu0 %2838
        %v2840 = vmul.f32 %v2818, 0.03125
        %v2841 = vmul.f32 %v2821, 0.03125
        %v2842 = vmul.f32 %v2824, 0.03125
        %v2843 = vmul.f32 %v2827, 0.03125
        %v2844 = vmul.f32 %v2830, 0.03125
        %v2845 = vmul.f32 %v2833, 0.03125
        %v2846 = vmul.f32 %v2836, 0.03125
        %v2847 = vmul.f32 %v2839, 0.03125
        %v2848 = vmul.f32 %v2800, %v2800
        %v2849 = vmul.f32 %v2801, %v2801
        %v2850 = vmul.f32 %v2802, %v2802
        %v2851 = vmul.f32 %v2803, %v2803
        %v2852 = vmul.f32 %v2804, %v2804
        %v2853 = vmul.f32 %v2805, %v2805
        %v2854 = vmul.f32 %v2806, %v2806
        %v2855 = vmul.f32 %v2807, %v2807
        %v2856 = vsub.f32 %v2840, %v2848
        %v2857 = vsub.f32 %v2841, %v2849
        %v2858 = vsub.f32 %v2842, %v2850
        %v2859 = vsub.f32 %v2843, %v2851
        %v2860 = vsub.f32 %v2844, %v2852
        %v2861 = vsub.f32 %v2845, %v2853
        %v2862 = vsub.f32 %v2846, %v2854
        %v2863 = vsub.f32 %v2847, %v2855
        %v2864 = vmax.f32 %v2856, 0.0
        %v2865 = vmax.f32 %v2857, 0.0
        %v2866 = vmax.f32 %v2858, 0.0
        %v2867 = vmax.f32 %v2859, 0.0
        %v2868 = vmax.f32 %v2860, 0.0
        %v2869 = vmax.f32 %v2861, 0.0
        %v2870 = vmax.f32 %v2862, 0.0
        %v2871 = vmax.f32 %v2863, 0.0
        %v2872 = vsub.f32 %v464, %v2800
        %v2873 = vsub.f32 %v470, %v2801
        %v2874 = vsub.f32 %v476, %v2802
        %v2875 = vsub.f32 %v482, %v2803
        %v2876 = vsub.f32 %v488, %v2804
        %v2877 = vsub.f32 %v494, %v2805
        %v2878 = vsub.f32 %v500, %v2806
        %v2879 = vsub.f32 %v506, %v2807
        %v2880 = vadd.f32 %v2864, 1e-05
        %v2881 = vadd.f32 %v2865, 1e-05
        %v2882 = vadd.f32 %v2866, 1e-05
        %v2883 = vadd.f32 %v2867, 1e-05
        %v2884 = vadd.f32 %v2868, 1e-05
        %v2885 = vadd.f32 %v2869, 1e-05
        %v2886 = vadd.f32 %v2870, 1e-05
        %v2887 = vadd.f32 %v2871, 1e-05
        %v2888 = vrsqrt.pop %v2880
        %v2889 = vrsqrt.pop %v2881
        %v2890 = vrsqrt.pop %v2882
        %v2891 = vrsqrt.pop %v2883
        %v2892 = vrsqrt.pop %v2884
        %v2893 = vrsqrt.pop %v2885
        %v2894 = vrsqrt.pop %v2886
        %v2895 = vrsqrt.pop %v2887
        %v2896 = vmul.f32 %v2872, %v2888
        %v2897 = vmul.f32 %v2873, %v2889
        %v2898 = vmul.f32 %v2874, %v2890
        %v2899 = vmul.f32 %v2875, %v2891
        %v2900 = vmul.f32 %v2876, %v2892
        %v2901 = vmul.f32 %v2877, %v2893
        %v2902 = vmul.f32 %v2878, %v2894
        %v2903 = vmul.f32 %v2879, %v2895
        %v2904 = vmul.f32 %v2896, %v642
        %v2905 = vmul.f32 %v2897, %v642
        %v2906 = vmul.f32 %v2898, %v642
        %v2907 = vmul.f32 %v2899, %v642
        %v2908 = vmul.f32 %v2900, %v642
        %v2909 = vmul.f32 %v2901, %v642
        %v2910 = vmul.f32 %v2902, %v642
        %v2911 = vmul.f32 %v2903, %v642
        %v2912 = vadd.f32 %v2904, %v656
        %v2913 = vadd.f32 %v2905, %v656
        %v2914 = vadd.f32 %v2906, %v656
        %v2915 = vadd.f32 %v2907, %v656
        %v2916 = vadd.f32 %v2908, %v656
        %v2917 = vadd.f32 %v2909, %v656
        %v2918 = vadd.f32 %v2910, %v656
        %v2919 = vadd.f32 %v2911, %v656
        %2928 = vrot.lane.b32.xlu0 %v464, 96
        %v2929 = vpop.permute.xlu0 %2928
        %2930 = vrot.lane.b32.xlu0 %v470, 96
        %v2931 = vpop.permute.xlu0 %2930
        %2932 = vrot.lane.b32.xlu0 %v476, 96
        %v2933 = vpop.permute.xlu0 %2932
        %2934 = vrot.lane.b32.xlu0 %v482, 96
        %v2935 = vpop.permute.xlu0 %2934
        %2936 = vrot.lane.b32.xlu0 %v488, 96
        %v2937 = vpop.permute.xlu0 %2936
        %2938 = vrot.lane.b32.xlu0 %v494, 96
        %v2939 = vpop.permute.xlu0 %2938
        %2940 = vrot.lane.b32.xlu0 %v500, 96
        %v2941 = vpop.permute.xlu0 %2940
        %2942 = vrot.lane.b32.xlu0 %v506, 96
        %v2943 = vpop.permute.xlu0 %2942
        %v2952 = vsel %vm257, %v2929, 0.0
        %2953 = vadd.xlane.f32.xlu0 %v2952
        %v2954 = vpop.xlane.xlu0 %2953
        %v2955 = vsel %vm257, %v2931, 0.0
        %2956 = vadd.xlane.f32.xlu0 %v2955
        %v2957 = vpop.xlane.xlu0 %2956
        %v2958 = vsel %vm257, %v2933, 0.0
        %2959 = vadd.xlane.f32.xlu0 %v2958
        %v2960 = vpop.xlane.xlu0 %2959
        %v2961 = vsel %vm257, %v2935, 0.0
        %2962 = vadd.xlane.f32.xlu0 %v2961
        %v2963 = vpop.xlane.xlu0 %2962
        %v2964 = vsel %vm257, %v2937, 0.0
        %2965 = vadd.xlane.f32.xlu0 %v2964
        %v2966 = vpop.xlane.xlu0 %2965
        %v2967 = vsel %vm257, %v2939, 0.0
        %2968 = vadd.xlane.f32.xlu0 %v2967
        %v2969 = vpop.xlane.xlu0 %2968
        %v2970 = vsel %vm257, %v2941, 0.0
        %2971 = vadd.xlane.f32.xlu0 %v2970
        %v2972 = vpop.xlane.xlu0 %2971
        %v2973 = vsel %vm257, %v2943, 0.0
        %2974 = vadd.xlane.f32.xlu0 %v2973
        %v2975 = vpop.xlane.xlu0 %2974
        %v2976 = vmul.f32 %v2954, 0.03125
        %v2977 = vmul.f32 %v2957, 0.03125
        %v2978 = vmul.f32 %v2960, 0.03125
        %v2979 = vmul.f32 %v2963, 0.03125
        %v2980 = vmul.f32 %v2966, 0.03125
        %v2981 = vmul.f32 %v2969, 0.03125
        %v2982 = vmul.f32 %v2972, 0.03125
        %v2983 = vmul.f32 %v2975, 0.03125
        %2992 = vrot.lane.b32.xlu0 %v2808, 96
        %v2993 = vpop.permute.xlu0 %2992
        %2994 = vrot.lane.b32.xlu0 %v2809, 96
        %v2995 = vpop.permute.xlu0 %2994
        %2996 = vrot.lane.b32.xlu0 %v2810, 96
        %v2997 = vpop.permute.xlu0 %2996
        %2998 = vrot.lane.b32.xlu0 %v2811, 96
        %v2999 = vpop.permute.xlu0 %2998
        %3000 = vrot.lane.b32.xlu0 %v2812, 96
        %v3001 = vpop.permute.xlu0 %3000
        %3002 = vrot.lane.b32.xlu0 %v2813, 96
        %v3003 = vpop.permute.xlu0 %3002
        %3004 = vrot.lane.b32.xlu0 %v2814, 96
        %v3005 = vpop.permute.xlu0 %3004
        %3006 = vrot.lane.b32.xlu0 %v2815, 96
        %v3007 = vpop.permute.xlu0 %3006
        %v3016 = vsel %vm257, %v2993, 0.0
        %3017 = vadd.xlane.f32.xlu0 %v3016
        %v3018 = vpop.xlane.xlu0 %3017
        %v3019 = vsel %vm257, %v2995, 0.0
        %3020 = vadd.xlane.f32.xlu0 %v3019
        %v3021 = vpop.xlane.xlu0 %3020
        %v3022 = vsel %vm257, %v2997, 0.0
        %3023 = vadd.xlane.f32.xlu0 %v3022
        %v3024 = vpop.xlane.xlu0 %3023
        %v3025 = vsel %vm257, %v2999, 0.0
        %3026 = vadd.xlane.f32.xlu0 %v3025
        %v3027 = vpop.xlane.xlu0 %3026
        %v3028 = vsel %vm257, %v3001, 0.0
        %3029 = vadd.xlane.f32.xlu0 %v3028
        %v3030 = vpop.xlane.xlu0 %3029
        %v3031 = vsel %vm257, %v3003, 0.0
        %3032 = vadd.xlane.f32.xlu0 %v3031
        %v3033 = vpop.xlane.xlu0 %3032
        %v3034 = vsel %vm257, %v3005, 0.0
        %3035 = vadd.xlane.f32.xlu0 %v3034
        %v3036 = vpop.xlane.xlu0 %3035
        %v3037 = vsel %vm257, %v3007, 0.0
        %3038 = vadd.xlane.f32.xlu0 %v3037
        %v3039 = vpop.xlane.xlu0 %3038
        %v3040 = vmul.f32 %v3018, 0.03125
        %v3041 = vmul.f32 %v3021, 0.03125
        %v3042 = vmul.f32 %v3024, 0.03125
        %v3043 = vmul.f32 %v3027, 0.03125
        %v3044 = vmul.f32 %v3030, 0.03125
        %v3045 = vmul.f32 %v3033, 0.03125
        %v3046 = vmul.f32 %v3036, 0.03125
        %v3047 = vmul.f32 %v3039, 0.03125
        %v3048 = vmul.f32 %v2976, %v2976
        %v3049 = vmul.f32 %v2977, %v2977
        %v3050 = vmul.f32 %v2978, %v2978
        %v3051 = vmul.f32 %v2979, %v2979
        %v3052 = vmul.f32 %v2980, %v2980
        %v3053 = vmul.f32 %v2981, %v2981
        %v3054 = vmul.f32 %v2982, %v2982
        %v3055 = vmul.f32 %v2983, %v2983
        %v3056 = vsub.f32 %v3040, %v3048
        %v3057 = vsub.f32 %v3041, %v3049
        %v3058 = vsub.f32 %v3042, %v3050
        %v3059 = vsub.f32 %v3043, %v3051
        %v3060 = vsub.f32 %v3044, %v3052
        %v3061 = vsub.f32 %v3045, %v3053
        %v3062 = vsub.f32 %v3046, %v3054
        %v3063 = vsub.f32 %v3047, %v3055
        %v3064 = vmax.f32 %v3056, 0.0
        %v3065 = vmax.f32 %v3057, 0.0
        %v3066 = vmax.f32 %v3058, 0.0
        %v3067 = vmax.f32 %v3059, 0.0
        %v3068 = vmax.f32 %v3060, 0.0
        %v3069 = vmax.f32 %v3061, 0.0
        %v3070 = vmax.f32 %v3062, 0.0
        %v3071 = vmax.f32 %v3063, 0.0
        %v3072 = vsub.f32 %v464, %v2976
        %v3073 = vsub.f32 %v470, %v2977
        %v3074 = vsub.f32 %v476, %v2978
        %v3075 = vsub.f32 %v482, %v2979
        %v3076 = vsub.f32 %v488, %v2980
        %v3077 = vsub.f32 %v494, %v2981
        %v3078 = vsub.f32 %v500, %v2982
        %v3079 = vsub.f32 %v506, %v2983
        %v3080 = vadd.f32 %v3064, 1e-05
        %v3081 = vadd.f32 %v3065, 1e-05
        %v3082 = vadd.f32 %v3066, 1e-05
        %v3083 = vadd.f32 %v3067, 1e-05
        %v3084 = vadd.f32 %v3068, 1e-05
        %v3085 = vadd.f32 %v3069, 1e-05
        %v3086 = vadd.f32 %v3070, 1e-05
        %v3087 = vadd.f32 %v3071, 1e-05
        %v3088 = vrsqrt.pop %v3080
        %v3089 = vrsqrt.pop %v3081
        %v3090 = vrsqrt.pop %v3082
        %v3091 = vrsqrt.pop %v3083
        %v3092 = vrsqrt.pop %v3084
        %v3093 = vrsqrt.pop %v3085
        %v3094 = vrsqrt.pop %v3086
        %v3095 = vrsqrt.pop %v3087
        %v3096 = vmul.f32 %v3072, %v3088
        %v3097 = vmul.f32 %v3073, %v3089
        %v3098 = vmul.f32 %v3074, %v3090
        %v3099 = vmul.f32 %v3075, %v3091
        %v3100 = vmul.f32 %v3076, %v3092
        %v3101 = vmul.f32 %v3077, %v3093
        %v3102 = vmul.f32 %v3078, %v3094
        %v3103 = vmul.f32 %v3079, %v3095
        %v3104 = vmul.f32 %v3096, %v851
        %v3105 = vmul.f32 %v3097, %v851
        %v3106 = vmul.f32 %v3098, %v851
        %v3107 = vmul.f32 %v3099, %v851
        %v3108 = vmul.f32 %v3100, %v851
        %v3109 = vmul.f32 %v3101, %v851
        %v3110 = vmul.f32 %v3102, %v851
        %v3111 = vmul.f32 %v3103, %v851
        %v3112 = vadd.f32 %v3104, %v862
        %v3113 = vadd.f32 %v3105, %v862
        %v3114 = vadd.f32 %v3106, %v862
        %v3115 = vadd.f32 %v3107, %v862
        %v3116 = vadd.f32 %v3108, %v862
        %v3117 = vadd.f32 %v3109, %v862
        %v3118 = vadd.f32 %v3110, %v862
        %v3119 = vadd.f32 %v3111, %v862
        %3120 = vrot.lane.b32.xlu0 %v464, 64
        %v3121 = vpop.permute.xlu0 %3120
        %3122 = vrot.lane.b32.xlu0 %v470, 64
        %v3123 = vpop.permute.xlu0 %3122
        %3124 = vrot.lane.b32.xlu0 %v476, 64
        %v3125 = vpop.permute.xlu0 %3124
        %3126 = vrot.lane.b32.xlu0 %v482, 64
        %v3127 = vpop.permute.xlu0 %3126
        %3128 = vrot.lane.b32.xlu0 %v488, 64
        %v3129 = vpop.permute.xlu0 %3128
        %3130 = vrot.lane.b32.xlu0 %v494, 64
        %v3131 = vpop.permute.xlu0 %3130
        %3132 = vrot.lane.b32.xlu0 %v500, 64
        %v3133 = vpop.permute.xlu0 %3132
        %3134 = vrot.lane.b32.xlu0 %v506, 64
        %v3135 = vpop.permute.xlu0 %3134
        %v3144 = vsel %vm257, %v3121, 0.0
        %3145 = vadd.xlane.f32.xlu0 %v3144
        %v3146 = vpop.xlane.xlu0 %3145
        %v3147 = vsel %vm257, %v3123, 0.0
        %3148 = vadd.xlane.f32.xlu0 %v3147
        %v3149 = vpop.xlane.xlu0 %3148
        %v3150 = vsel %vm257, %v3125, 0.0
        %3151 = vadd.xlane.f32.xlu0 %v3150
        %v3152 = vpop.xlane.xlu0 %3151
        %v3153 = vsel %vm257, %v3127, 0.0
        %3154 = vadd.xlane.f32.xlu0 %v3153
        %v3155 = vpop.xlane.xlu0 %3154
        %v3156 = vsel %vm257, %v3129, 0.0
        %3157 = vadd.xlane.f32.xlu0 %v3156
        %v3158 = vpop.xlane.xlu0 %3157
        %v3159 = vsel %vm257, %v3131, 0.0
        %3160 = vadd.xlane.f32.xlu0 %v3159
        %v3161 = vpop.xlane.xlu0 %3160
        %v3162 = vsel %vm257, %v3133, 0.0
        %3163 = vadd.xlane.f32.xlu0 %v3162
        %v3164 = vpop.xlane.xlu0 %3163
        %v3165 = vsel %vm257, %v3135, 0.0
        %3166 = vadd.xlane.f32.xlu0 %v3165
        %v3167 = vpop.xlane.xlu0 %3166
        %v3168 = vmul.f32 %v3146, 0.03125
        %v3169 = vmul.f32 %v3149, 0.03125
        %v3170 = vmul.f32 %v3152, 0.03125
        %v3171 = vmul.f32 %v3155, 0.03125
        %v3172 = vmul.f32 %v3158, 0.03125
        %v3173 = vmul.f32 %v3161, 0.03125
        %v3174 = vmul.f32 %v3164, 0.03125
        %v3175 = vmul.f32 %v3167, 0.03125
        %3176 = vrot.lane.b32.xlu0 %v2808, 64
        %v3177 = vpop.permute.xlu0 %3176
        %3178 = vrot.lane.b32.xlu0 %v2809, 64
        %v3179 = vpop.permute.xlu0 %3178
        %3180 = vrot.lane.b32.xlu0 %v2810, 64
        %v3181 = vpop.permute.xlu0 %3180
        %3182 = vrot.lane.b32.xlu0 %v2811, 64
        %v3183 = vpop.permute.xlu0 %3182
        %3184 = vrot.lane.b32.xlu0 %v2812, 64
        %v3185 = vpop.permute.xlu0 %3184
        %3186 = vrot.lane.b32.xlu0 %v2813, 64
        %v3187 = vpop.permute.xlu0 %3186
        %3188 = vrot.lane.b32.xlu0 %v2814, 64
        %v3189 = vpop.permute.xlu0 %3188
        %3190 = vrot.lane.b32.xlu0 %v2815, 64
        %v3191 = vpop.permute.xlu0 %3190
        %v3200 = vsel %vm257, %v3177, 0.0
        %3201 = vadd.xlane.f32.xlu0 %v3200
        %v3202 = vpop.xlane.xlu0 %3201
        %v3203 = vsel %vm257, %v3179, 0.0
        %3204 = vadd.xlane.f32.xlu0 %v3203
        %v3205 = vpop.xlane.xlu0 %3204
        %v3206 = vsel %vm257, %v3181, 0.0
        %3207 = vadd.xlane.f32.xlu0 %v3206
        %v3208 = vpop.xlane.xlu0 %3207
        %v3209 = vsel %vm257, %v3183, 0.0
        %3210 = vadd.xlane.f32.xlu0 %v3209
        %v3211 = vpop.xlane.xlu0 %3210
        %v3212 = vsel %vm257, %v3185, 0.0
        %3213 = vadd.xlane.f32.xlu0 %v3212
        %v3214 = vpop.xlane.xlu0 %3213
        %v3215 = vsel %vm257, %v3187, 0.0
        %3216 = vadd.xlane.f32.xlu0 %v3215
        %v3217 = vpop.xlane.xlu0 %3216
        %v3218 = vsel %vm257, %v3189, 0.0
        %3219 = vadd.xlane.f32.xlu0 %v3218
        %v3220 = vpop.xlane.xlu0 %3219
        %v3221 = vsel %vm257, %v3191, 0.0
        %3222 = vadd.xlane.f32.xlu0 %v3221
        %v3223 = vpop.xlane.xlu0 %3222
        %v3224 = vmul.f32 %v3202, 0.03125
        %v3225 = vmul.f32 %v3205, 0.03125
        %v3226 = vmul.f32 %v3208, 0.03125
        %v3227 = vmul.f32 %v3211, 0.03125
        %v3228 = vmul.f32 %v3214, 0.03125
        %v3229 = vmul.f32 %v3217, 0.03125
        %v3230 = vmul.f32 %v3220, 0.03125
        %v3231 = vmul.f32 %v3223, 0.03125
        %v3232 = vmul.f32 %v3168, %v3168
        %v3233 = vmul.f32 %v3169, %v3169
        %v3234 = vmul.f32 %v3170, %v3170
        %v3235 = vmul.f32 %v3171, %v3171
        %v3236 = vmul.f32 %v3172, %v3172
        %v3237 = vmul.f32 %v3173, %v3173
        %v3238 = vmul.f32 %v3174, %v3174
        %v3239 = vmul.f32 %v3175, %v3175
        %v3240 = vsub.f32 %v3224, %v3232
        %v3241 = vsub.f32 %v3225, %v3233
        %v3242 = vsub.f32 %v3226, %v3234
        %v3243 = vsub.f32 %v3227, %v3235
        %v3244 = vsub.f32 %v3228, %v3236
        %v3245 = vsub.f32 %v3229, %v3237
        %v3246 = vsub.f32 %v3230, %v3238
        %v3247 = vsub.f32 %v3231, %v3239
        %v3248 = vmax.f32 %v3240, 0.0
        %v3249 = vmax.f32 %v3241, 0.0
        %v3250 = vmax.f32 %v3242, 0.0
        %v3251 = vmax.f32 %v3243, 0.0
        %v3252 = vmax.f32 %v3244, 0.0
        %v3253 = vmax.f32 %v3245, 0.0
        %v3254 = vmax.f32 %v3246, 0.0
        %v3255 = vmax.f32 %v3247, 0.0
        %v3256 = vsub.f32 %v464, %v3168
        %v3257 = vsub.f32 %v470, %v3169
        %v3258 = vsub.f32 %v476, %v3170
        %v3259 = vsub.f32 %v482, %v3171
        %v3260 = vsub.f32 %v488, %v3172
        %v3261 = vsub.f32 %v494, %v3173
        %v3262 = vsub.f32 %v500, %v3174
        %v3263 = vsub.f32 %v506, %v3175
        %v3264 = vadd.f32 %v3248, 1e-05
        %v3265 = vadd.f32 %v3249, 1e-05
        %v3266 = vadd.f32 %v3250, 1e-05
        %v3267 = vadd.f32 %v3251, 1e-05
        %v3268 = vadd.f32 %v3252, 1e-05
        %v3269 = vadd.f32 %v3253, 1e-05
        %v3270 = vadd.f32 %v3254, 1e-05
        %v3271 = vadd.f32 %v3255, 1e-05
        %v3272 = vrsqrt.pop %v3264
        %v3273 = vrsqrt.pop %v3265
        %v3274 = vrsqrt.pop %v3266
        %v3275 = vrsqrt.pop %v3267
        %v3276 = vrsqrt.pop %v3268
        %v3277 = vrsqrt.pop %v3269
        %v3278 = vrsqrt.pop %v3270
        %v3279 = vrsqrt.pop %v3271
        %v3280 = vmul.f32 %v3256, %v3272
        %v3281 = vmul.f32 %v3257, %v3273
        %v3282 = vmul.f32 %v3258, %v3274
        %v3283 = vmul.f32 %v3259, %v3275
        %v3284 = vmul.f32 %v3260, %v3276
        %v3285 = vmul.f32 %v3261, %v3277
        %v3286 = vmul.f32 %v3262, %v3278
        %v3287 = vmul.f32 %v3263, %v3279
        %v3288 = vmul.f32 %v3280, %v1041
        %v3289 = vmul.f32 %v3281, %v1041
        %v3290 = vmul.f32 %v3282, %v1041
        %v3291 = vmul.f32 %v3283, %v1041
        %v3292 = vmul.f32 %v3284, %v1041
        %v3293 = vmul.f32 %v3285, %v1041
        %v3294 = vmul.f32 %v3286, %v1041
        %v3295 = vmul.f32 %v3287, %v1041
        %v3296 = vadd.f32 %v3288, %v1052
        %v3297 = vadd.f32 %v3289, %v1052
        %v3298 = vadd.f32 %v3290, %v1052
        %v3299 = vadd.f32 %v3291, %v1052
        %v3300 = vadd.f32 %v3292, %v1052
        %v3301 = vadd.f32 %v3293, %v1052
        %v3302 = vadd.f32 %v3294, %v1052
        %v3303 = vadd.f32 %v3295, %v1052
        %3304 = vrot.lane.b32.xlu0 %v464, 32
        %v3305 = vpop.permute.xlu0 %3304
        %3306 = vrot.lane.b32.xlu0 %v470, 32
        %v3307 = vpop.permute.xlu0 %3306
        %3308 = vrot.lane.b32.xlu0 %v476, 32
        %v3309 = vpop.permute.xlu0 %3308
        %3310 = vrot.lane.b32.xlu0 %v482, 32
        %v3311 = vpop.permute.xlu0 %3310
        %3312 = vrot.lane.b32.xlu0 %v488, 32
        %v3313 = vpop.permute.xlu0 %3312
        %3314 = vrot.lane.b32.xlu0 %v494, 32
        %v3315 = vpop.permute.xlu0 %3314
        %3316 = vrot.lane.b32.xlu0 %v500, 32
        %v3317 = vpop.permute.xlu0 %3316
        %3318 = vrot.lane.b32.xlu0 %v506, 32
        %v3319 = vpop.permute.xlu0 %3318
        %v3328 = vsel %vm257, %v3305, 0.0
        %3329 = vadd.xlane.f32.xlu0 %v3328
        %v3330 = vpop.xlane.xlu0 %3329
        %v3331 = vsel %vm257, %v3307, 0.0
        %3332 = vadd.xlane.f32.xlu0 %v3331
        %v3333 = vpop.xlane.xlu0 %3332
        %v3334 = vsel %vm257, %v3309, 0.0
        %3335 = vadd.xlane.f32.xlu0 %v3334
        %v3336 = vpop.xlane.xlu0 %3335
        %v3337 = vsel %vm257, %v3311, 0.0
        %3338 = vadd.xlane.f32.xlu0 %v3337
        %v3339 = vpop.xlane.xlu0 %3338
        %v3340 = vsel %vm257, %v3313, 0.0
        %3341 = vadd.xlane.f32.xlu0 %v3340
        %v3342 = vpop.xlane.xlu0 %3341
        %v3343 = vsel %vm257, %v3315, 0.0
        %3344 = vadd.xlane.f32.xlu0 %v3343
        %v3345 = vpop.xlane.xlu0 %3344
        %v3346 = vsel %vm257, %v3317, 0.0
        %3347 = vadd.xlane.f32.xlu0 %v3346
        %v3348 = vpop.xlane.xlu0 %3347
        %v3349 = vsel %vm257, %v3319, 0.0
        %3350 = vadd.xlane.f32.xlu0 %v3349
        %v3351 = vpop.xlane.xlu0 %3350
        %v3352 = vmul.f32 %v3330, 0.03125
        %v3353 = vmul.f32 %v3333, 0.03125
        %v3354 = vmul.f32 %v3336, 0.03125
        %v3355 = vmul.f32 %v3339, 0.03125
        %v3356 = vmul.f32 %v3342, 0.03125
        %v3357 = vmul.f32 %v3345, 0.03125
        %v3358 = vmul.f32 %v3348, 0.03125
        %v3359 = vmul.f32 %v3351, 0.03125
        %3360 = vrot.lane.b32.xlu0 %v2808, 32
        %v3361 = vpop.permute.xlu0 %3360
        %3362 = vrot.lane.b32.xlu0 %v2809, 32
        %v3363 = vpop.permute.xlu0 %3362
        %3364 = vrot.lane.b32.xlu0 %v2810, 32
        %v3365 = vpop.permute.xlu0 %3364
        %3366 = vrot.lane.b32.xlu0 %v2811, 32
        %v3367 = vpop.permute.xlu0 %3366
        %3368 = vrot.lane.b32.xlu0 %v2812, 32
        %v3369 = vpop.permute.xlu0 %3368
        %3370 = vrot.lane.b32.xlu0 %v2813, 32
        %v3371 = vpop.permute.xlu0 %3370
        %3372 = vrot.lane.b32.xlu0 %v2814, 32
        %v3373 = vpop.permute.xlu0 %3372
        %3374 = vrot.lane.b32.xlu0 %v2815, 32
        %v3375 = vpop.permute.xlu0 %3374
        %v3384 = vsel %vm257, %v3361, 0.0
        %3385 = vadd.xlane.f32.xlu0 %v3384
        %v3386 = vpop.xlane.xlu0 %3385
        %v3387 = vsel %vm257, %v3363, 0.0
        %3388 = vadd.xlane.f32.xlu0 %v3387
        %v3389 = vpop.xlane.xlu0 %3388
        %v3390 = vsel %vm257, %v3365, 0.0
        %3391 = vadd.xlane.f32.xlu0 %v3390
        %v3392 = vpop.xlane.xlu0 %3391
        %v3393 = vsel %vm257, %v3367, 0.0
        %3394 = vadd.xlane.f32.xlu0 %v3393
        %v3395 = vpop.xlane.xlu0 %3394
        %v3396 = vsel %vm257, %v3369, 0.0
        %3397 = vadd.xlane.f32.xlu0 %v3396
        %v3398 = vpop.xlane.xlu0 %3397
        %v3399 = vsel %vm257, %v3371, 0.0
        %3400 = vadd.xlane.f32.xlu0 %v3399
        %v3401 = vpop.xlane.xlu0 %3400
        %v3402 = vsel %vm257, %v3373, 0.0
        %3403 = vadd.xlane.f32.xlu0 %v3402
        %v3404 = vpop.xlane.xlu0 %3403
        %v3405 = vsel %vm257, %v3375, 0.0
        %3406 = vadd.xlane.f32.xlu0 %v3405
        %v3407 = vpop.xlane.xlu0 %3406
        %v3408 = vmul.f32 %v3386, 0.03125
        %v3409 = vmul.f32 %v3389, 0.03125
        %v3410 = vmul.f32 %v3392, 0.03125
        %v3411 = vmul.f32 %v3395, 0.03125
        %v3412 = vmul.f32 %v3398, 0.03125
        %v3413 = vmul.f32 %v3401, 0.03125
        %v3414 = vmul.f32 %v3404, 0.03125
        %v3415 = vmul.f32 %v3407, 0.03125
        %v3416 = vmul.f32 %v3352, %v3352
        %v3417 = vmul.f32 %v3353, %v3353
        %v3418 = vmul.f32 %v3354, %v3354
        %v3419 = vmul.f32 %v3355, %v3355
        %v3420 = vmul.f32 %v3356, %v3356
        %v3421 = vmul.f32 %v3357, %v3357
        %v3422 = vmul.f32 %v3358, %v3358
        %v3423 = vmul.f32 %v3359, %v3359
        %v3424 = vsub.f32 %v3408, %v3416
        %v3425 = vsub.f32 %v3409, %v3417
        %v3426 = vsub.f32 %v3410, %v3418
        %v3427 = vsub.f32 %v3411, %v3419
        %v3428 = vsub.f32 %v3412, %v3420
        %v3429 = vsub.f32 %v3413, %v3421
        %v3430 = vsub.f32 %v3414, %v3422
        %v3431 = vsub.f32 %v3415, %v3423
        %v3432 = vmax.f32 %v3424, 0.0
        %v3433 = vmax.f32 %v3425, 0.0
        %v3434 = vmax.f32 %v3426, 0.0
        %v3435 = vmax.f32 %v3427, 0.0
        %v3436 = vmax.f32 %v3428, 0.0
        %v3437 = vmax.f32 %v3429, 0.0
        %v3438 = vmax.f32 %v3430, 0.0
        %v3439 = vmax.f32 %v3431, 0.0
        %v3440 = vsub.f32 %v464, %v3352
        %v3441 = vsub.f32 %v470, %v3353
        %v3442 = vsub.f32 %v476, %v3354
        %v3443 = vsub.f32 %v482, %v3355
        %v3444 = vsub.f32 %v488, %v3356
        %v3445 = vsub.f32 %v494, %v3357
        %v3446 = vsub.f32 %v500, %v3358
        %v3447 = vsub.f32 %v506, %v3359
        %v3448 = vadd.f32 %v3432, 1e-05
        %v3449 = vadd.f32 %v3433, 1e-05
        %v3450 = vadd.f32 %v3434, 1e-05
        %v3451 = vadd.f32 %v3435, 1e-05
        %v3452 = vadd.f32 %v3436, 1e-05
        %v3453 = vadd.f32 %v3437, 1e-05
        %v3454 = vadd.f32 %v3438, 1e-05
        %v3455 = vadd.f32 %v3439, 1e-05
        %v3456 = vrsqrt.pop %v3448
        %v3457 = vrsqrt.pop %v3449
        %v3458 = vrsqrt.pop %v3450
        %v3459 = vrsqrt.pop %v3451
        %v3460 = vrsqrt.pop %v3452
        %v3461 = vrsqrt.pop %v3453
        %v3462 = vrsqrt.pop %v3454
        %v3463 = vrsqrt.pop %v3455
        %v3464 = vmul.f32 %v3440, %v3456
        %v3465 = vmul.f32 %v3441, %v3457
        %v3466 = vmul.f32 %v3442, %v3458
        %v3467 = vmul.f32 %v3443, %v3459
        %v3468 = vmul.f32 %v3444, %v3460
        %v3469 = vmul.f32 %v3445, %v3461
        %v3470 = vmul.f32 %v3446, %v3462
        %v3471 = vmul.f32 %v3447, %v3463
        %v3472 = vmul.f32 %v3464, %v1231
        %v3473 = vmul.f32 %v3465, %v1231
        %v3474 = vmul.f32 %v3466, %v1231
        %v3475 = vmul.f32 %v3467, %v1231
        %v3476 = vmul.f32 %v3468, %v1231
        %v3477 = vmul.f32 %v3469, %v1231
        %v3478 = vmul.f32 %v3470, %v1231
        %v3479 = vmul.f32 %v3471, %v1231
        %v3480 = vadd.f32 %v3472, %v1242
        %v3481 = vadd.f32 %v3473, %v1242
        %v3482 = vadd.f32 %v3474, %v1242
        %v3483 = vadd.f32 %v3475, %v1242
        %v3484 = vadd.f32 %v3476, %v1242
        %v3485 = vadd.f32 %v3477, %v1242
        %v3486 = vadd.f32 %v3478, %v1242
        %v3487 = vadd.f32 %v3479, %v1242
        %v3488 = vsel %vm257, %v2912, %v3112
        %v3489 = vsel %vm257, %v2913, %v3113
        %v3490 = vsel %vm257, %v2914, %v3114
        %v3491 = vsel %vm257, %v2915, %v3115
        %v3492 = vsel %vm257, %v2916, %v3116
        %v3493 = vsel %vm257, %v2917, %v3117
        %v3494 = vsel %vm257, %v2918, %v3118
        %v3495 = vsel %vm257, %v2919, %v3119
        %v3496 = vsel %vm1260, %v3488, %v3296
        %v3497 = vsel %vm1260, %v3489, %v3297
        %v3498 = vsel %vm1260, %v3490, %v3298
        %v3499 = vsel %vm1260, %v3491, %v3299
        %v3500 = vsel %vm1260, %v3492, %v3300
        %v3501 = vsel %vm1260, %v3493, %v3301
        %v3502 = vsel %vm1260, %v3494, %v3302
        %v3503 = vsel %vm1260, %v3495, %v3303
        %v3504 = vsel %vm1269, %v3496, %v3480
        %v3505 = vsel %vm1269, %v3497, %v3481
        %v3506 = vsel %vm1269, %v3498, %v3482
        %v3507 = vsel %vm1269, %v3499, %v3483
        %v3508 = vsel %vm1269, %v3500, %v3484
        %v3509 = vsel %vm1269, %v3501, %v3485
        %v3510 = vsel %vm1269, %v3502, %v3486
        %v3511 = vsel %vm1269, %v3503, %v3487
        %s3512 = scalar_lea.vmem %s230, 24 [#allocation7]
        %3513 = vst [vmem:[%s3512] sm:$0xff] %v3504
        %3514 = vst [vmem:[%s3512 + $0x20] sm:$0xff] %v3505
        %3515 = vst [vmem:[%s3512 + $0x40] sm:$0xff] %v3506
        %3516 = vst [vmem:[%s3512 + $0x60] sm:$0xff] %v3507
        %3517 = vst [vmem:[%s3512 + $0x80] sm:$0xff] %v3508
        %3518 = vst [vmem:[%s3512 + $0xa0] sm:$0xff] %v3509
        %3519 = vst [vmem:[%s3512 + $0xc0] sm:$0xff] %v3510
        %3520 = vst [vmem:[%s3512 + $0xe0] sm:$0xff] %v3511
        %s3521 = sand.u32 %s119, 1
        %s3522 = scalar_lea.sflag [#allocation4], %s3521
        %s3523 = sand.u32 %s119, 1
        %s3524 = smul.addr %s3523, 256
        %s3525 = scalar_lea.vmem [#allocation7], %s3524
        // Predicated region
        $region45: #{tpu_custom_call.1} parent=35 // pred_check
          %p3526 = pneg %p129
        $region46: #{tpu_custom_call.1} parent=35 // pred_check_branch
          %3528 = sbr.rel (%p3526) target = $region48
        $region47: #{tpu_custom_call.1} parent=35 // pred_region
          %s3529 = smul.u32 8, %s22
          %s3531 = ssub.s32 4096, 4096
          %3532 = vsyncadd %s3522, %s3531
          %s3533 = smul.addr %s3529, 4
          %s3534 = smul.addr %s3533, 128
          %s3535 = scalar_lea.hbm %s4, %s3534
          %s3536 = sshll.u32 %s3525, 4
          %s3537 = int_to_ptr.vmem [resolvable:$true] %s3536
          %3542 = dma.vmem_to_hbm [thread:$0]  %s3537, 4096, %s3535, %s3522, 128, 128, 8
        $region48: #{tpu_custom_call.1} parent=35 // pred_fallthru
          _
      $region36: #{tpu_custom_call.1} parent=5 // pred_fallthru
        _
      %p3543 = scmp.le.s32.totalorder 2, %s17
      // Predicated region
      $region49: #{tpu_custom_call.1} parent=5 // pred_check
        %p3544 = pneg %p3543
      $region50: #{tpu_custom_call.1} parent=5 // pred_check_branch
        %3546 = sbr.rel (%p3544) target = $region52
      $region51: #{tpu_custom_call.1} parent=5 // pred_region
        %s3547 = ssub.s32 %s17, 2
        // Predicated region
        $region53: #{tpu_custom_call.1} parent=51 // pred_check
          %p3548 = pneg %p135
        $region54: #{tpu_custom_call.1} parent=51 // pred_check_branch
          %3550 = sbr.rel (%p3548) target = $region56
        $region55: #{tpu_custom_call.1} parent=51 // pred_region
          %s3551 = sand.u32 %s120, 1
          %s3552 = scalar_lea.sflag [#allocation4], %s3551
          %s3553 = sand.u32 %s120, 1
          %s3554 = smul.addr %s3553, 256
          %s3555 = scalar_lea.vmem [#allocation7], %s3554
          %3556 = dma.done %s3552, 4096
        $region56: #{tpu_custom_call.1} parent=51 // pred_fallthru
          _
      $region52: #{tpu_custom_call.1} parent=5 // pred_fallthru
        _
    $region6: #{tpu_custom_call.1} parent=1 // loop_footer
      %s21 = sadd.s32 1, %s17
    $region7: #{tpu_custom_call.1} parent=1 // loop_footer_branch
      %16 = sbr.rel target = $region3
    $region8: #{tpu_custom_call.1} parent=1 // loop_exit
      _
    %3557 = vsyncpa [#allocation3], 1
    %s3558 = scalar_lea.sflag [#allocation3], 1
    %3559 = vsyncpa %s3558, 1
    %3560 = vsyncpa [#allocation6], 1
    %3561 = vsyncpa [#allocation4], 1
    %s3562 = scalar_lea.sflag [#allocation4], 1
    %3563 = vsyncpa %s3562, 1

</llo_original>
